<compile_context>
chip_gen: v5e
topology: v5e:2x2
jax: 0.10.0
libtpu: 0.0.40
codegen_flags: <defaults>
</compile_context>

<pallas_src>
import math

import numpy as np
import jax
import jax.numpy as jnp
from jax import lax
from jax.experimental import pallas as pl
from jax.experimental.pallas import tpu as pltpu

FEATURE_DIM = 128          # forced to 128 in AttentionalGNN.__init__
NUM_HEADS = 4
HEAD_DIM = FEATURE_DIM // NUM_HEADS  # 32


# ---------------------------------------------------------------------------
# Fused Pallas kernel: whole layer stack for one batch element
# ---------------------------------------------------------------------------

def _gnn_stack_kernel(is_cross_ref, x_ref, wqx_ref, wkv_ref, wmg_ref, b_ref,
                      out_ref, kv_scr):
    """grid = (B,).  x_ref / out_ref: (1, 2N, C) stacked [desc0; desc1]
    activations.  Weight stacks (leading dim L) are fully VMEM resident."""
    f32, bf16 = jnp.float32, jnp.bfloat16
    C = FEATURE_DIM
    D = HEAD_DIM
    two_n = out_ref.shape[1]
    N = two_n // 2
    L = wqx_ref.shape[0]

    # Initialize the resident activation from the (maxpooled, stacked) input.
    out_ref[...] = x_ref[...]

    @pl.loop(0, L)
    def _layer(l):
        x = out_ref[0]                       # (2N, C) f32, both descriptors
        xb = x.astype(bf16)
        bias = b_ref[l]                      # (8, 2C) f32
        b_qx = bias[0:1, :]
        b_kv = bias[1:2, :]

        # 256-wide fused projections (fill the 2x256 MXU on v6e/v7x):
        #   qx[:, :C] = q (head-major, pre-scaled by 1/sqrt(D))
        #   qx[:, C:] = x @ W_mlp_x + (bm @ W_mlp_msg + b_mlp)   (fused bias)
        #   kv[:, :C] = k (head-major),  kv[:, C:] = v (head-major)
        qx = jnp.dot(xb, wqx_ref[l], preferred_element_type=f32) + b_qx  # (2N, 2C)
        kv = jnp.dot(xb, wkv_ref[l], preferred_element_type=f32) + b_kv  # (2N, 2C)
        # Stage k/v per descriptor so self/cross selection is an index, not a
        # full-tile select.
        kv_scr[0] = kv[0:N, :]
        kv_scr[1] = kv[N:2 * N, :]

        wmg = wmg_ref[l]                     # (C, C) bf16: merge @ mlp_msg, head-major rows
        cross = is_cross_ref[l]              # i32 scalar: 1 -> 'cross' layer

        for d in range(2):                   # descriptor 0 / 1, static unroll
            rows = slice(d * N, (d + 1) * N)
            # Attention source: own k/v for 'self', the other descriptor's for
            # 'cross' -- pure scalar index arithmetic (no broadcast/where).
            src = cross if d == 0 else 1 - cross
            kv_d = kv_scr[src]               # (N, 2C) f32
            acc = jnp.zeros((N, C), f32)
            for h in range(NUM_HEADS):       # static unroll
                cq = slice(h * D, (h + 1) * D)
                cv = slice(C + h * D, C + (h + 1) * D)
                qh = qx[rows, cq].astype(bf16)                 # (N, D)
                kh = kv_d[:, cq].astype(bf16)                  # (N, D)
                vh = kv_d[:, cv].astype(bf16)                  # (N, D)
                s = lax.dot_general(qh, kh, (((1,), (1,)), ((), ())),
                                    preferred_element_type=f32)   # (N, N)
                m = jnp.max(s, axis=-1, keepdims=True)
                p = jnp.exp(s - m)
                denom = jnp.sum(p, axis=-1, keepdims=True)
                # Unnormalized PV; normalize the small (N, D) result with the
                # EUP reciprocal instead of the (N, N) probabilities.
                oh = jnp.dot(p.astype(bf16), vh, preferred_element_type=f32)
                oh = oh * pl.reciprocal(denom, approx=True)
                # Merge conv statically folded into the MLP message path.
                acc = acc + jnp.dot(oh.astype(bf16), wmg[cq, :],
                                    preferred_element_type=f32)
            # Residual update: x + (x-half MLP, bias already fused) + message.
            out_ref[0, rows, :] = x[rows, :] + qx[rows, C:2 * C] + acc


# ---------------------------------------------------------------------------
# Wrapper
# ---------------------------------------------------------------------------

def gnn_forward(desc0, desc1, kernel_params, layer_names):
    """AttentionalGNN.forward.  desc{0,1}: (B, 2C, N) -> two (B, C, N) arrays."""
    wqx_stack, wkv_stack, wmg_stack, b_stack = kernel_params
    B, C2, N0 = desc0.shape
    C = C2 // 2
    N1 = desc1.shape[2]
    L = len(layer_names)
    assert C == FEATURE_DIM
    assert N0 == N1, "fused kernel assumes equal keypoint counts (pad + mask otherwise)"
    assert N0 % 8 == 0, "keypoint count must be sublane aligned"
    assert wqx_stack.shape[0] == L and b_stack.shape[0] == L
    N = N0

    # MaxPool1d(2,2) over channel pairs + transpose to lane-dense (B, N, C),
    # then stack both descriptors along the point axis (plain XLA prep).
    d0 = jnp.transpose(jnp.max(desc0.reshape(B, C, 2, N), axis=2), (0, 2, 1))
    d1 = jnp.transpose(jnp.max(desc1.reshape(B, C, 2, N), axis=2), (0, 2, 1))
    x = jnp.concatenate([d0, d1], axis=1)              # (B, 2N, C) f32

    is_cross = jnp.asarray([1 if n == 'cross' else 0 for n in layer_names],
                           jnp.int32)

    # Advisory cost estimate for XLA's scheduler.
    flops_layer = 2 * (2 * (2 * N) * C * (2 * C))                  # qx + kv projections
    flops_layer += 2 * NUM_HEADS * (2 * 2 * N * N * HEAD_DIM)      # scores + PV
    flops_layer += 2 * NUM_HEADS * (2 * N * HEAD_DIM * C)          # fused merge matmuls
    flops = B * L * flops_layer
    transcendentals = B * L * 2 * NUM_HEADS * N * N
    weight_bytes = ((wqx_stack.size + wkv_stack.size + wmg_stack.size) * 2
                    + b_stack.size * 4)
    bytes_accessed = weight_bytes + 2 * B * 2 * N * C * 4
    cost = pl.CostEstimate(flops=flops, transcendentals=transcendentals,
                           bytes_accessed=bytes_accessed)

    # Explicit scoped-VMEM budget: resident weight stacks (2 pipeline buffers),
    # double-buffered activation blocks, kv scratch and in-layer working set,
    # clamped to [32, 64] MiB so it is valid on v7x as well.
    est = (2 * weight_bytes
           + 4 * 2 * N * C * 4
           + 2 * N * 2 * C * 4
           + 8 * 2 * N * 2 * C * 4
           + NUM_HEADS * 2 * N * N * 4)
    vmem_limit = int(min(64 * 2 ** 20, max(32 * 2 ** 20, 2 * est)))

    out = pl.pallas_call(
        _gnn_stack_kernel,
        out_shape=jax.ShapeDtypeStruct((B, 2 * N, C), jnp.float32),
        grid_spec=pltpu.PrefetchScalarGridSpec(
            num_scalar_prefetch=1,
            grid=(B,),
            in_specs=[
                pl.BlockSpec((1, 2 * N, C), lambda b, ic: (b, 0, 0)),
                # Whole weight stacks, constant index_map -> fetched once, resident.
                pl.BlockSpec((L, C, 2 * C), lambda b, ic: (0, 0, 0)),
                pl.BlockSpec((L, C, 2 * C), lambda b, ic: (0, 0, 0)),
                pl.BlockSpec((L, C, C), lambda b, ic: (0, 0, 0)),
                pl.BlockSpec((L, 8, 2 * C), lambda b, ic: (0, 0, 0)),
            ],
            out_specs=pl.BlockSpec((1, 2 * N, C), lambda b, ic: (b, 0, 0)),
            scratch_shapes=[pltpu.VMEM((2, N, 2 * C), jnp.float32)],
        ),
        compiler_params=pltpu.CompilerParams(
            dimension_semantics=("parallel",),
            vmem_limit_bytes=vmem_limit),
        cost_estimate=cost,
    )(is_cross, x, wqx_stack, wkv_stack, wmg_stack, b_stack)

    # Back to the module's channels-major (B, C, N) contract.
    out0 = jnp.transpose(out[:, :N, :], (0, 2, 1))
    out1 = jnp.transpose(out[:, N:, :], (0, 2, 1))
    return out0, out1


# ---------------------------------------------------------------------------
# Parameter construction (deterministic, synthetic) + static kernel transforms
# ---------------------------------------------------------------------------

def init_params(key, num_layers):
    C, H, D = FEATURE_DIM, NUM_HEADS, HEAD_DIM
    # perm[h*D + d] = d*H + h : contiguous head-major <- PyTorch interleaved view
    perm = np.asarray((np.arange(D)[None, :] * H + np.arange(H)[:, None]).reshape(-1))
    qscale = 1.0 / math.sqrt(D)
    wscale = 0.05

    raw_layers = []
    wqx_l, wkv_l, wmg_l, b_l = [], [], [], []
    for _ in range(num_layers):
        key, *ks = jax.random.split(key, 11)
        wq = jax.random.normal(ks[0], (C, C), jnp.float32) * wscale
        bq = jax.random.normal(ks[1], (C,), jnp.float32) * wscale
        wk = jax.random.normal(ks[2], (C, C), jnp.float32) * wscale
        bk = jax.random.normal(ks[3], (C,), jnp.float32) * wscale
        wv = jax.random.normal(ks[4], (C, C), jnp.float32) * wscale
        bv = jax.random.normal(ks[5], (C,), jnp.float32) * wscale
        wm = jax.random.normal(ks[6], (C, C), jnp.float32) * wscale
        bm = jax.random.normal(ks[7], (C,), jnp.float32) * wscale
        wmlp = jax.random.normal(ks[8], (C, 2 * C), jnp.float32) * wscale
        bmlp = jnp.zeros((C,), jnp.float32)  # nn.init.constant_(mlp[-1].bias, 0.)

        raw_layers.append((wq, bq, wk, bk, wv, bv, wm, bm, wmlp, bmlp))

        # Static kernel-side transforms (all composed in f32, cast to bf16 once):
        #   head-major channel perm, (in, out) transpose, 1/sqrt(D) folded into q,
        #   q fused with MLP x-half, k fused with v, merge conv folded into the
        #   MLP message-half (wm' = wm_hm @ wmm, b' = bm @ wmm + bmlp).
        wq_hm = wq[perm] * qscale
        bq_hm = bq[perm] * qscale
        wk_hm, bk_hm = wk[perm], bk[perm]
        wv_hm, bv_hm = wv[perm], bv[perm]
        wmx = wmlp[:, :C]          # MLP weight, x half        (out, in)
        wmm = wmlp[:, C:]          # MLP weight, message half  (out, in)

        wqx_l.append(jnp.concatenate([wq_hm.T, wmx.T], axis=1))     # (C, 2C)
        wkv_l.append(jnp.concatenate([wk_hm.T, wv_hm.T], axis=1))   # (C, 2C)
        wmg_l.append(wm[:, perm].T @ wmm.T)                         # (C, C) f32 compose
        b_fused = bm @ wmm.T + bmlp
        b_qx = jnp.concatenate([bq_hm, b_fused])                    # (2C,)
        b_kv = jnp.concatenate([bk_hm, bv_hm])                      # (2C,)
        b_l.append(jnp.concatenate(
            [jnp.stack([b_qx, b_kv]), jnp.zeros((6, 2 * C), jnp.float32)], axis=0))

    wqx_stack = jnp.stack(wqx_l).astype(jnp.bfloat16)   # (L, C, 2C) bf16
    wkv_stack = jnp.stack(wkv_l).astype(jnp.bfloat16)   # (L, C, 2C) bf16
    wmg_stack = jnp.stack(wmg_l).astype(jnp.bfloat16)   # (L, C, C)  bf16
    b_stack = jnp.stack(b_l).astype(jnp.float32)        # (L, 8, 2C) f32
    return raw_layers, (wqx_stack, wkv_stack, wmg_stack, b_stack)


# ---------------------------------------------------------------------------
# Pure-JAX reference (mirrors the PyTorch module exactly) for verification
# ---------------------------------------------------------------------------

def _ref_layer(x, src, p):
    wq, bq, wk, bk, wv, bv, wm, bm, wmlp, bmlp = p
    B, C, N = x.shape
    M = src.shape[2]
    H, D = NUM_HEADS, HEAD_DIM
    q = jnp.einsum('oi,bin->bon', wq, x) + bq[None, :, None]
    k = jnp.einsum('oi,bim->bom', wk, src) + bk[None, :, None]
    v = jnp.einsum('oi,bim->bom', wv, src) + bv[None, :, None]
    q = q.reshape(B, D, H, N)
    k = k.reshape(B, D, H, M)
    v = v.reshape(B, D, H, M)
    scores = jnp.einsum('bdhn,bdhm->bhnm', q, k) / math.sqrt(D)
    prob = jax.nn.softmax(scores, axis=-1)
    att = jnp.einsum('bhnm,bdhm->bdhn', prob, v).reshape(B, C, N)
    merged = jnp.einsum('oi,bin->bon', wm, att) + bm[None, :, None]
    cat = jnp.concatenate([x, merged], axis=1)
    delta = jnp.einsum('oi,bin->bon', wmlp, cat) + bmlp[None, :, None]
    return x + delta


def ref_forward(desc0, desc1, raw_params, layer_names):
    B = desc0.shape[0]
    C = FEATURE_DIM
    d0 = jnp.max(desc0.reshape(B, C, 2, -1), axis=2)
    d1 = jnp.max(desc1.reshape(B, C, 2, -1), axis=2)
    for p, name in zip(raw_params, layer_names):
        if name == 'cross':
            s0, s1 = d1, d0
        else:
            s0, s1 = d0, d1
        nd0 = _ref_layer(d0, s0, p)
        nd1 = _ref_layer(d1, s1, p)
        d0, d1 = nd0, nd1
    return d0, d1


# ---------------------------------------------------------------------------
if __name__ == "__main__":
    B, N = 2, 64
    layer_names = ['self', 'cross']

    key = jax.random.PRNGKey(0)
    k0, k1, kp = jax.random.split(key, 3)
    desc0 = jax.random.normal(k0, (B, 2 * FEATURE_DIM, N), jnp.float32)
    desc1 = jax.random.normal(k1, (B, 2 * FEATURE_DIM, N), jnp.float32)

    raw_params, kernel_params = init_params(kp, len(layer_names))

    out0, out1 = gnn_forward(desc0, desc1, kernel_params, layer_names)
    jax.block_until_ready((out0, out1))

    ref0, ref1 = ref_forward(desc0, desc1, raw_params, layer_names)
    np.testing.assert_allclose(np.asarray(out0), np.asarray(ref0), rtol=2e-2, atol=2e-2)
    np.testing.assert_allclose(np.asarray(out1), np.asarray(ref1), rtol=2e-2, atol=2e-2)

    print("KERNEL_OK")
</pallas_src>

<mosaic_0001>
module attributes {stable_mosaic.version = 11 : i64} {
  func.func @_gnn_stack_kernel(%arg0: i32, %arg1: memref<2xi32, #tpu.memory_space<smem>>, %arg2: memref<1x128x128xf32, #tpu.memory_space<vmem>>, %arg3: memref<2x128x256xbf16, #tpu.memory_space<vmem>>, %arg4: memref<2x128x256xbf16, #tpu.memory_space<vmem>>, %arg5: memref<2x128x128xbf16, #tpu.memory_space<vmem>>, %arg6: memref<2x8x256xf32, #tpu.memory_space<vmem>>, %arg7: memref<1x128x128xf32, #tpu.memory_space<vmem>>, %arg8: memref<2x64x256xf32, #tpu.memory_space<vmem>>) attributes {dimension_semantics = [#tpu.dimension_semantics<parallel>], iteration_bounds = array<i64: 2>, scalar_prefetch = 1 : i64, scratch_operands = 1 : i64, tpu.core_type = #tpu.core_type<tc>, window_params = [{transform_indices = @transform_0, window_bounds = array<i64: 1, 128, 128>}, {pipeline_mode = #tpu.pipeline_mode<synchronous>, transform_indices = @transform_1, window_bounds = array<i64: 2, 128, 256>}, {pipeline_mode = #tpu.pipeline_mode<synchronous>, transform_indices = @transform_2, window_bounds = array<i64: 2, 128, 256>}, {pipeline_mode = #tpu.pipeline_mode<synchronous>, transform_indices = @transform_3, window_bounds = array<i64: 2, 128, 128>}, {pipeline_mode = #tpu.pipeline_mode<synchronous>, transform_indices = @transform_4, window_bounds = array<i64: 2, 8, 256>}, {transform_indices = @transform_5, window_bounds = array<i64: 1, 128, 128>}]} {
    %c0 = arith.constant 0 : index
    %c0_0 = arith.constant 0 : index
    %c0_1 = arith.constant 0 : index
    %0 = vector.load %arg2[%c0, %c0_0, %c0_1] : memref<1x128x128xf32, #tpu.memory_space<vmem>>, vector<1x128x128xf32>
    %c0_2 = arith.constant 0 : index
    %c0_3 = arith.constant 0 : index
    %c0_4 = arith.constant 0 : index
    %1 = vector.load %arg7[%c0_2, %c0_3, %c0_4] : memref<1x128x128xf32, #tpu.memory_space<vmem>>, vector<1x128x128xf32>
    tpu.vector_store %arg7[%c0_2, %c0_3, %c0_4], %0 {strides = array<i32>} : memref<1x128x128xf32, #tpu.memory_space<vmem>>, vector<1x128x128xf32>,
    %c0_i32 = arith.constant 0 : i32
    %c2_i32 = arith.constant 2 : i32
    %2 = arith.addi %c0_i32, %c2_i32 : i32
    %c1_i32 = arith.constant 1 : i32
    scf.for %arg9 = %c0_i32 to %2 step %c1_i32  : i32 {
      %c1_i32_6 = arith.constant 1 : i32
      %3 = arith.muli %arg9, %c1_i32_6 : i32
      %c0_i32_7 = arith.constant 0 : i32
      %4 = arith.addi %c0_i32_7, %3 : i32
      %c0_8 = arith.constant 0 : index
      %c0_9 = arith.constant 0 : index
      %c0_10 = arith.constant 0 : index
      %5 = vector.load %arg7[%c0_8, %c0_9, %c0_10] : memref<1x128x128xf32, #tpu.memory_space<vmem>>, vector<1x128x128xf32>
      %6 = vector.shape_cast %5 : vector<1x128x128xf32> to vector<128x128xf32>
      %7 = arith.truncf %6 : vector<128x128xf32> to vector<128x128xbf16>
      %8 = arith.index_cast %4 : i32 to index
      %c0_11 = arith.constant 0 : index
      %c0_12 = arith.constant 0 : index
      %9 = vector.load %arg6[%8, %c0_11, %c0_12] : memref<2x8x256xf32, #tpu.memory_space<vmem>>, vector<1x8x256xf32>
      %10 = vector.shape_cast %9 : vector<1x8x256xf32> to vector<8x256xf32>
      %11 = vector.extract_strided_slice %10 {offsets = [0, 0], sizes = [1, 256], strides = [1, 1]} : vector<8x256xf32> to vector<1x256xf32>
      %12 = vector.extract_strided_slice %10 {offsets = [1, 0], sizes = [1, 256], strides = [1, 1]} : vector<8x256xf32> to vector<1x256xf32>
      %13 = arith.index_cast %4 : i32 to index
      %c0_13 = arith.constant 0 : index
      %c0_14 = arith.constant 0 : index
      %14 = vector.load %arg3[%13, %c0_13, %c0_14] : memref<2x128x256xbf16, #tpu.memory_space<vmem>>, vector<1x128x256xbf16>
      %15 = vector.shape_cast %14 : vector<1x128x256xbf16> to vector<128x256xbf16>
      %cst = arith.constant dense<0.000000e+00> : vector<128x256xf32>
      %16 = tpu.matmul %7, %15, %cst {dimension_numbers = #tpu.dot_dimension_numbers<[1], [0], [0], [1], [0, 0, 1, 1], [], []>} : vector<128x128xbf16>, vector<128x256xbf16>, vector<128x256xf32> -> vector<128x256xf32>
      %17 = vector.broadcast %11 : vector<1x256xf32> to vector<128x256xf32>
      %18 = arith.addf %16, %17 : vector<128x256xf32>
      %19 = arith.index_cast %4 : i32 to index
      %c0_15 = arith.constant 0 : index
      %c0_16 = arith.constant 0 : index
      %20 = vector.load %arg4[%19, %c0_15, %c0_16] : memref<2x128x256xbf16, #tpu.memory_space<vmem>>, vector<1x128x256xbf16>
      %21 = vector.shape_cast %20 : vector<1x128x256xbf16> to vector<128x256xbf16>
      %cst_17 = arith.constant dense<0.000000e+00> : vector<128x256xf32>
      %22 = tpu.matmul %7, %21, %cst_17 {dimension_numbers = #tpu.dot_dimension_numbers<[1], [0], [0], [1], [0, 0, 1, 1], [], []>} : vector<128x128xbf16>, vector<128x256xbf16>, vector<128x256xf32> -> vector<128x256xf32>
      %23 = vector.broadcast %12 : vector<1x256xf32> to vector<128x256xf32>
      %24 = arith.addf %22, %23 : vector<128x256xf32>
      %25 = vector.extract_strided_slice %24 {offsets = [0, 0], sizes = [64, 256], strides = [1, 1]} : vector<128x256xf32> to vector<64x256xf32>
      %c0_18 = arith.constant 0 : index
      %c0_19 = arith.constant 0 : index
      %c0_20 = arith.constant 0 : index
      %26 = vector.load %arg8[%c0_18, %c0_19, %c0_20] : memref<2x64x256xf32, #tpu.memory_space<vmem>>, vector<1x64x256xf32>
      %27 = vector.shape_cast %26 : vector<1x64x256xf32> to vector<64x256xf32>
      %28 = vector.shape_cast %25 : vector<64x256xf32> to vector<1x64x256xf32>
      tpu.vector_store %arg8[%c0_18, %c0_19, %c0_20], %28 {strides = array<i32>} : memref<2x64x256xf32, #tpu.memory_space<vmem>>, vector<1x64x256xf32>,
      %29 = vector.extract_strided_slice %24 {offsets = [64, 0], sizes = [64, 256], strides = [1, 1]} : vector<128x256xf32> to vector<64x256xf32>
      %c1 = arith.constant 1 : index
      %c0_21 = arith.constant 0 : index
      %c0_22 = arith.constant 0 : index
      %30 = vector.load %arg8[%c1, %c0_21, %c0_22] : memref<2x64x256xf32, #tpu.memory_space<vmem>>, vector<1x64x256xf32>
      %31 = vector.shape_cast %30 : vector<1x64x256xf32> to vector<64x256xf32>
      %32 = vector.shape_cast %29 : vector<64x256xf32> to vector<1x64x256xf32>
      tpu.vector_store %arg8[%c1, %c0_21, %c0_22], %32 {strides = array<i32>} : memref<2x64x256xf32, #tpu.memory_space<vmem>>, vector<1x64x256xf32>,
      %33 = arith.index_cast %4 : i32 to index
      %c0_23 = arith.constant 0 : index
      %c0_24 = arith.constant 0 : index
      %34 = vector.load %arg5[%33, %c0_23, %c0_24] : memref<2x128x128xbf16, #tpu.memory_space<vmem>>, vector<1x128x128xbf16>
      %35 = vector.shape_cast %34 : vector<1x128x128xbf16> to vector<128x128xbf16>
      %36 = arith.index_cast %4 : i32 to index
      %37 = memref.load %arg1[%36] : memref<2xi32, #tpu.memory_space<smem>>
      %38 = arith.index_cast %37 : i32 to index
      %c0_25 = arith.constant 0 : index
      %c0_26 = arith.constant 0 : index
      %39 = vector.load %arg8[%38, %c0_25, %c0_26] : memref<2x64x256xf32, #tpu.memory_space<vmem>>, vector<1x64x256xf32>
      %40 = vector.shape_cast %39 : vector<1x64x256xf32> to vector<64x256xf32>
      %cst_27 = arith.constant 0.000000e+00 : f32
      %41 = vector.broadcast %cst_27 : f32 to vector<64x128xf32>
      %42 = vector.extract_strided_slice %18 {offsets = [0, 0], sizes = [64, 32], strides = [1, 1]} : vector<128x256xf32> to vector<64x32xf32>
      %43 = arith.truncf %42 : vector<64x32xf32> to vector<64x32xbf16>
      %44 = vector.extract_strided_slice %40 {offsets = [0, 0], sizes = [64, 32], strides = [1, 1]} : vector<64x256xf32> to vector<64x32xf32>
      %45 = arith.truncf %44 : vector<64x32xf32> to vector<64x32xbf16>
      %46 = vector.extract_strided_slice %40 {offsets = [0, 128], sizes = [64, 32], strides = [1, 1]} : vector<64x256xf32> to vector<64x32xf32>
      %47 = arith.truncf %46 : vector<64x32xf32> to vector<64x32xbf16>
      %cst_28 = arith.constant dense<0.000000e+00> : vector<64x64xf32>
      %48 = tpu.matmul %43, %45, %cst_28 {dimension_numbers = #tpu.dot_dimension_numbers<[1], [1], [0], [0], [0, 0, 1, 0], [], []>} : vector<64x32xbf16>, vector<64x32xbf16>, vector<64x64xf32> -> vector<64x64xf32>
      %cst_29 = arith.constant dense<0xFF800000> : vector<64xf32>
      %49 = vector.multi_reduction <maximumf>, %48, %cst_29 [1] : vector<64x64xf32> to vector<64xf32>
      %50 = vector.shape_cast %49 : vector<64xf32> to vector<64x1xf32>
      %51 = vector.broadcast %50 : vector<64x1xf32> to vector<64x64xf32>
      %52 = arith.subf %48, %51 : vector<64x64xf32>
      %53 = math.exp %52 : vector<64x64xf32>
      %cst_30 = arith.constant dense<0.000000e+00> : vector<64xf32>
      %54 = vector.multi_reduction <add>, %53, %cst_30 [1] : vector<64x64xf32> to vector<64xf32>
      %55 = vector.shape_cast %54 : vector<64xf32> to vector<64x1xf32>
      %56 = arith.truncf %53 : vector<64x64xf32> to vector<64x64xbf16>
      %cst_31 = arith.constant dense<0.000000e+00> : vector<64x32xf32>
      %57 = tpu.matmul %56, %47, %cst_31 {dimension_numbers = #tpu.dot_dimension_numbers<[1], [0], [0], [1], [0, 0, 1, 1], [], []>} : vector<64x64xbf16>, vector<64x32xbf16>, vector<64x32xf32> -> vector<64x32xf32>
      %58 = tpu.reciprocal %55 {approx = true} : vector<64x1xf32> -> vector<64x1xf32>
      %59 = vector.broadcast %58 : vector<64x1xf32> to vector<64x32xf32>
      %60 = arith.mulf %57, %59 : vector<64x32xf32>
      %61 = arith.truncf %60 : vector<64x32xf32> to vector<64x32xbf16>
      %62 = vector.extract_strided_slice %35 {offsets = [0, 0], sizes = [32, 128], strides = [1, 1]} : vector<128x128xbf16> to vector<32x128xbf16>
      %cst_32 = arith.constant dense<0.000000e+00> : vector<64x128xf32>
      %63 = tpu.matmul %61, %62, %cst_32 {dimension_numbers = #tpu.dot_dimension_numbers<[1], [0], [0], [1], [0, 0, 1, 1], [], []>} : vector<64x32xbf16>, vector<32x128xbf16>, vector<64x128xf32> -> vector<64x128xf32>
      %64 = arith.addf %41, %63 : vector<64x128xf32>
      %65 = vector.extract_strided_slice %18 {offsets = [0, 32], sizes = [64, 32], strides = [1, 1]} : vector<128x256xf32> to vector<64x32xf32>
      %66 = arith.truncf %65 : vector<64x32xf32> to vector<64x32xbf16>
      %67 = vector.extract_strided_slice %40 {offsets = [0, 32], sizes = [64, 32], strides = [1, 1]} : vector<64x256xf32> to vector<64x32xf32>
      %68 = arith.truncf %67 : vector<64x32xf32> to vector<64x32xbf16>
      %69 = vector.extract_strided_slice %40 {offsets = [0, 160], sizes = [64, 32], strides = [1, 1]} : vector<64x256xf32> to vector<64x32xf32>
      %70 = arith.truncf %69 : vector<64x32xf32> to vector<64x32xbf16>
      %cst_33 = arith.constant dense<0.000000e+00> : vector<64x64xf32>
      %71 = tpu.matmul %66, %68, %cst_33 {dimension_numbers = #tpu.dot_dimension_numbers<[1], [1], [0], [0], [0, 0, 1, 0], [], []>} : vector<64x32xbf16>, vector<64x32xbf16>, vector<64x64xf32> -> vector<64x64xf32>
      %cst_34 = arith.constant dense<0xFF800000> : vector<64xf32>
      %72 = vector.multi_reduction <maximumf>, %71, %cst_34 [1] : vector<64x64xf32> to vector<64xf32>
      %73 = vector.shape_cast %72 : vector<64xf32> to vector<64x1xf32>
      %74 = vector.broadcast %73 : vector<64x1xf32> to vector<64x64xf32>
      %75 = arith.subf %71, %74 : vector<64x64xf32>
      %76 = math.exp %75 : vector<64x64xf32>
      %cst_35 = arith.constant dense<0.000000e+00> : vector<64xf32>
      %77 = vector.multi_reduction <add>, %76, %cst_35 [1] : vector<64x64xf32> to vector<64xf32>
      %78 = vector.shape_cast %77 : vector<64xf32> to vector<64x1xf32>
      %79 = arith.truncf %76 : vector<64x64xf32> to vector<64x64xbf16>
      %cst_36 = arith.constant dense<0.000000e+00> : vector<64x32xf32>
      %80 = tpu.matmul %79, %70, %cst_36 {dimension_numbers = #tpu.dot_dimension_numbers<[1], [0], [0], [1], [0, 0, 1, 1], [], []>} : vector<64x64xbf16>, vector<64x32xbf16>, vector<64x32xf32> -> vector<64x32xf32>
      %81 = tpu.reciprocal %78 {approx = true} : vector<64x1xf32> -> vector<64x1xf32>
      %82 = vector.broadcast %81 : vector<64x1xf32> to vector<64x32xf32>
      %83 = arith.mulf %80, %82 : vector<64x32xf32>
      %84 = arith.truncf %83 : vector<64x32xf32> to vector<64x32xbf16>
      %85 = vector.extract_strided_slice %35 {offsets = [32, 0], sizes = [32, 128], strides = [1, 1]} : vector<128x128xbf16> to vector<32x128xbf16>
      %cst_37 = arith.constant dense<0.000000e+00> : vector<64x128xf32>
      %86 = tpu.matmul %84, %85, %cst_37 {dimension_numbers = #tpu.dot_dimension_numbers<[1], [0], [0], [1], [0, 0, 1, 1], [], []>} : vector<64x32xbf16>, vector<32x128xbf16>, vector<64x128xf32> -> vector<64x128xf32>
      %87 = arith.addf %64, %86 : vector<64x128xf32>
      %88 = vector.extract_strided_slice %18 {offsets = [0, 64], sizes = [64, 32], strides = [1, 1]} : vector<128x256xf32> to vector<64x32xf32>
      %89 = arith.truncf %88 : vector<64x32xf32> to vector<64x32xbf16>
      %90 = vector.extract_strided_slice %40 {offsets = [0, 64], sizes = [64, 32], strides = [1, 1]} : vector<64x256xf32> to vector<64x32xf32>
      %91 = arith.truncf %90 : vector<64x32xf32> to vector<64x32xbf16>
      %92 = vector.extract_strided_slice %40 {offsets = [0, 192], sizes = [64, 32], strides = [1, 1]} : vector<64x256xf32> to vector<64x32xf32>
      %93 = arith.truncf %92 : vector<64x32xf32> to vector<64x32xbf16>
      %cst_38 = arith.constant dense<0.000000e+00> : vector<64x64xf32>
      %94 = tpu.matmul %89, %91, %cst_38 {dimension_numbers = #tpu.dot_dimension_numbers<[1], [1], [0], [0], [0, 0, 1, 0], [], []>} : vector<64x32xbf16>, vector<64x32xbf16>, vector<64x64xf32> -> vector<64x64xf32>
      %cst_39 = arith.constant dense<0xFF800000> : vector<64xf32>
      %95 = vector.multi_reduction <maximumf>, %94, %cst_39 [1] : vector<64x64xf32> to vector<64xf32>
      %96 = vector.shape_cast %95 : vector<64xf32> to vector<64x1xf32>
      %97 = vector.broadcast %96 : vector<64x1xf32> to vector<64x64xf32>
      %98 = arith.subf %94, %97 : vector<64x64xf32>
      %99 = math.exp %98 : vector<64x64xf32>
      %cst_40 = arith.constant dense<0.000000e+00> : vector<64xf32>
      %100 = vector.multi_reduction <add>, %99, %cst_40 [1] : vector<64x64xf32> to vector<64xf32>
      %101 = vector.shape_cast %100 : vector<64xf32> to vector<64x1xf32>
      %102 = arith.truncf %99 : vector<64x64xf32> to vector<64x64xbf16>
      %cst_41 = arith.constant dense<0.000000e+00> : vector<64x32xf32>
      %103 = tpu.matmul %102, %93, %cst_41 {dimension_numbers = #tpu.dot_dimension_numbers<[1], [0], [0], [1], [0, 0, 1, 1], [], []>} : vector<64x64xbf16>, vector<64x32xbf16>, vector<64x32xf32> -> vector<64x32xf32>
      %104 = tpu.reciprocal %101 {approx = true} : vector<64x1xf32> -> vector<64x1xf32>
      %105 = vector.broadcast %104 : vector<64x1xf32> to vector<64x32xf32>
      %106 = arith.mulf %103, %105 : vector<64x32xf32>
      %107 = arith.truncf %106 : vector<64x32xf32> to vector<64x32xbf16>
      %108 = vector.extract_strided_slice %35 {offsets = [64, 0], sizes = [32, 128], strides = [1, 1]} : vector<128x128xbf16> to vector<32x128xbf16>
      %cst_42 = arith.constant dense<0.000000e+00> : vector<64x128xf32>
      %109 = tpu.matmul %107, %108, %cst_42 {dimension_numbers = #tpu.dot_dimension_numbers<[1], [0], [0], [1], [0, 0, 1, 1], [], []>} : vector<64x32xbf16>, vector<32x128xbf16>, vector<64x128xf32> -> vector<64x128xf32>
      %110 = arith.addf %87, %109 : vector<64x128xf32>
      %111 = vector.extract_strided_slice %18 {offsets = [0, 96], sizes = [64, 32], strides = [1, 1]} : vector<128x256xf32> to vector<64x32xf32>
      %112 = arith.truncf %111 : vector<64x32xf32> to vector<64x32xbf16>
      %113 = vector.extract_strided_slice %40 {offsets = [0, 96], sizes = [64, 32], strides = [1, 1]} : vector<64x256xf32> to vector<64x32xf32>
      %114 = arith.truncf %113 : vector<64x32xf32> to vector<64x32xbf16>
      %115 = vector.extract_strided_slice %40 {offsets = [0, 224], sizes = [64, 32], strides = [1, 1]} : vector<64x256xf32> to vector<64x32xf32>
      %116 = arith.truncf %115 : vector<64x32xf32> to vector<64x32xbf16>
      %cst_43 = arith.constant dense<0.000000e+00> : vector<64x64xf32>
      %117 = tpu.matmul %112, %114, %cst_43 {dimension_numbers = #tpu.dot_dimension_numbers<[1], [1], [0], [0], [0, 0, 1, 0], [], []>} : vector<64x32xbf16>, vector<64x32xbf16>, vector<64x64xf32> -> vector<64x64xf32>
      %cst_44 = arith.constant dense<0xFF800000> : vector<64xf32>
      %118 = vector.multi_reduction <maximumf>, %117, %cst_44 [1] : vector<64x64xf32> to vector<64xf32>
      %119 = vector.shape_cast %118 : vector<64xf32> to vector<64x1xf32>
      %120 = vector.broadcast %119 : vector<64x1xf32> to vector<64x64xf32>
      %121 = arith.subf %117, %120 : vector<64x64xf32>
      %122 = math.exp %121 : vector<64x64xf32>
      %cst_45 = arith.constant dense<0.000000e+00> : vector<64xf32>
      %123 = vector.multi_reduction <add>, %122, %cst_45 [1] : vector<64x64xf32> to vector<64xf32>
      %124 = vector.shape_cast %123 : vector<64xf32> to vector<64x1xf32>
      %125 = arith.truncf %122 : vector<64x64xf32> to vector<64x64xbf16>
      %cst_46 = arith.constant dense<0.000000e+00> : vector<64x32xf32>
      %126 = tpu.matmul %125, %116, %cst_46 {dimension_numbers = #tpu.dot_dimension_numbers<[1], [0], [0], [1], [0, 0, 1, 1], [], []>} : vector<64x64xbf16>, vector<64x32xbf16>, vector<64x32xf32> -> vector<64x32xf32>
      %127 = tpu.reciprocal %124 {approx = true} : vector<64x1xf32> -> vector<64x1xf32>
      %128 = vector.broadcast %127 : vector<64x1xf32> to vector<64x32xf32>
      %129 = arith.mulf %126, %128 : vector<64x32xf32>
      %130 = arith.truncf %129 : vector<64x32xf32> to vector<64x32xbf16>
      %131 = vector.extract_strided_slice %35 {offsets = [96, 0], sizes = [32, 128], strides = [1, 1]} : vector<128x128xbf16> to vector<32x128xbf16>
      %cst_47 = arith.constant dense<0.000000e+00> : vector<64x128xf32>
      %132 = tpu.matmul %130, %131, %cst_47 {dimension_numbers = #tpu.dot_dimension_numbers<[1], [0], [0], [1], [0, 0, 1, 1], [], []>} : vector<64x32xbf16>, vector<32x128xbf16>, vector<64x128xf32> -> vector<64x128xf32>
      %133 = arith.addf %110, %132 : vector<64x128xf32>
      %134 = vector.extract_strided_slice %6 {offsets = [0, 0], sizes = [64, 128], strides = [1, 1]} : vector<128x128xf32> to vector<64x128xf32>
      %135 = vector.extract_strided_slice %18 {offsets = [0, 128], sizes = [64, 128], strides = [1, 1]} : vector<128x256xf32> to vector<64x128xf32>
      %136 = arith.addf %134, %135 : vector<64x128xf32>
      %137 = arith.addf %136, %133 : vector<64x128xf32>
      %c0_48 = arith.constant 0 : index
      %c0_49 = arith.constant 0 : index
      %c0_50 = arith.constant 0 : index
      %138 = vector.load %arg7[%c0_48, %c0_49, %c0_50] : memref<1x128x128xf32, #tpu.memory_space<vmem>>, vector<1x64x128xf32>
      %139 = vector.shape_cast %138 : vector<1x64x128xf32> to vector<64x128xf32>
      %140 = vector.shape_cast %137 : vector<64x128xf32> to vector<1x64x128xf32>
      tpu.vector_store %arg7[%c0_48, %c0_49, %c0_50], %140 {strides = array<i32>} : memref<1x128x128xf32, #tpu.memory_space<vmem>>, vector<1x64x128xf32>,
      %c1_i32_51 = arith.constant 1 : i32
      %141 = arith.subi %c1_i32_51, %37 : i32
      %142 = arith.index_cast %141 : i32 to index
      %c0_52 = arith.constant 0 : index
      %c0_53 = arith.constant 0 : index
      %143 = vector.load %arg8[%142, %c0_52, %c0_53] : memref<2x64x256xf32, #tpu.memory_space<vmem>>, vector<1x64x256xf32>
      %144 = vector.shape_cast %143 : vector<1x64x256xf32> to vector<64x256xf32>
      %cst_54 = arith.constant 0.000000e+00 : f32
      %145 = vector.broadcast %cst_54 : f32 to vector<64x128xf32>
      %146 = vector.extract_strided_slice %18 {offsets = [64, 0], sizes = [64, 32], strides = [1, 1]} : vector<128x256xf32> to vector<64x32xf32>
      %147 = arith.truncf %146 : vector<64x32xf32> to vector<64x32xbf16>
      %148 = vector.extract_strided_slice %144 {offsets = [0, 0], sizes = [64, 32], strides = [1, 1]} : vector<64x256xf32> to vector<64x32xf32>
      %149 = arith.truncf %148 : vector<64x32xf32> to vector<64x32xbf16>
      %150 = vector.extract_strided_slice %144 {offsets = [0, 128], sizes = [64, 32], strides = [1, 1]} : vector<64x256xf32> to vector<64x32xf32>
      %151 = arith.truncf %150 : vector<64x32xf32> to vector<64x32xbf16>
      %cst_55 = arith.constant dense<0.000000e+00> : vector<64x64xf32>
      %152 = tpu.matmul %147, %149, %cst_55 {dimension_numbers = #tpu.dot_dimension_numbers<[1], [1], [0], [0], [0, 0, 1, 0], [], []>} : vector<64x32xbf16>, vector<64x32xbf16>, vector<64x64xf32> -> vector<64x64xf32>
      %cst_56 = arith.constant dense<0xFF800000> : vector<64xf32>
      %153 = vector.multi_reduction <maximumf>, %152, %cst_56 [1] : vector<64x64xf32> to vector<64xf32>
      %154 = vector.shape_cast %153 : vector<64xf32> to vector<64x1xf32>
      %155 = vector.broadcast %154 : vector<64x1xf32> to vector<64x64xf32>
      %156 = arith.subf %152, %155 : vector<64x64xf32>
      %157 = math.exp %156 : vector<64x64xf32>
      %cst_57 = arith.constant dense<0.000000e+00> : vector<64xf32>
      %158 = vector.multi_reduction <add>, %157, %cst_57 [1] : vector<64x64xf32> to vector<64xf32>
      %159 = vector.shape_cast %158 : vector<64xf32> to vector<64x1xf32>
      %160 = arith.truncf %157 : vector<64x64xf32> to vector<64x64xbf16>
      %cst_58 = arith.constant dense<0.000000e+00> : vector<64x32xf32>
      %161 = tpu.matmul %160, %151, %cst_58 {dimension_numbers = #tpu.dot_dimension_numbers<[1], [0], [0], [1], [0, 0, 1, 1], [], []>} : vector<64x64xbf16>, vector<64x32xbf16>, vector<64x32xf32> -> vector<64x32xf32>
      %162 = tpu.reciprocal %159 {approx = true} : vector<64x1xf32> -> vector<64x1xf32>
      %163 = vector.broadcast %162 : vector<64x1xf32> to vector<64x32xf32>
      %164 = arith.mulf %161, %163 : vector<64x32xf32>
      %165 = arith.truncf %164 : vector<64x32xf32> to vector<64x32xbf16>
      %166 = vector.extract_strided_slice %35 {offsets = [0, 0], sizes = [32, 128], strides = [1, 1]} : vector<128x128xbf16> to vector<32x128xbf16>
      %cst_59 = arith.constant dense<0.000000e+00> : vector<64x128xf32>
      %167 = tpu.matmul %165, %166, %cst_59 {dimension_numbers = #tpu.dot_dimension_numbers<[1], [0], [0], [1], [0, 0, 1, 1], [], []>} : vector<64x32xbf16>, vector<32x128xbf16>, vector<64x128xf32> -> vector<64x128xf32>
      %168 = arith.addf %145, %167 : vector<64x128xf32>
      %169 = vector.extract_strided_slice %18 {offsets = [64, 32], sizes = [64, 32], strides = [1, 1]} : vector<128x256xf32> to vector<64x32xf32>
      %170 = arith.truncf %169 : vector<64x32xf32> to vector<64x32xbf16>
      %171 = vector.extract_strided_slice %144 {offsets = [0, 32], sizes = [64, 32], strides = [1, 1]} : vector<64x256xf32> to vector<64x32xf32>
      %172 = arith.truncf %171 : vector<64x32xf32> to vector<64x32xbf16>
      %173 = vector.extract_strided_slice %144 {offsets = [0, 160], sizes = [64, 32], strides = [1, 1]} : vector<64x256xf32> to vector<64x32xf32>
      %174 = arith.truncf %173 : vector<64x32xf32> to vector<64x32xbf16>
      %cst_60 = arith.constant dense<0.000000e+00> : vector<64x64xf32>
      %175 = tpu.matmul %170, %172, %cst_60 {dimension_numbers = #tpu.dot_dimension_numbers<[1], [1], [0], [0], [0, 0, 1, 0], [], []>} : vector<64x32xbf16>, vector<64x32xbf16>, vector<64x64xf32> -> vector<64x64xf32>
      %cst_61 = arith.constant dense<0xFF800000> : vector<64xf32>
      %176 = vector.multi_reduction <maximumf>, %175, %cst_61 [1] : vector<64x64xf32> to vector<64xf32>
      %177 = vector.shape_cast %176 : vector<64xf32> to vector<64x1xf32>
      %178 = vector.broadcast %177 : vector<64x1xf32> to vector<64x64xf32>
      %179 = arith.subf %175, %178 : vector<64x64xf32>
      %180 = math.exp %179 : vector<64x64xf32>
      %cst_62 = arith.constant dense<0.000000e+00> : vector<64xf32>
      %181 = vector.multi_reduction <add>, %180, %cst_62 [1] : vector<64x64xf32> to vector<64xf32>
      %182 = vector.shape_cast %181 : vector<64xf32> to vector<64x1xf32>
      %183 = arith.truncf %180 : vector<64x64xf32> to vector<64x64xbf16>
      %cst_63 = arith.constant dense<0.000000e+00> : vector<64x32xf32>
      %184 = tpu.matmul %183, %174, %cst_63 {dimension_numbers = #tpu.dot_dimension_numbers<[1], [0], [0], [1], [0, 0, 1, 1], [], []>} : vector<64x64xbf16>, vector<64x32xbf16>, vector<64x32xf32> -> vector<64x32xf32>
      %185 = tpu.reciprocal %182 {approx = true} : vector<64x1xf32> -> vector<64x1xf32>
      %186 = vector.broadcast %185 : vector<64x1xf32> to vector<64x32xf32>
      %187 = arith.mulf %184, %186 : vector<64x32xf32>
      %188 = arith.truncf %187 : vector<64x32xf32> to vector<64x32xbf16>
      %189 = vector.extract_strided_slice %35 {offsets = [32, 0], sizes = [32, 128], strides = [1, 1]} : vector<128x128xbf16> to vector<32x128xbf16>
      %cst_64 = arith.constant dense<0.000000e+00> : vector<64x128xf32>
      %190 = tpu.matmul %188, %189, %cst_64 {dimension_numbers = #tpu.dot_dimension_numbers<[1], [0], [0], [1], [0, 0, 1, 1], [], []>} : vector<64x32xbf16>, vector<32x128xbf16>, vector<64x128xf32> -> vector<64x128xf32>
      %191 = arith.addf %168, %190 : vector<64x128xf32>
      %192 = vector.extract_strided_slice %18 {offsets = [64, 64], sizes = [64, 32], strides = [1, 1]} : vector<128x256xf32> to vector<64x32xf32>
      %193 = arith.truncf %192 : vector<64x32xf32> to vector<64x32xbf16>
      %194 = vector.extract_strided_slice %144 {offsets = [0, 64], sizes = [64, 32], strides = [1, 1]} : vector<64x256xf32> to vector<64x32xf32>
      %195 = arith.truncf %194 : vector<64x32xf32> to vector<64x32xbf16>
      %196 = vector.extract_strided_slice %144 {offsets = [0, 192], sizes = [64, 32], strides = [1, 1]} : vector<64x256xf32> to vector<64x32xf32>
      %197 = arith.truncf %196 : vector<64x32xf32> to vector<64x32xbf16>
      %cst_65 = arith.constant dense<0.000000e+00> : vector<64x64xf32>
      %198 = tpu.matmul %193, %195, %cst_65 {dimension_numbers = #tpu.dot_dimension_numbers<[1], [1], [0], [0], [0, 0, 1, 0], [], []>} : vector<64x32xbf16>, vector<64x32xbf16>, vector<64x64xf32> -> vector<64x64xf32>
      %cst_66 = arith.constant dense<0xFF800000> : vector<64xf32>
      %199 = vector.multi_reduction <maximumf>, %198, %cst_66 [1] : vector<64x64xf32> to vector<64xf32>
      %200 = vector.shape_cast %199 : vector<64xf32> to vector<64x1xf32>
      %201 = vector.broadcast %200 : vector<64x1xf32> to vector<64x64xf32>
      %202 = arith.subf %198, %201 : vector<64x64xf32>
      %203 = math.exp %202 : vector<64x64xf32>
      %cst_67 = arith.constant dense<0.000000e+00> : vector<64xf32>
      %204 = vector.multi_reduction <add>, %203, %cst_67 [1] : vector<64x64xf32> to vector<64xf32>
      %205 = vector.shape_cast %204 : vector<64xf32> to vector<64x1xf32>
      %206 = arith.truncf %203 : vector<64x64xf32> to vector<64x64xbf16>
      %cst_68 = arith.constant dense<0.000000e+00> : vector<64x32xf32>
      %207 = tpu.matmul %206, %197, %cst_68 {dimension_numbers = #tpu.dot_dimension_numbers<[1], [0], [0], [1], [0, 0, 1, 1], [], []>} : vector<64x64xbf16>, vector<64x32xbf16>, vector<64x32xf32> -> vector<64x32xf32>
      %208 = tpu.reciprocal %205 {approx = true} : vector<64x1xf32> -> vector<64x1xf32>
      %209 = vector.broadcast %208 : vector<64x1xf32> to vector<64x32xf32>
      %210 = arith.mulf %207, %209 : vector<64x32xf32>
      %211 = arith.truncf %210 : vector<64x32xf32> to vector<64x32xbf16>
      %212 = vector.extract_strided_slice %35 {offsets = [64, 0], sizes = [32, 128], strides = [1, 1]} : vector<128x128xbf16> to vector<32x128xbf16>
      %cst_69 = arith.constant dense<0.000000e+00> : vector<64x128xf32>
      %213 = tpu.matmul %211, %212, %cst_69 {dimension_numbers = #tpu.dot_dimension_numbers<[1], [0], [0], [1], [0, 0, 1, 1], [], []>} : vector<64x32xbf16>, vector<32x128xbf16>, vector<64x128xf32> -> vector<64x128xf32>
      %214 = arith.addf %191, %213 : vector<64x128xf32>
      %215 = vector.extract_strided_slice %18 {offsets = [64, 96], sizes = [64, 32], strides = [1, 1]} : vector<128x256xf32> to vector<64x32xf32>
      %216 = arith.truncf %215 : vector<64x32xf32> to vector<64x32xbf16>
      %217 = vector.extract_strided_slice %144 {offsets = [0, 96], sizes = [64, 32], strides = [1, 1]} : vector<64x256xf32> to vector<64x32xf32>
      %218 = arith.truncf %217 : vector<64x32xf32> to vector<64x32xbf16>
      %219 = vector.extract_strided_slice %144 {offsets = [0, 224], sizes = [64, 32], strides = [1, 1]} : vector<64x256xf32> to vector<64x32xf32>
      %220 = arith.truncf %219 : vector<64x32xf32> to vector<64x32xbf16>
      %cst_70 = arith.constant dense<0.000000e+00> : vector<64x64xf32>
      %221 = tpu.matmul %216, %218, %cst_70 {dimension_numbers = #tpu.dot_dimension_numbers<[1], [1], [0], [0], [0, 0, 1, 0], [], []>} : vector<64x32xbf16>, vector<64x32xbf16>, vector<64x64xf32> -> vector<64x64xf32>
      %cst_71 = arith.constant dense<0xFF800000> : vector<64xf32>
      %222 = vector.multi_reduction <maximumf>, %221, %cst_71 [1] : vector<64x64xf32> to vector<64xf32>
      %223 = vector.shape_cast %222 : vector<64xf32> to vector<64x1xf32>
      %224 = vector.broadcast %223 : vector<64x1xf32> to vector<64x64xf32>
      %225 = arith.subf %221, %224 : vector<64x64xf32>
      %226 = math.exp %225 : vector<64x64xf32>
      %cst_72 = arith.constant dense<0.000000e+00> : vector<64xf32>
      %227 = vector.multi_reduction <add>, %226, %cst_72 [1] : vector<64x64xf32> to vector<64xf32>
      %228 = vector.shape_cast %227 : vector<64xf32> to vector<64x1xf32>
      %229 = arith.truncf %226 : vector<64x64xf32> to vector<64x64xbf16>
      %cst_73 = arith.constant dense<0.000000e+00> : vector<64x32xf32>
      %230 = tpu.matmul %229, %220, %cst_73 {dimension_numbers = #tpu.dot_dimension_numbers<[1], [0], [0], [1], [0, 0, 1, 1], [], []>} : vector<64x64xbf16>, vector<64x32xbf16>, vector<64x32xf32> -> vector<64x32xf32>
      %231 = tpu.reciprocal %228 {approx = true} : vector<64x1xf32> -> vector<64x1xf32>
      %232 = vector.broadcast %231 : vector<64x1xf32> to vector<64x32xf32>
      %233 = arith.mulf %230, %232 : vector<64x32xf32>
      %234 = arith.truncf %233 : vector<64x32xf32> to vector<64x32xbf16>
      %235 = vector.extract_strided_slice %35 {offsets = [96, 0], sizes = [32, 128], strides = [1, 1]} : vector<128x128xbf16> to vector<32x128xbf16>
      %cst_74 = arith.constant dense<0.000000e+00> : vector<64x128xf32>
      %236 = tpu.matmul %234, %235, %cst_74 {dimension_numbers = #tpu.dot_dimension_numbers<[1], [0], [0], [1], [0, 0, 1, 1], [], []>} : vector<64x32xbf16>, vector<32x128xbf16>, vector<64x128xf32> -> vector<64x128xf32>
      %237 = arith.addf %214, %236 : vector<64x128xf32>
      %238 = vector.extract_strided_slice %6 {offsets = [64, 0], sizes = [64, 128], strides = [1, 1]} : vector<128x128xf32> to vector<64x128xf32>
      %239 = vector.extract_strided_slice %18 {offsets = [64, 128], sizes = [64, 128], strides = [1, 1]} : vector<128x256xf32> to vector<64x128xf32>
      %240 = arith.addf %238, %239 : vector<64x128xf32>
      %241 = arith.addf %240, %237 : vector<64x128xf32>
      %c0_75 = arith.constant 0 : index
      %c64 = arith.constant 64 : index
      %c0_76 = arith.constant 0 : index
      %242 = vector.load %arg7[%c0_75, %c64, %c0_76] : memref<1x128x128xf32, #tpu.memory_space<vmem>>, vector<1x64x128xf32>
      %243 = vector.shape_cast %242 : vector<1x64x128xf32> to vector<64x128xf32>
      %244 = vector.shape_cast %241 : vector<64x128xf32> to vector<1x64x128xf32>
      tpu.vector_store %arg7[%c0_75, %c64, %c0_76], %244 {strides = array<i32>} : memref<1x128x128xf32, #tpu.memory_space<vmem>>, vector<1x64x128xf32>,
    }
    %c2_i32_5 = arith.constant 2 : i32
    return
  }
  func.func @transform_0(%arg0: i32, %arg1: memref<2xi32, #tpu.memory_space<smem>>) -> (i32, i32, i32) {
    %c0_i32 = arith.constant 0 : i32
    %c0_i32_0 = arith.constant 0 : i32
    %c0_i32_1 = arith.constant 0 : i32
    return %arg0, %c0_i32, %c0_i32_0 : i32, i32, i32
  }
  func.func @transform_1(%arg0: i32, %arg1: memref<2xi32, #tpu.memory_space<smem>>) -> (i32, i32, i32) {
    %c0_i32 = arith.constant 0 : i32
    %c0_i32_0 = arith.constant 0 : i32
    %c0_i32_1 = arith.constant 0 : i32
    %c0_i32_2 = arith.constant 0 : i32
    return %c0_i32, %c0_i32_0, %c0_i32_1 : i32, i32, i32
  }
  func.func @transform_2(%arg0: i32, %arg1: memref<2xi32, #tpu.memory_space<smem>>) -> (i32, i32, i32) {
    %c0_i32 = arith.constant 0 : i32
    %c0_i32_0 = arith.constant 0 : i32
    %c0_i32_1 = arith.constant 0 : i32
    %c0_i32_2 = arith.constant 0 : i32
    return %c0_i32, %c0_i32_0, %c0_i32_1 : i32, i32, i32
  }
  func.func @transform_3(%arg0: i32, %arg1: memref<2xi32, #tpu.memory_space<smem>>) -> (i32, i32, i32) {
    %c0_i32 = arith.constant 0 : i32
    %c0_i32_0 = arith.constant 0 : i32
    %c0_i32_1 = arith.constant 0 : i32
    %c0_i32_2 = arith.constant 0 : i32
    return %c0_i32, %c0_i32_0, %c0_i32_1 : i32, i32, i32
  }
  func.func @transform_4(%arg0: i32, %arg1: memref<2xi32, #tpu.memory_space<smem>>) -> (i32, i32, i32) {
    %c0_i32 = arith.constant 0 : i32
    %c0_i32_0 = arith.constant 0 : i32
    %c0_i32_1 = arith.constant 0 : i32
    %c0_i32_2 = arith.constant 0 : i32
    return %c0_i32, %c0_i32_0, %c0_i32_1 : i32, i32, i32
  }
  func.func @transform_5(%arg0: i32, %arg1: memref<2xi32, #tpu.memory_space<smem>>) -> (i32, i32, i32) {
    %c0_i32 = arith.constant 0 : i32
    %c0_i32_0 = arith.constant 0 : i32
    %c0_i32_1 = arith.constant 0 : i32
    return %arg0, %c0_i32, %c0_i32_0 : i32, i32, i32
  }
}

</mosaic_0001>

<llo_original>
// kernel: tpu_custom_call.1
$region0: #{tpu_custom_call.1}
  #allocation0 [shape = 'u32[]', space=smem, size = 0x4, offset = 0x4, fixed_abs, tag = 'smem constant byte address 0x4 - core index']
  #allocation1 [shape = 'u32[72,128]{1,0:T(1,128)}', space=vmem, size = 0x9000, scoped, tag = 'internal scratch']
  #allocation2 [shape = 'f32[2,64,256]{2,1,0:T(8,128)}', space=vmem, size = 0x20000, scoped, tag = 'scratch operand']
  #allocation3 [shape = 's32[1]{0}', space=sflag, size = 0x4, scoped, tag = 'scoped memory for tpu_custom_call.1']
  #allocation4 [shape = 'u8[512]{0}', space=smem, size = 0x200, scoped, tag = 'prefetched SMEM operand 0']
  %s0 = inlined_call_operand.hbm [shape: s32[2], index: 0, kind: input, shape index: {}]
  %s1 = inlined_call_operand.hbm [shape: f32[2,128,128], index: 1, kind: input, shape index: {}]
  %s2 = inlined_call_operand.hbm [shape: bf16[2,128,256], index: 2, kind: input, shape index: {}]
  %s3 = inlined_call_operand.hbm [shape: bf16[2,128,256], index: 3, kind: input, shape index: {}]
  %s4 = inlined_call_operand.hbm [shape: bf16[2,128,128], index: 4, kind: input, shape index: {}]
  %s5 = inlined_call_operand.hbm [shape: f32[2,8,256], index: 5, kind: input, shape index: {}]
  %s6 = inlined_call_operand.hbm [shape: f32[2,128,128], index: 6, kind: output, shape index: {}]
  %s7 = sld [smem:[#allocation0]]
  $region80: #{tpu_custom_call.1} parent=0
    _
  %s9 = ssub.s32 1, %s7
  %s10 = scalar_select 0, %s9, %s7
  %s12 = sshll.u32 %s0, 4
  %s13 = int_to_ptr.hbm [resolvable:$true] %s12
  %15 = dma.hbm_to_smem %s13, 16, [#allocation4], [#allocation3]
  %17 = dma.done [#allocation3], 16
  %18 = sfence
  $region1: #{tpu_custom_call.1} parent=0
    #allocation5 [shape = 'u8[131072]{0}', space=vmem, size = 0x20000, scoped, tag = 'input window, operand 1']
    #allocation6 [shape = 's32[2]{0}', space=sflag, size = 0x8, scoped, tag = 'scoped memory for tpu_custom_call.1']
    #allocation7 [shape = 's32[2]{0}', space=sflag, size = 0x8, scoped, tag = 'scoped memory for tpu_custom_call.1']
    #allocation8 [shape = 'u8[131072]{0}', space=vmem, size = 0x20000, scoped, tag = 'input window, operand 2, single buffered']
    #allocation9 [shape = 's32[1]{0}', space=sflag, size = 0x4, scoped, tag = 'scoped memory for tpu_custom_call.1']
    #allocation10 [shape = 'u8[131072]{0}', space=vmem, size = 0x20000, scoped, tag = 'input window, operand 3, single buffered']
    #allocation11 [shape = 'u8[65536]{0}', space=vmem, size = 0x10000, scoped, tag = 'input window, operand 4, single buffered']
    #allocation12 [shape = 's32[1]{0}', space=sflag, size = 0x4, scoped, tag = 'scoped memory for tpu_custom_call.1']
    #allocation13 [shape = 'u8[16384]{0}', space=vmem, size = 0x4000, scoped, tag = 'input window, operand 5, single buffered']
    #allocation14 [shape = 'u8[131072]{0}', space=vmem, size = 0x20000, scoped, tag = 'output window, operand 0']
    %19 = vsyncpa [#allocation6], 0
    %s20 = scalar_lea.sflag [#allocation6], 1
    %21 = vsyncpa %s20, 0
    %22 = vsyncpa [#allocation9], 0
    %23 = vsyncpa [#allocation12], 0
    %24 = vsyncpa [#allocation7], 0
    %s25 = scalar_lea.sflag [#allocation7], 1
    %26 = vsyncpa %s25, 0
    loop: start=0, step=1, limit=4
    $region2: #{tpu_custom_call.1} parent=1 // loop_pre_header
      _
    $region3: #{tpu_custom_call.1} parent=1 // loop_header
      %s28 = sphi 0, %s32
      %p29 = scmp.ge.s32.totalorder %s28, 4
      %s38 = sphi 0, %s40
      %s41 = sphi 0, %s38
      %s42 = sphi 0, %s41
      %s58 = sphi 0, %s42
      %s62 = sphi 0, %s62
      %s64 = sphi 0, %s62
      %s65 = sphi 0, %s64
      %s79 = sphi 0, %s65
      %s83 = sphi 0, %s83
      %s85 = sphi 0, %s83
      %s86 = sphi 0, %s85
      %s100 = sphi 0, %s86
      %s104 = sphi 0, %s104
      %s106 = sphi 0, %s104
      %s107 = sphi 0, %s106
      %s121 = sphi 0, %s107
      %s125 = sphi 0, %s125
      %s127 = sphi 0, %s125
      %s128 = sphi 0, %s127
      %s142 = sphi 0, %s128
      %s148 = sphi 0, %s150
      %s151 = sphi 0, %s148
      %s152 = sphi 0, %s151
      %s168 = sphi 0, %s152
    $region4: #{tpu_custom_call.1} parent=1 // loop_header_branch
      %31 = sbr.rel (%p29) target = $region8
    $region5: #{tpu_custom_call.1} parent=1 // loop_body
      %s33 = ssub.s32 %s28, 1
      %s34 = ssub.s32 %s28, 2
      %s35 = sadd.s32 %s28, 1
      %s36 = ssub.s32 %s28, %s35
      %p37 = scmp.eq.s32.totalorder %s36, 0
      %s39 = sadd.s32 %s38, 1
      %s40 = scalar_select %p37, %s38, %s39
      %p43 = pneg %p37
      %p44 = scmp.eq.s32.totalorder %s28, 1
      %p45 = por %p43, %p44
      %p46 = scmp.ne.s32.totalorder %s38, %s41
      %p47 = scmp.eq.s32.totalorder %s28, 0
      %p48 = por %p46, %p47
      %p49 = scmp.ne.s32.totalorder %s38, %s41
      %p50 = scmp.eq.s32.totalorder %s33, 1
      %p51 = por %p49, %p50
      %p52 = scmp.ne.s32.totalorder %s41, %s42
      %p53 = scmp.eq.s32.totalorder %s33, 0
      %p54 = por %p52, %p53
      %p55 = scmp.ne.s32.totalorder %s41, %s42
      %p56 = scmp.eq.s32.totalorder %s34, 1
      %p57 = por %p55, %p56
      %p59 = scmp.ne.s32.totalorder %s42, %s58
      %p60 = scmp.eq.s32.totalorder %s34, 0
      %p61 = por %p59, %p60
      %s63 = sadd.s32 %s62, 1
      %p66 = scmp.eq.s32.totalorder %s28, 1
      %p67 = scmp.ne.s32.totalorder %s62, %s64
      %p68 = scmp.eq.s32.totalorder %s28, 0
      %p69 = por %p67, %p68
      %p70 = scmp.ne.s32.totalorder %s62, %s64
      %p71 = scmp.eq.s32.totalorder %s33, 1
      %p72 = por %p70, %p71
      %p73 = scmp.ne.s32.totalorder %s64, %s65
      %p74 = scmp.eq.s32.totalorder %s33, 0
      %p75 = por %p73, %p74
      %p76 = scmp.ne.s32.totalorder %s64, %s65
      %p77 = scmp.eq.s32.totalorder %s34, 1
      %p78 = por %p76, %p77
      %p80 = scmp.ne.s32.totalorder %s65, %s79
      %p81 = scmp.eq.s32.totalorder %s34, 0
      %p82 = por %p80, %p81
      %s84 = sadd.s32 %s83, 1
      %p87 = scmp.eq.s32.totalorder %s28, 1
      %p88 = scmp.ne.s32.totalorder %s83, %s85
      %p89 = scmp.eq.s32.totalorder %s28, 0
      %p90 = por %p88, %p89
      %p91 = scmp.ne.s32.totalorder %s83, %s85
      %p92 = scmp.eq.s32.totalorder %s33, 1
      %p93 = por %p91, %p92
      %p94 = scmp.ne.s32.totalorder %s85, %s86
      %p95 = scmp.eq.s32.totalorder %s33, 0
      %p96 = por %p94, %p95
      %p97 = scmp.ne.s32.totalorder %s85, %s86
      %p98 = scmp.eq.s32.totalorder %s34, 1
      %p99 = por %p97, %p98
      %p101 = scmp.ne.s32.totalorder %s86, %s100
      %p102 = scmp.eq.s32.totalorder %s34, 0
      %p103 = por %p101, %p102
      %s105 = sadd.s32 %s104, 1
      %p108 = scmp.eq.s32.totalorder %s28, 1
      %p109 = scmp.ne.s32.totalorder %s104, %s106
      %p110 = scmp.eq.s32.totalorder %s28, 0
      %p111 = por %p109, %p110
      %p112 = scmp.ne.s32.totalorder %s104, %s106
      %p113 = scmp.eq.s32.totalorder %s33, 1
      %p114 = por %p112, %p113
      %p115 = scmp.ne.s32.totalorder %s106, %s107
      %p116 = scmp.eq.s32.totalorder %s33, 0
      %p117 = por %p115, %p116
      %p118 = scmp.ne.s32.totalorder %s106, %s107
      %p119 = scmp.eq.s32.totalorder %s34, 1
      %p120 = por %p118, %p119
      %p122 = scmp.ne.s32.totalorder %s107, %s121
      %p123 = scmp.eq.s32.totalorder %s34, 0
      %p124 = por %p122, %p123
      %s126 = sadd.s32 %s125, 1
      %p129 = scmp.eq.s32.totalorder %s28, 1
      %p130 = scmp.ne.s32.totalorder %s125, %s127
      %p131 = scmp.eq.s32.totalorder %s28, 0
      %p132 = por %p130, %p131
      %p133 = scmp.ne.s32.totalorder %s125, %s127
      %p134 = scmp.eq.s32.totalorder %s33, 1
      %p135 = por %p133, %p134
      %p136 = scmp.ne.s32.totalorder %s127, %s128
      %p137 = scmp.eq.s32.totalorder %s33, 0
      %p138 = por %p136, %p137
      %p139 = scmp.ne.s32.totalorder %s127, %s128
      %p140 = scmp.eq.s32.totalorder %s34, 1
      %p141 = por %p139, %p140
      %p143 = scmp.ne.s32.totalorder %s128, %s142
      %p144 = scmp.eq.s32.totalorder %s34, 0
      %p145 = por %p143, %p144
      %s146 = ssub.s32 %s28, %s35
      %p147 = scmp.eq.s32.totalorder %s146, 0
      %s149 = sadd.s32 %s148, 1
      %s150 = scalar_select %p147, %s148, %s149
      %p153 = pneg %p147
      %p154 = scmp.eq.s32.totalorder %s28, 1
      %p155 = por %p153, %p154
      %p156 = scmp.ne.s32.totalorder %s148, %s151
      %p157 = scmp.eq.s32.totalorder %s28, 0
      %p158 = por %p156, %p157
      %p159 = scmp.ne.s32.totalorder %s148, %s151
      %p160 = scmp.eq.s32.totalorder %s33, 1
      %p161 = por %p159, %p160
      %p162 = scmp.ne.s32.totalorder %s151, %s152
      %p163 = scmp.eq.s32.totalorder %s33, 0
      %p164 = por %p162, %p163
      %p165 = scmp.ne.s32.totalorder %s151, %s152
      %p166 = scmp.eq.s32.totalorder %s34, 1
      %p167 = por %p165, %p166
      %p169 = scmp.ne.s32.totalorder %s152, %s168
      %p170 = scmp.eq.s32.totalorder %s34, 0
      %p171 = por %p169, %p170
      %p172 = scmp.le.s32.totalorder 1, %s28
      %p173 = scmp.lt.s32.totalorder %s28, 3
      %p174 = pnand %p172, %p173
      %p175 = pneg %p174
      // Predicated region
      $region9: #{tpu_custom_call.1} parent=5 // pred_check
        _
      $region10: #{tpu_custom_call.1} parent=5 // pred_check_branch
        %177 = sbr.rel (%p174) target = $region12
      $region11: #{tpu_custom_call.1} parent=5 // pred_region
        %s178 = ssub.s32 %s28, 1
        // Predicated region
        $region13: #{tpu_custom_call.1} parent=11 // pred_check
          %p179 = pneg %p75
        $region14: #{tpu_custom_call.1} parent=11 // pred_check_branch
          %181 = sbr.rel (%p179) target = $region16
        $region15: #{tpu_custom_call.1} parent=11 // pred_region
          %183 = vsyncadd [#allocation9], 0
          %s184 = sshll.u32 %s2, 4
          %s185 = int_to_ptr.hbm [resolvable:$true] %s184
          %s186 = sshll.u32 [#allocation8], 4
          %s187 = int_to_ptr.vmem [resolvable:$true] %s186
          %192 = dma.hbm_to_vmem [thread:$0]  %s185, 4096, %s187, [#allocation9], 128, 128, 8
        $region16: #{tpu_custom_call.1} parent=11 // pred_fallthru
          _
        // Predicated region
        $region17: #{tpu_custom_call.1} parent=11 // pred_check
          %p193 = pneg %p96
        $region18: #{tpu_custom_call.1} parent=11 // pred_check_branch
          %195 = sbr.rel (%p193) target = $region20
        $region19: #{tpu_custom_call.1} parent=11 // pred_region
          %197 = vsyncadd [#allocation9], 0
          %s198 = sshll.u32 %s3, 4
          %s199 = int_to_ptr.hbm [resolvable:$true] %s198
          %s200 = sshll.u32 [#allocation10], 4
          %s201 = int_to_ptr.vmem [resolvable:$true] %s200
          %206 = dma.hbm_to_vmem [thread:$0]  %s199, 4096, %s201, [#allocation9], 128, 128, 8
        $region20: #{tpu_custom_call.1} parent=11 // pred_fallthru
          _
        // Predicated region
        $region21: #{tpu_custom_call.1} parent=11 // pred_check
          %p207 = pneg %p117
        $region22: #{tpu_custom_call.1} parent=11 // pred_check_branch
          %209 = sbr.rel (%p207) target = $region24
        $region23: #{tpu_custom_call.1} parent=11 // pred_region
          %211 = vsyncadd [#allocation12], 0
          %s212 = sshll.u32 %s4, 4
          %s213 = int_to_ptr.hbm [resolvable:$true] %s212
          %s214 = sshll.u32 [#allocation11], 4
          %s215 = int_to_ptr.vmem [resolvable:$true] %s214
          %220 = dma.hbm_to_vmem [thread:$0]  %s213, 2048, %s215, [#allocation12], 64, 64, 4
        $region24: #{tpu_custom_call.1} parent=11 // pred_fallthru
          _
        // Predicated region
        $region25: #{tpu_custom_call.1} parent=11 // pred_check
          %p221 = pneg %p138
        $region26: #{tpu_custom_call.1} parent=11 // pred_check_branch
          %223 = sbr.rel (%p221) target = $region28
        $region27: #{tpu_custom_call.1} parent=11 // pred_region
          %225 = vsyncadd [#allocation12], 0
          %s226 = sshll.u32 %s5, 4
          %s227 = int_to_ptr.hbm [resolvable:$true] %s226
          %s228 = sshll.u32 [#allocation13], 4
          %s229 = int_to_ptr.vmem [resolvable:$true] %s228
          %234 = dma.hbm_to_vmem [thread:$0]  %s227, 512, %s229, [#allocation12], 256, 256, 16
        $region28: #{tpu_custom_call.1} parent=11 // pred_fallthru
          _
      $region12: #{tpu_custom_call.1} parent=5 // pred_fallthru
        _
      %p235 = scmp.lt.s32.totalorder %s28, 2
      // Predicated region
      $region29: #{tpu_custom_call.1} parent=5 // pred_check
        %p236 = pneg %p235
      $region30: #{tpu_custom_call.1} parent=5 // pred_check_branch
        %238 = sbr.rel (%p236) target = $region32
      $region31: #{tpu_custom_call.1} parent=5 // pred_region
        // Predicated region
        $region33: #{tpu_custom_call.1} parent=31 // pred_check
          %p239 = pneg %p48
        $region34: #{tpu_custom_call.1} parent=31 // pred_check_branch
          %241 = sbr.rel (%p239) target = $region36
        $region35: #{tpu_custom_call.1} parent=31 // pred_region
          %s242 = sand.u32 %s38, 1
          %s243 = scalar_lea.sflag [#allocation6], %s242
          %s244 = sand.u32 %s38, 1
          %s245 = smul.addr %s244, 128
          %s246 = scalar_lea.vmem [#allocation5], %s245
          %248 = vsyncadd %s243, 0
          %s249 = smul.addr %s28, 16
          %s250 = smul.addr %s249, 8
          %s251 = scalar_lea.hbm %s1, %s250
          %s252 = sshll.u32 %s251, 4
          %s253 = int_to_ptr.hbm [resolvable:$true] %s252
          %s254 = sshll.u32 %s246, 4
          %s255 = int_to_ptr.vmem [resolvable:$true] %s254
          %260 = dma.hbm_to_vmem [thread:$0]  %s253, 2048, %s255, %s243, 128, 128, 8
        $region36: #{tpu_custom_call.1} parent=31 // pred_fallthru
          _
      $region32: #{tpu_custom_call.1} parent=5 // pred_fallthru
        _
      %p261 = scmp.le.s32.totalorder 1, %s28
      %p262 = scmp.lt.s32.totalorder %s28, 3
      %p263 = pnand %p261, %p262
      %p264 = pneg %p263
      // Predicated region
      $region37: #{tpu_custom_call.1} parent=5 // pred_check
        _
      $region38: #{tpu_custom_call.1} parent=5 // pred_check_branch
        %266 = sbr.rel (%p263) target = $region40
      $region39: #{tpu_custom_call.1} parent=5 // pred_region
        %s267 = ssub.s32 %s28, 1
        %s268 = sand.u32 %s41, 1
        %s269 = scalar_lea.sflag [#allocation6], %s268
        %s270 = sand.u32 %s41, 1
        %s271 = smul.addr %s270, 128
        %s272 = scalar_lea.vmem [#allocation5], %s271
        // Predicated region
        $region41: #{tpu_custom_call.1} parent=39 // pred_check
          %p273 = pneg %p54
        $region42: #{tpu_custom_call.1} parent=39 // pred_check_branch
          %275 = sbr.rel (%p273) target = $region44
        $region43: #{tpu_custom_call.1} parent=39 // pred_region
          %277 = dma.done %s269, 2048
        $region44: #{tpu_custom_call.1} parent=39 // pred_fallthru
          _
        // Predicated region
        $region45: #{tpu_custom_call.1} parent=39 // pred_check
          %p278 = pneg %p75
        $region46: #{tpu_custom_call.1} parent=39 // pred_check_branch
          %280 = sbr.rel (%p278) target = $region48
        $region47: #{tpu_custom_call.1} parent=39 // pred_region
          %282 = dma.done [#allocation9], 4096
        $region48: #{tpu_custom_call.1} parent=39 // pred_fallthru
          _
        // Predicated region
        $region49: #{tpu_custom_call.1} parent=39 // pred_check
          %p283 = pneg %p96
        $region50: #{tpu_custom_call.1} parent=39 // pred_check_branch
          %285 = sbr.rel (%p283) target = $region52
        $region51: #{tpu_custom_call.1} parent=39 // pred_region
          %287 = dma.done [#allocation9], 4096
        $region52: #{tpu_custom_call.1} parent=39 // pred_fallthru
          _
        // Predicated region
        $region53: #{tpu_custom_call.1} parent=39 // pred_check
          %p288 = pneg %p117
        $region54: #{tpu_custom_call.1} parent=39 // pred_check_branch
          %290 = sbr.rel (%p288) target = $region56
        $region55: #{tpu_custom_call.1} parent=39 // pred_region
          %292 = dma.done [#allocation12], 2048
        $region56: #{tpu_custom_call.1} parent=39 // pred_fallthru
          _
        // Predicated region
        $region57: #{tpu_custom_call.1} parent=39 // pred_check
          %p293 = pneg %p138
        $region58: #{tpu_custom_call.1} parent=39 // pred_check_branch
          %295 = sbr.rel (%p293) target = $region60
        $region59: #{tpu_custom_call.1} parent=39 // pred_region
          %297 = dma.done [#allocation12], 512
        $region60: #{tpu_custom_call.1} parent=39 // pred_fallthru
          _
        %s298 = sand.u32 %s41, 1
        %s299 = scalar_lea.sflag [#allocation6], %s298
        %s300 = sand.u32 %s41, 1
        %s301 = smul.addr %s300, 128
        %s302 = scalar_lea.vmem [#allocation5], %s301
        %p303 = pneg %p54
        %p304 = pneg %p51
        %p305 = pneg %p75
        %p306 = pneg %p72
        %p307 = pneg %p96
        %p308 = pneg %p93
        %p309 = pneg %p117
        %p310 = pneg %p114
        %p311 = pneg %p138
        %p312 = pneg %p135
        %p313 = pneg %p164
        %p314 = pneg %p161
        %s315 = sand.u32 %s151, 1
        %s316 = scalar_lea.sflag [#allocation7], %s315
        %s317 = sand.u32 %s151, 1
        %s318 = smul.addr %s317, 128
        %s319 = scalar_lea.vmem [#allocation14], %s318
        %v321 = vld [vmem:[%s272] sm:$0xff]
        %v322 = vld [vmem:[%s272 + $0x8] sm:$0xff]
        %v323 = vld [vmem:[%s272 + $0x10] sm:$0xff]
        %v324 = vld [vmem:[%s272 + $0x18] sm:$0xff]
        %v325 = vld [vmem:[%s272 + $0x20] sm:$0xff]
        %v326 = vld [vmem:[%s272 + $0x28] sm:$0xff]
        %v327 = vld [vmem:[%s272 + $0x30] sm:$0xff]
        %v328 = vld [vmem:[%s272 + $0x38] sm:$0xff]
        %v329 = vld [vmem:[%s272 + $0x40] sm:$0xff]
        %v330 = vld [vmem:[%s272 + $0x48] sm:$0xff]
        %v331 = vld [vmem:[%s272 + $0x50] sm:$0xff]
        %v332 = vld [vmem:[%s272 + $0x58] sm:$0xff]
        %v333 = vld [vmem:[%s272 + $0x60] sm:$0xff]
        %v334 = vld [vmem:[%s272 + $0x68] sm:$0xff]
        %v335 = vld [vmem:[%s272 + $0x70] sm:$0xff]
        %v336 = vld [vmem:[%s272 + $0x78] sm:$0xff]
        %337 = vst [vmem:[%s319] sm:$0xff] %v321
        %338 = vst [vmem:[%s319 + $0x8] sm:$0xff] %v322
        %339 = vst [vmem:[%s319 + $0x10] sm:$0xff] %v323
        %340 = vst [vmem:[%s319 + $0x18] sm:$0xff] %v324
        %341 = vst [vmem:[%s319 + $0x20] sm:$0xff] %v325
        %342 = vst [vmem:[%s319 + $0x28] sm:$0xff] %v326
        %343 = vst [vmem:[%s319 + $0x30] sm:$0xff] %v327
        %344 = vst [vmem:[%s319 + $0x38] sm:$0xff] %v328
        %345 = vst [vmem:[%s319 + $0x40] sm:$0xff] %v329
        %346 = vst [vmem:[%s319 + $0x48] sm:$0xff] %v330
        %347 = vst [vmem:[%s319 + $0x50] sm:$0xff] %v331
        %348 = vst [vmem:[%s319 + $0x58] sm:$0xff] %v332
        %349 = vst [vmem:[%s319 + $0x60] sm:$0xff] %v333
        %350 = vst [vmem:[%s319 + $0x68] sm:$0xff] %v334
        %351 = vst [vmem:[%s319 + $0x70] sm:$0xff] %v335
        %352 = vst [vmem:[%s319 + $0x78] sm:$0xff] %v336
        loop: start=0, step=1, limit=2
        $region61: #{tpu_custom_call.1} parent=39 // loop_pre_header
          _
        $region62: #{tpu_custom_call.1} parent=39 // loop_header
          %s354 = sphi 0, %s358
          %p355 = scmp.ge.s32.totalorder %s354, 2
        $region63: #{tpu_custom_call.1} parent=39 // loop_header_branch
          %357 = sbr.rel (%p355) target = $region67
        $region64: #{tpu_custom_call.1} parent=39 // loop_body
          %v359 = vld [vmem:[%s319] sm:$0xff]
          %v360 = vld [vmem:[%s319 + $0x8] sm:$0xff]
          %v361 = vld [vmem:[%s319 + $0x10] sm:$0xff]
          %v362 = vld [vmem:[%s319 + $0x18] sm:$0xff]
          %v363 = vld [vmem:[%s319 + $0x20] sm:$0xff]
          %v364 = vld [vmem:[%s319 + $0x28] sm:$0xff]
          %v365 = vld [vmem:[%s319 + $0x30] sm:$0xff]
          %v366 = vld [vmem:[%s319 + $0x38] sm:$0xff]
          %v367 = vld [vmem:[%s319 + $0x40] sm:$0xff]
          %v368 = vld [vmem:[%s319 + $0x48] sm:$0xff]
          %v369 = vld [vmem:[%s319 + $0x50] sm:$0xff]
          %v370 = vld [vmem:[%s319 + $0x58] sm:$0xff]
          %v371 = vld [vmem:[%s319 + $0x60] sm:$0xff]
          %v372 = vld [vmem:[%s319 + $0x68] sm:$0xff]
          %v373 = vld [vmem:[%s319 + $0x70] sm:$0xff]
          %v374 = vld [vmem:[%s319 + $0x78] sm:$0xff]
          %v375 = vpack.c.bf16 %v360, %v359
          %v376 = vpack.c.bf16 %v362, %v361
          %v377 = vpack.c.bf16 %v364, %v363
          %v378 = vpack.c.bf16 %v366, %v365
          %v379 = vpack.c.bf16 %v368, %v367
          %v380 = vpack.c.bf16 %v370, %v369
          %v381 = vpack.c.bf16 %v372, %v371
          %v382 = vpack.c.bf16 %v374, %v373
          %s383 = smul.u32 %s354, 2
          %s384 = smul.addr %s383, 8
          %s385 = scalar_lea.vmem [#allocation13], %s384
          %v386 = vld [vmem:[%s385] sm:$0xff]
          %v387 = vld [vmem:[%s385 + $0x8] sm:$0xff]
          %s388 = smul.u32 %s354, 32
          %s389 = smul.addr %s388, 4
          %s390 = scalar_lea.vmem [#allocation8], %s389
          %v391 = vld [vmem:[%s390] sm:$0xff]
          %v392 = vld [vmem:[%s390 + $0x8] sm:$0xff]
          %v393 = vld [vmem:[%s390 + $0x10] sm:$0xff]
          %v394 = vld [vmem:[%s390 + $0x18] sm:$0xff]
          %v395 = vld [vmem:[%s390 + $0x20] sm:$0xff]
          %v396 = vld [vmem:[%s390 + $0x28] sm:$0xff]
          %v397 = vld [vmem:[%s390 + $0x30] sm:$0xff]
          %v398 = vld [vmem:[%s390 + $0x38] sm:$0xff]
          %v399 = vld [vmem:[%s390 + $0x40] sm:$0xff]
          %v400 = vld [vmem:[%s390 + $0x48] sm:$0xff]
          %v401 = vld [vmem:[%s390 + $0x50] sm:$0xff]
          %v402 = vld [vmem:[%s390 + $0x58] sm:$0xff]
          %v403 = vld [vmem:[%s390 + $0x60] sm:$0xff]
          %v404 = vld [vmem:[%s390 + $0x68] sm:$0xff]
          %v405 = vld [vmem:[%s390 + $0x70] sm:$0xff]
          %v406 = vld [vmem:[%s390 + $0x78] sm:$0xff]
          %v407 = vperm.slane %v386, 0
          %v408 = vperm.slane %v387, 0
          %v425 = vunpack.c.l.b16 %v391
          %v426 = vunpack.c.h.b16 %v391
          %v427 = vunpack.c.l.b16 %v392
          %v428 = vunpack.c.h.b16 %v392
          %v429 = vunpack.c.l.b16 %v393
          %v430 = vunpack.c.h.b16 %v393
          %v431 = vunpack.c.l.b16 %v394
          %v432 = vunpack.c.h.b16 %v394
          %v433 = vunpack.c.l.b16 %v395
          %v434 = vunpack.c.h.b16 %v395
          %v435 = vunpack.c.l.b16 %v396
          %v436 = vunpack.c.h.b16 %v396
          %v437 = vunpack.c.l.b16 %v397
          %v438 = vunpack.c.h.b16 %v397
          %v439 = vunpack.c.l.b16 %v398
          %v440 = vunpack.c.h.b16 %v398
          %v441 = vunpack.c.l.b16 %v399
          %v442 = vunpack.c.h.b16 %v399
          %v443 = vunpack.c.l.b16 %v400
          %v444 = vunpack.c.h.b16 %v400
          %v445 = vunpack.c.l.b16 %v401
          %v446 = vunpack.c.h.b16 %v401
          %v447 = vunpack.c.l.b16 %v402
          %v448 = vunpack.c.h.b16 %v402
          %v449 = vunpack.c.l.b16 %v403
          %v450 = vunpack.c.h.b16 %v403
          %v451 = vunpack.c.l.b16 %v404
          %v452 = vunpack.c.h.b16 %v404
          %v453 = vunpack.c.l.b16 %v405
          %v454 = vunpack.c.h.b16 %v405
          %v455 = vunpack.c.l.b16 %v406
          %v456 = vunpack.c.h.b16 %v406
          %v457 = vpack.c.b16 %v427, %v425
          %v458 = vpack.c.b16 %v428, %v426
          %v459 = vpack.c.b16 %v431, %v429
          %v460 = vpack.c.b16 %v432, %v430
          %v461 = vpack.c.b16 %v435, %v433
          %v462 = vpack.c.b16 %v436, %v434
          %v463 = vpack.c.b16 %v439, %v437
          %v464 = vpack.c.b16 %v440, %v438
          %v465 = vpack.c.b16 %v443, %v441
          %v466 = vpack.c.b16 %v444, %v442
          %v467 = vpack.c.b16 %v447, %v445
          %v468 = vpack.c.b16 %v448, %v446
          %v469 = vpack.c.b16 %v451, %v449
          %v470 = vpack.c.b16 %v452, %v450
          %v471 = vpack.c.b16 %v455, %v453
          %v472 = vpack.c.b16 %v456, %v454
          %489 = vmatpush.bf16.msra.mxu0 %v471
          %490 = vmatpush.bf16.msra.mxu0 %v469
          %491 = vmatpush.bf16.msra.mxu0 %v467
          %492 = vmatpush.bf16.msra.mxu0 %v465
          %493 = vmatpush.bf16.msra.mxu0 %v463
          %494 = vmatpush.bf16.msra.mxu0 %v461
          %495 = vmatpush.bf16.msra.mxu0 %v459
          %496 = vmatpush.bf16.msra.mxu0 %v457
          %497 = vmatmul.bf16.gmra.mxu0 %v375
          %v498 = vpop.f32.mrf.mxu0
          %v499 = vadd.f32 %v407, %v498
          %v500 = vpop.f32.mrf.mxu0
          %v501 = vadd.f32 %v407, %v500
          %502 = vmatmul.bf16.gmra.mxu0 %v376
          %v503 = vpop.f32.mrf.mxu0
          %v504 = vadd.f32 %v407, %v503
          %v505 = vpop.f32.mrf.mxu0
          %v506 = vadd.f32 %v407, %v505
          %507 = vmatmul.bf16.gmra.mxu0 %v377
          %v508 = vpop.f32.mrf.mxu0
          %v509 = vadd.f32 %v407, %v508
          %v510 = vpop.f32.mrf.mxu0
          %v511 = vadd.f32 %v407, %v510
          %512 = vmatmul.bf16.gmra.mxu0 %v378
          %v513 = vpop.f32.mrf.mxu0
          %v514 = vadd.f32 %v407, %v513
          %v515 = vpop.f32.mrf.mxu0
          %v516 = vadd.f32 %v407, %v515
          %517 = vmatmul.bf16.gmra.mxu0 %v379
          %v518 = vpop.f32.mrf.mxu0
          %v519 = vadd.f32 %v407, %v518
          %v520 = vpop.f32.mrf.mxu0
          %v521 = vadd.f32 %v407, %v520
          %522 = vmatmul.bf16.gmra.mxu0 %v380
          %v523 = vpop.f32.mrf.mxu0
          %v524 = vadd.f32 %v407, %v523
          %v525 = vpop.f32.mrf.mxu0
          %v526 = vadd.f32 %v407, %v525
          %527 = vmatmul.bf16.gmra.mxu0 %v381
          %v528 = vpop.f32.mrf.mxu0
          %v529 = vadd.f32 %v407, %v528
          %v530 = vpop.f32.mrf.mxu0
          %v531 = vadd.f32 %v407, %v530
          %532 = vmatmul.bf16.gmra.mxu0 %v382
          %v533 = vpop.f32.mrf.mxu0
          %v534 = vadd.f32 %v407, %v533
          %v535 = vpop.f32.mrf.mxu0
          %v536 = vadd.f32 %v407, %v535
          %537 = vdwg.mxu0
          %538 = vmatpush.bf16.msra.mxu0 %v472
          %539 = vmatpush.bf16.msra.mxu0 %v470
          %540 = vmatpush.bf16.msra.mxu0 %v468
          %541 = vmatpush.bf16.msra.mxu0 %v466
          %542 = vmatpush.bf16.msra.mxu0 %v464
          %543 = vmatpush.bf16.msra.mxu0 %v462
          %544 = vmatpush.bf16.msra.mxu0 %v460
          %545 = vmatpush.bf16.msra.mxu0 %v458
          %546 = vmatmul.bf16.gmra.mxu0 %v375
          %v547 = vpop.f32.mrf.mxu0
          %v548 = vadd.f32 %v408, %v547
          %v549 = vpop.f32.mrf.mxu0
          %v550 = vadd.f32 %v408, %v549
          %551 = vmatmul.bf16.gmra.mxu0 %v376
          %v552 = vpop.f32.mrf.mxu0
          %v553 = vadd.f32 %v408, %v552
          %v554 = vpop.f32.mrf.mxu0
          %v555 = vadd.f32 %v408, %v554
          %556 = vmatmul.bf16.gmra.mxu0 %v377
          %v557 = vpop.f32.mrf.mxu0
          %v558 = vadd.f32 %v408, %v557
          %v559 = vpop.f32.mrf.mxu0
          %v560 = vadd.f32 %v408, %v559
          %561 = vmatmul.bf16.gmra.mxu0 %v378
          %v562 = vpop.f32.mrf.mxu0
          %v563 = vadd.f32 %v408, %v562
          %v564 = vpop.f32.mrf.mxu0
          %v565 = vadd.f32 %v408, %v564
          %566 = vmatmul.bf16.gmra.mxu0 %v379
          %v567 = vpop.f32.mrf.mxu0
          %v568 = vadd.f32 %v408, %v567
          %v569 = vpop.f32.mrf.mxu0
          %v570 = vadd.f32 %v408, %v569
          %571 = vmatmul.bf16.gmra.mxu0 %v380
          %v572 = vpop.f32.mrf.mxu0
          %v573 = vadd.f32 %v408, %v572
          %v574 = vpop.f32.mrf.mxu0
          %v575 = vadd.f32 %v408, %v574
          %576 = vmatmul.bf16.gmra.mxu0 %v381
          %v577 = vpop.f32.mrf.mxu0
          %v578 = vadd.f32 %v408, %v577
          %v579 = vpop.f32.mrf.mxu0
          %v580 = vadd.f32 %v408, %v579
          %581 = vmatmul.bf16.gmra.mxu0 %v382
          %v582 = vpop.f32.mrf.mxu0
          %v583 = vadd.f32 %v408, %v582
          %v584 = vpop.f32.mrf.mxu0
          %v585 = vadd.f32 %v408, %v584
          %586 = vdwg.mxu0
          %s587 = smul.addr %s388, 4
          %s588 = scalar_lea.vmem [#allocation10], %s587
          %v589 = vld [vmem:[%s588] sm:$0xff]
          %v590 = vld [vmem:[%s588 + $0x8] sm:$0xff]
          %v591 = vld [vmem:[%s588 + $0x10] sm:$0xff]
          %v592 = vld [vmem:[%s588 + $0x18] sm:$0xff]
          %v593 = vld [vmem:[%s588 + $0x20] sm:$0xff]
          %v594 = vld [vmem:[%s588 + $0x28] sm:$0xff]
          %v595 = vld [vmem:[%s588 + $0x30] sm:$0xff]
          %v596 = vld [vmem:[%s588 + $0x38] sm:$0xff]
          %v597 = vld [vmem:[%s588 + $0x40] sm:$0xff]
          %v598 = vld [vmem:[%s588 + $0x48] sm:$0xff]
          %v599 = vld [vmem:[%s588 + $0x50] sm:$0xff]
          %v600 = vld [vmem:[%s588 + $0x58] sm:$0xff]
          %v601 = vld [vmem:[%s588 + $0x60] sm:$0xff]
          %v602 = vld [vmem:[%s588 + $0x68] sm:$0xff]
          %v603 = vld [vmem:[%s588 + $0x70] sm:$0xff]
          %v604 = vld [vmem:[%s588 + $0x78] sm:$0xff]
          %v605 = vperm.slane %v386, 1
          %v606 = vperm.slane %v387, 1
          %v623 = vunpack.c.l.b16 %v589
          %v624 = vunpack.c.h.b16 %v589
          %v625 = vunpack.c.l.b16 %v590
          %v626 = vunpack.c.h.b16 %v590
          %v627 = vunpack.c.l.b16 %v591
          %v628 = vunpack.c.h.b16 %v591
          %v629 = vunpack.c.l.b16 %v592
          %v630 = vunpack.c.h.b16 %v592
          %v631 = vunpack.c.l.b16 %v593
          %v632 = vunpack.c.h.b16 %v593
          %v633 = vunpack.c.l.b16 %v594
          %v634 = vunpack.c.h.b16 %v594
          %v635 = vunpack.c.l.b16 %v595
          %v636 = vunpack.c.h.b16 %v595
          %v637 = vunpack.c.l.b16 %v596
          %v638 = vunpack.c.h.b16 %v596
          %v639 = vunpack.c.l.b16 %v597
          %v640 = vunpack.c.h.b16 %v597
          %v641 = vunpack.c.l.b16 %v598
          %v642 = vunpack.c.h.b16 %v598
          %v643 = vunpack.c.l.b16 %v599
          %v644 = vunpack.c.h.b16 %v599
          %v645 = vunpack.c.l.b16 %v600
          %v646 = vunpack.c.h.b16 %v600
          %v647 = vunpack.c.l.b16 %v601
          %v648 = vunpack.c.h.b16 %v601
          %v649 = vunpack.c.l.b16 %v602
          %v650 = vunpack.c.h.b16 %v602
          %v651 = vunpack.c.l.b16 %v603
          %v652 = vunpack.c.h.b16 %v603
          %v653 = vunpack.c.l.b16 %v604
          %v654 = vunpack.c.h.b16 %v604
          %v655 = vpack.c.b16 %v625, %v623
          %v656 = vpack.c.b16 %v626, %v624
          %v657 = vpack.c.b16 %v629, %v627
          %v658 = vpack.c.b16 %v630, %v628
          %v659 = vpack.c.b16 %v633, %v631
          %v660 = vpack.c.b16 %v634, %v632
          %v661 = vpack.c.b16 %v637, %v635
          %v662 = vpack.c.b16 %v638, %v636
          %v663 = vpack.c.b16 %v641, %v639
          %v664 = vpack.c.b16 %v642, %v640
          %v665 = vpack.c.b16 %v645, %v643
          %v666 = vpack.c.b16 %v646, %v644
          %v667 = vpack.c.b16 %v649, %v647
          %v668 = vpack.c.b16 %v650, %v648
          %v669 = vpack.c.b16 %v653, %v651
          %v670 = vpack.c.b16 %v654, %v652
          %687 = vmatpush.bf16.msra.mxu0 %v669
          %688 = vmatpush.bf16.msra.mxu0 %v667
          %689 = vmatpush.bf16.msra.mxu0 %v665
          %690 = vmatpush.bf16.msra.mxu0 %v663
          %691 = vmatpush.bf16.msra.mxu0 %v661
          %692 = vmatpush.bf16.msra.mxu0 %v659
          %693 = vmatpush.bf16.msra.mxu0 %v657
          %694 = vmatpush.bf16.msra.mxu0 %v655
          %695 = vmatmul.bf16.gmra.mxu0 %v375
          %v696 = vpop.f32.mrf.mxu0
          %v697 = vadd.f32 %v605, %v696
          %v698 = vpop.f32.mrf.mxu0
          %v699 = vadd.f32 %v605, %v698
          %700 = vmatmul.bf16.gmra.mxu0 %v376
          %v701 = vpop.f32.mrf.mxu0
          %v702 = vadd.f32 %v605, %v701
          %v703 = vpop.f32.mrf.mxu0
          %v704 = vadd.f32 %v605, %v703
          %705 = vmatmul.bf16.gmra.mxu0 %v377
          %v706 = vpop.f32.mrf.mxu0
          %v707 = vadd.f32 %v605, %v706
          %v708 = vpop.f32.mrf.mxu0
          %v709 = vadd.f32 %v605, %v708
          %710 = vmatmul.bf16.gmra.mxu0 %v378
          %v711 = vpop.f32.mrf.mxu0
          %v712 = vadd.f32 %v605, %v711
          %v713 = vpop.f32.mrf.mxu0
          %v714 = vadd.f32 %v605, %v713
          %715 = vmatmul.bf16.gmra.mxu0 %v379
          %v716 = vpop.f32.mrf.mxu0
          %v717 = vadd.f32 %v605, %v716
          %v718 = vpop.f32.mrf.mxu0
          %v719 = vadd.f32 %v605, %v718
          %720 = vmatmul.bf16.gmra.mxu0 %v380
          %v721 = vpop.f32.mrf.mxu0
          %v722 = vadd.f32 %v605, %v721
          %v723 = vpop.f32.mrf.mxu0
          %v724 = vadd.f32 %v605, %v723
          %725 = vmatmul.bf16.gmra.mxu0 %v381
          %v726 = vpop.f32.mrf.mxu0
          %v727 = vadd.f32 %v605, %v726
          %v728 = vpop.f32.mrf.mxu0
          %v729 = vadd.f32 %v605, %v728
          %730 = vmatmul.bf16.gmra.mxu0 %v382
          %v731 = vpop.f32.mrf.mxu0
          %v732 = vadd.f32 %v605, %v731
          %v733 = vpop.f32.mrf.mxu0
          %v734 = vadd.f32 %v605, %v733
          %735 = vdwg.mxu0
          %736 = vmatpush.bf16.msra.mxu0 %v670
          %737 = vmatpush.bf16.msra.mxu0 %v668
          %738 = vmatpush.bf16.msra.mxu0 %v666
          %739 = vmatpush.bf16.msra.mxu0 %v664
          %740 = vmatpush.bf16.msra.mxu0 %v662
          %741 = vmatpush.bf16.msra.mxu0 %v660
          %742 = vmatpush.bf16.msra.mxu0 %v658
          %743 = vmatpush.bf16.msra.mxu0 %v656
          %744 = vmatmul.bf16.gmra.mxu0 %v375
          %v745 = vpop.f32.mrf.mxu0
          %v746 = vadd.f32 %v606, %v745
          %v747 = vpop.f32.mrf.mxu0
          %v748 = vadd.f32 %v606, %v747
          %749 = vmatmul.bf16.gmra.mxu0 %v376
          %v750 = vpop.f32.mrf.mxu0
          %v751 = vadd.f32 %v606, %v750
          %v752 = vpop.f32.mrf.mxu0
          %v753 = vadd.f32 %v606, %v752
          %754 = vmatmul.bf16.gmra.mxu0 %v377
          %v755 = vpop.f32.mrf.mxu0
          %v756 = vadd.f32 %v606, %v755
          %v757 = vpop.f32.mrf.mxu0
          %v758 = vadd.f32 %v606, %v757
          %759 = vmatmul.bf16.gmra.mxu0 %v378
          %v760 = vpop.f32.mrf.mxu0
          %v761 = vadd.f32 %v606, %v760
          %v762 = vpop.f32.mrf.mxu0
          %v763 = vadd.f32 %v606, %v762
          %764 = vmatmul.bf16.gmra.mxu0 %v379
          %v765 = vpop.f32.mrf.mxu0
          %v766 = vadd.f32 %v606, %v765
          %v767 = vpop.f32.mrf.mxu0
          %v768 = vadd.f32 %v606, %v767
          %769 = vmatmul.bf16.gmra.mxu0 %v380
          %v770 = vpop.f32.mrf.mxu0
          %v771 = vadd.f32 %v606, %v770
          %v772 = vpop.f32.mrf.mxu0
          %v773 = vadd.f32 %v606, %v772
          %774 = vmatmul.bf16.gmra.mxu0 %v381
          %v775 = vpop.f32.mrf.mxu0
          %v776 = vadd.f32 %v606, %v775
          %v777 = vpop.f32.mrf.mxu0
          %v778 = vadd.f32 %v606, %v777
          %779 = vmatmul.bf16.gmra.mxu0 %v382
          %v780 = vpop.f32.mrf.mxu0
          %v781 = vadd.f32 %v606, %v780
          %v782 = vpop.f32.mrf.mxu0
          %v783 = vadd.f32 %v606, %v782
          %784 = vdwg.mxu0
          %785 = vst [vmem:[#allocation2] sm:$0xff] %v697
          %786 = vst [vmem:[#allocation2 + $0x8] sm:$0xff] %v746
          %787 = vst [vmem:[#allocation2 + $0x10] sm:$0xff] %v699
          %788 = vst [vmem:[#allocation2 + $0x18] sm:$0xff] %v748
          %789 = vst [vmem:[#allocation2 + $0x20] sm:$0xff] %v702
          %790 = vst [vmem:[#allocation2 + $0x28] sm:$0xff] %v751
          %791 = vst [vmem:[#allocation2 + $0x30] sm:$0xff] %v704
          %792 = vst [vmem:[#allocation2 + $0x38] sm:$0xff] %v753
          %793 = vst [vmem:[#allocation2 + $0x40] sm:$0xff] %v707
          %794 = vst [vmem:[#allocation2 + $0x48] sm:$0xff] %v756
          %795 = vst [vmem:[#allocation2 + $0x50] sm:$0xff] %v709
          %796 = vst [vmem:[#allocation2 + $0x58] sm:$0xff] %v758
          %797 = vst [vmem:[#allocation2 + $0x60] sm:$0xff] %v712
          %798 = vst [vmem:[#allocation2 + $0x68] sm:$0xff] %v761
          %799 = vst [vmem:[#allocation2 + $0x70] sm:$0xff] %v714
          %800 = vst [vmem:[#allocation2 + $0x78] sm:$0xff] %v763
          %s801 = scalar_lea.vmem [#allocation2], 128
          %802 = vst [vmem:[%s801] sm:$0xff] %v717
          %803 = vst [vmem:[%s801 + $0x8] sm:$0xff] %v766
          %804 = vst [vmem:[%s801 + $0x10] sm:$0xff] %v719
          %805 = vst [vmem:[%s801 + $0x18] sm:$0xff] %v768
          %806 = vst [vmem:[%s801 + $0x20] sm:$0xff] %v722
          %807 = vst [vmem:[%s801 + $0x28] sm:$0xff] %v771
          %808 = vst [vmem:[%s801 + $0x30] sm:$0xff] %v724
          %809 = vst [vmem:[%s801 + $0x38] sm:$0xff] %v773
          %810 = vst [vmem:[%s801 + $0x40] sm:$0xff] %v727
          %811 = vst [vmem:[%s801 + $0x48] sm:$0xff] %v776
          %812 = vst [vmem:[%s801 + $0x50] sm:$0xff] %v729
          %813 = vst [vmem:[%s801 + $0x58] sm:$0xff] %v778
          %814 = vst [vmem:[%s801 + $0x60] sm:$0xff] %v732
          %815 = vst [vmem:[%s801 + $0x68] sm:$0xff] %v781
          %816 = vst [vmem:[%s801 + $0x70] sm:$0xff] %v734
          %817 = vst [vmem:[%s801 + $0x78] sm:$0xff] %v783
          %s818 = smul.u32 %s354, 16
          %s819 = smul.addr %s818, 4
          %s820 = scalar_lea.vmem [#allocation11], %s819
          %v821 = vld [vmem:[%s820] sm:$0xf]
          %v822 = vld [vmem:[%s820 + $0x4] sm:$0xf]
          %v823 = vld [vmem:[%s820 + $0x8] sm:$0xf]
          %v824 = vld [vmem:[%s820 + $0xc] sm:$0xf]
          %v825 = vld [vmem:[%s820 + $0x10] sm:$0xf]
          %v826 = vld [vmem:[%s820 + $0x14] sm:$0xf]
          %v827 = vld [vmem:[%s820 + $0x18] sm:$0xf]
          %v828 = vld [vmem:[%s820 + $0x1c] sm:$0xf]
          %v829 = vld [vmem:[%s820 + $0x20] sm:$0xf]
          %v830 = vld [vmem:[%s820 + $0x24] sm:$0xf]
          %v831 = vld [vmem:[%s820 + $0x28] sm:$0xf]
          %v832 = vld [vmem:[%s820 + $0x2c] sm:$0xf]
          %v833 = vld [vmem:[%s820 + $0x30] sm:$0xf]
          %v834 = vld [vmem:[%s820 + $0x34] sm:$0xf]
          %v835 = vld [vmem:[%s820 + $0x38] sm:$0xf]
          %v836 = vld [vmem:[%s820 + $0x3c] sm:$0xf]
          %s837 = sld [smem:[#allocation4 + %s354]]
          %s838 = smul.u32 %s837, 16
          %s839 = smul.addr %s838, 8
          %s840 = scalar_lea.vmem [#allocation2], %s839
          %v841 = vld [vmem:[%s840] sm:$0xff]
          %v842 = vld [vmem:[%s840 + $0x8] sm:$0xff]
          %v843 = vld [vmem:[%s840 + $0x10] sm:$0xff]
          %v844 = vld [vmem:[%s840 + $0x18] sm:$0xff]
          %v845 = vld [vmem:[%s840 + $0x20] sm:$0xff]
          %v846 = vld [vmem:[%s840 + $0x28] sm:$0xff]
          %v847 = vld [vmem:[%s840 + $0x30] sm:$0xff]
          %v848 = vld [vmem:[%s840 + $0x38] sm:$0xff]
          %v849 = vld [vmem:[%s840 + $0x40] sm:$0xff]
          %v850 = vld [vmem:[%s840 + $0x48] sm:$0xff]
          %v851 = vld [vmem:[%s840 + $0x50] sm:$0xff]
          %v852 = vld [vmem:[%s840 + $0x58] sm:$0xff]
          %v853 = vld [vmem:[%s840 + $0x60] sm:$0xff]
          %v854 = vld [vmem:[%s840 + $0x68] sm:$0xff]
          %v855 = vld [vmem:[%s840 + $0x70] sm:$0xff]
          %v856 = vld [vmem:[%s840 + $0x78] sm:$0xff]
          %v857 = vpack.c.bf16 %v501, %v499
          %v858 = vpack.c.bf16 %v506, %v504
          %v859 = vpack.c.bf16 %v511, %v509
          %v860 = vpack.c.bf16 %v516, %v514
          %v861 = vpack.c.bf16 %v843, %v841
          %v862 = vpack.c.bf16 %v847, %v845
          %v863 = vpack.c.bf16 %v851, %v849
          %v864 = vpack.c.bf16 %v855, %v853
          %v865 = vpack.c.bf16 %v844, %v842
          %v866 = vpack.c.bf16 %v848, %v846
          %v867 = vpack.c.bf16 %v852, %v850
          %v868 = vpack.c.bf16 %v856, %v854
          %vm869 = vcmask 261120
          %v871 = vsel %vm869, %v857, 0
          %v874 = vsel %vm869, %v858, 0
          %v877 = vsel %vm869, %v859, 0
          %v880 = vsel %vm869, %v860, 0
          %v883 = vsel %vm869, %v861, 0
          %v886 = vsel %vm869, %v862, 0
          %v889 = vsel %vm869, %v863, 0
          %v892 = vsel %vm869, %v864, 0
          %894 = vmatpush.bf16.xpose.msra.mxu0 0
          %895 = vmatpush.bf16.xpose.msra.mxu0 0
          %896 = vmatpush.bf16.xpose.msra.mxu0 0
          %897 = vmatpush.bf16.xpose.msra.mxu0 0
          %898 = vmatpush.bf16.xpose.msra.mxu0 %v892
          %899 = vmatpush.bf16.xpose.msra.mxu0 %v889
          %900 = vmatpush.bf16.xpose.msra.mxu0 %v886
          %901 = vmatpush.bf16.xpose.msra.mxu0 %v883
          %902 = vmatmul.bf16.gmra.mxu0 %v871
          %v903 = vpop.f32.mrf.mxu0
          %v904 = vadd.f32 0.0, %v903
          %v905 = vpop.f32.mrf.mxu0
          %v906 = vadd.f32 0.0, %v905
          %907 = vmatmul.bf16.gmra.mxu0 %v874
          %v908 = vpop.f32.mrf.mxu0
          %v909 = vadd.f32 0.0, %v908
          %v910 = vpop.f32.mrf.mxu0
          %v911 = vadd.f32 0.0, %v910
          %912 = vmatmul.bf16.gmra.mxu0 %v877
          %v913 = vpop.f32.mrf.mxu0
          %v914 = vadd.f32 0.0, %v913
          %v915 = vpop.f32.mrf.mxu0
          %v916 = vadd.f32 0.0, %v915
          %917 = vmatmul.bf16.gmra.mxu0 %v880
          %v918 = vpop.f32.mrf.mxu0
          %v919 = vadd.f32 0.0, %v918
          %v920 = vpop.f32.mrf.mxu0
          %v921 = vadd.f32 0.0, %v920
          %922 = vdwg.mxu0
          %vm923 = vcmask 523264
          %v924 = vsel %vm923, %v904, -inf
          %925 = vmax.xlane.f32.xlu0 %v924
          %v926 = vpop.xlane.xlu0 %925
          %v927 = vsel %vm923, %v906, -inf
          %928 = vmax.xlane.f32.xlu0 %v927
          %v929 = vpop.xlane.xlu0 %928
          %v930 = vsel %vm923, %v909, -inf
          %931 = vmax.xlane.f32.xlu0 %v930
          %v932 = vpop.xlane.xlu0 %931
          %v933 = vsel %vm923, %v911, -inf
          %934 = vmax.xlane.f32.xlu0 %v933
          %v935 = vpop.xlane.xlu0 %934
          %v936 = vsel %vm923, %v914, -inf
          %937 = vmax.xlane.f32.xlu0 %v936
          %v938 = vpop.xlane.xlu0 %937
          %v939 = vsel %vm923, %v916, -inf
          %940 = vmax.xlane.f32.xlu0 %v939
          %v941 = vpop.xlane.xlu0 %940
          %v942 = vsel %vm923, %v919, -inf
          %943 = vmax.xlane.f32.xlu0 %v942
          %v944 = vpop.xlane.xlu0 %943
          %v945 = vsel %vm923, %v921, -inf
          %946 = vmax.xlane.f32.xlu0 %v945
          %v947 = vpop.xlane.xlu0 %946
          %v948 = vsub.f32 %v904, %v926
          %v949 = vsub.f32 %v906, %v929
          %v950 = vsub.f32 %v909, %v932
          %v951 = vsub.f32 %v911, %v935
          %v952 = vsub.f32 %v914, %v938
          %v953 = vsub.f32 %v916, %v941
          %v954 = vsub.f32 %v919, %v944
          %v955 = vsub.f32 %v921, %v947
          %v956 = vmul.f32 %v948, 1.442695
          %v957 = vpow.pop %v956
          %v958 = vmul.f32 %v949, 1.442695
          %v959 = vpow.pop %v958
          %v960 = vmul.f32 %v950, 1.442695
          %v961 = vpow.pop %v960
          %v962 = vmul.f32 %v951, 1.442695
          %v963 = vpow.pop %v962
          %v964 = vmul.f32 %v952, 1.442695
          %v965 = vpow.pop %v964
          %v966 = vmul.f32 %v953, 1.442695
          %v967 = vpow.pop %v966
          %v968 = vmul.f32 %v954, 1.442695
          %v969 = vpow.pop %v968
          %v970 = vmul.f32 %v955, 1.442695
          %v971 = vpow.pop %v970
          %v972 = vsel %vm923, %v957, 0.0
          %973 = vadd.xlane.f32.xlu0 %v972
          %v974 = vpop.xlane.xlu0 %973
          %v975 = vsel %vm923, %v959, 0.0
          %976 = vadd.xlane.f32.xlu0 %v975
          %v977 = vpop.xlane.xlu0 %976
          %v978 = vsel %vm923, %v961, 0.0
          %979 = vadd.xlane.f32.xlu0 %v978
          %v980 = vpop.xlane.xlu0 %979
          %v981 = vsel %vm923, %v963, 0.0
          %982 = vadd.xlane.f32.xlu0 %v981
          %v983 = vpop.xlane.xlu0 %982
          %v984 = vsel %vm923, %v965, 0.0
          %985 = vadd.xlane.f32.xlu0 %v984
          %v986 = vpop.xlane.xlu0 %985
          %v987 = vsel %vm923, %v967, 0.0
          %988 = vadd.xlane.f32.xlu0 %v987
          %v989 = vpop.xlane.xlu0 %988
          %v990 = vsel %vm923, %v969, 0.0
          %991 = vadd.xlane.f32.xlu0 %v990
          %v992 = vpop.xlane.xlu0 %991
          %v993 = vsel %vm923, %v971, 0.0
          %994 = vadd.xlane.f32.xlu0 %v993
          %v995 = vpop.xlane.xlu0 %994
          %v996 = vpack.c.bf16 %v959, %v957
          %v997 = vpack.c.bf16 %v963, %v961
          %v998 = vpack.c.bf16 %v967, %v965
          %v999 = vpack.c.bf16 %v971, %v969
          %v1001 = vsel %vm923, %v996, 0
          %v1004 = vsel %vm923, %v997, 0
          %v1007 = vsel %vm923, %v998, 0
          %v1010 = vsel %vm923, %v999, 0
          %1012 = vmatpush.bf16.msra.mxu0 0
          %1013 = vmatpush.bf16.msra.mxu0 0
          %1014 = vmatpush.bf16.msra.mxu0 0
          %1015 = vmatpush.bf16.msra.mxu0 0
          %1016 = vmatpush.bf16.msra.mxu0 %v868
          %1017 = vmatpush.bf16.msra.mxu0 %v867
          %1018 = vmatpush.bf16.msra.mxu0 %v866
          %1019 = vmatpush.bf16.msra.mxu0 %v865
          %1020 = vmatmul.bf16.gmra.mxu0 %v1001
          %v1021 = vpop.f32.mrf.mxu0
          %v1022 = vadd.f32 0.0, %v1021
          %v1023 = vpop.f32.mrf.mxu0
          %v1024 = vadd.f32 0.0, %v1023
          %1025 = vmatmul.bf16.gmra.mxu0 %v1004
          %v1026 = vpop.f32.mrf.mxu0
          %v1027 = vadd.f32 0.0, %v1026
          %v1028 = vpop.f32.mrf.mxu0
          %v1029 = vadd.f32 0.0, %v1028
          %1030 = vmatmul.bf16.gmra.mxu0 %v1007
          %v1031 = vpop.f32.mrf.mxu0
          %v1032 = vadd.f32 0.0, %v1031
          %v1033 = vpop.f32.mrf.mxu0
          %v1034 = vadd.f32 0.0, %v1033
          %1035 = vmatmul.bf16.gmra.mxu0 %v1010
          %v1036 = vpop.f32.mrf.mxu0
          %v1037 = vadd.f32 0.0, %v1036
          %v1038 = vpop.f32.mrf.mxu0
          %v1039 = vadd.f32 0.0, %v1038
          %1040 = vdwg.mxu0
          %v1041 = vrcp.pop %v974
          %v1042 = vrcp.pop %v977
          %v1043 = vrcp.pop %v980
          %v1044 = vrcp.pop %v983
          %v1045 = vrcp.pop %v986
          %v1046 = vrcp.pop %v989
          %v1047 = vrcp.pop %v992
          %v1048 = vrcp.pop %v995
          %v1049 = vmul.f32 %v1022, %v1041
          %v1050 = vmul.f32 %v1024, %v1042
          %v1051 = vmul.f32 %v1027, %v1043
          %v1052 = vmul.f32 %v1029, %v1044
          %v1053 = vmul.f32 %v1032, %v1045
          %v1054 = vmul.f32 %v1034, %v1046
          %v1055 = vmul.f32 %v1037, %v1047
          %v1056 = vmul.f32 %v1039, %v1048
          %v1057 = vpack.c.bf16 %v1050, %v1049
          %v1058 = vpack.c.bf16 %v1052, %v1051
          %v1059 = vpack.c.bf16 %v1054, %v1053
          %v1060 = vpack.c.bf16 %v1056, %v1055
          %1065 = vrot.lane.b32.xlu0 %v857, 96
          %v1066 = vpop.permute.xlu0 %1065
          %1067 = vrot.lane.b32.xlu0 %v858, 96
          %v1068 = vpop.permute.xlu0 %1067
          %1069 = vrot.lane.b32.xlu0 %v859, 96
          %v1070 = vpop.permute.xlu0 %1069
          %1071 = vrot.lane.b32.xlu0 %v860, 96
          %v1072 = vpop.permute.xlu0 %1071
          %1077 = vrot.lane.b32.xlu0 %v861, 96
          %v1078 = vpop.permute.xlu0 %1077
          %1079 = vrot.lane.b32.xlu0 %v862, 96
          %v1080 = vpop.permute.xlu0 %1079
          %1081 = vrot.lane.b32.xlu0 %v863, 96
          %v1082 = vpop.permute.xlu0 %1081
          %1083 = vrot.lane.b32.xlu0 %v864, 96
          %v1084 = vpop.permute.xlu0 %1083
          %v1086 = vsel %vm869, %v1066, 0
          %v1089 = vsel %vm869, %v1068, 0
          %v1092 = vsel %vm869, %v1070, 0
          %v1095 = vsel %vm869, %v1072, 0
          %v1098 = vsel %vm869, %v1078, 0
          %v1101 = vsel %vm869, %v1080, 0
          %v1104 = vsel %vm869, %v1082, 0
          %v1107 = vsel %vm869, %v1084, 0
          %1109 = vmatpush.bf16.xpose.msra.mxu0 0
          %1110 = vmatpush.bf16.xpose.msra.mxu0 0
          %1111 = vmatpush.bf16.xpose.msra.mxu0 0
          %1112 = vmatpush.bf16.xpose.msra.mxu0 0
          %1113 = vmatpush.bf16.xpose.msra.mxu0 %v1107
          %1114 = vmatpush.bf16.xpose.msra.mxu0 %v1104
          %1115 = vmatpush.bf16.xpose.msra.mxu0 %v1101
          %1116 = vmatpush.bf16.xpose.msra.mxu0 %v1098
          %1117 = vmatmul.bf16.gmra.mxu0 %v1086
          %v1118 = vpop.f32.mrf.mxu0
          %v1119 = vadd.f32 0.0, %v1118
          %v1120 = vpop.f32.mrf.mxu0
          %v1121 = vadd.f32 0.0, %v1120
          %1122 = vmatmul.bf16.gmra.mxu0 %v1089
          %v1123 = vpop.f32.mrf.mxu0
          %v1124 = vadd.f32 0.0, %v1123
          %v1125 = vpop.f32.mrf.mxu0
          %v1126 = vadd.f32 0.0, %v1125
          %1127 = vmatmul.bf16.gmra.mxu0 %v1092
          %v1128 = vpop.f32.mrf.mxu0
          %v1129 = vadd.f32 0.0, %v1128
          %v1130 = vpop.f32.mrf.mxu0
          %v1131 = vadd.f32 0.0, %v1130
          %1132 = vmatmul.bf16.gmra.mxu0 %v1095
          %v1133 = vpop.f32.mrf.mxu0
          %v1134 = vadd.f32 0.0, %v1133
          %v1135 = vpop.f32.mrf.mxu0
          %v1136 = vadd.f32 0.0, %v1135
          %1137 = vdwg.mxu0
          %v1138 = vsel %vm923, %v1119, -inf
          %1139 = vmax.xlane.f32.xlu0 %v1138
          %v1140 = vpop.xlane.xlu0 %1139
          %v1141 = vsel %vm923, %v1121, -inf
          %1142 = vmax.xlane.f32.xlu0 %v1141
          %v1143 = vpop.xlane.xlu0 %1142
          %v1144 = vsel %vm923, %v1124, -inf
          %1145 = vmax.xlane.f32.xlu0 %v1144
          %v1146 = vpop.xlane.xlu0 %1145
          %v1147 = vsel %vm923, %v1126, -inf
          %1148 = vmax.xlane.f32.xlu0 %v1147
          %v1149 = vpop.xlane.xlu0 %1148
          %v1150 = vsel %vm923, %v1129, -inf
          %1151 = vmax.xlane.f32.xlu0 %v1150
          %v1152 = vpop.xlane.xlu0 %1151
          %v1153 = vsel %vm923, %v1131, -inf
          %1154 = vmax.xlane.f32.xlu0 %v1153
          %v1155 = vpop.xlane.xlu0 %1154
          %v1156 = vsel %vm923, %v1134, -inf
          %1157 = vmax.xlane.f32.xlu0 %v1156
          %v1158 = vpop.xlane.xlu0 %1157
          %v1159 = vsel %vm923, %v1136, -inf
          %1160 = vmax.xlane.f32.xlu0 %v1159
          %v1161 = vpop.xlane.xlu0 %1160
          %v1162 = vsub.f32 %v1119, %v1140
          %v1163 = vsub.f32 %v1121, %v1143
          %v1164 = vsub.f32 %v1124, %v1146
          %v1165 = vsub.f32 %v1126, %v1149
          %v1166 = vsub.f32 %v1129, %v1152
          %v1167 = vsub.f32 %v1131, %v1155
          %v1168 = vsub.f32 %v1134, %v1158
          %v1169 = vsub.f32 %v1136, %v1161
          %v1170 = vmul.f32 %v1162, 1.442695
          %v1171 = vpow.pop %v1170
          %v1172 = vmul.f32 %v1163, 1.442695
          %v1173 = vpow.pop %v1172
          %v1174 = vmul.f32 %v1164, 1.442695
          %v1175 = vpow.pop %v1174
          %v1176 = vmul.f32 %v1165, 1.442695
          %v1177 = vpow.pop %v1176
          %v1178 = vmul.f32 %v1166, 1.442695
          %v1179 = vpow.pop %v1178
          %v1180 = vmul.f32 %v1167, 1.442695
          %v1181 = vpow.pop %v1180
          %v1182 = vmul.f32 %v1168, 1.442695
          %v1183 = vpow.pop %v1182
          %v1184 = vmul.f32 %v1169, 1.442695
          %v1185 = vpow.pop %v1184
          %v1186 = vsel %vm923, %v1171, 0.0
          %1187 = vadd.xlane.f32.xlu0 %v1186
          %v1188 = vpop.xlane.xlu0 %1187
          %v1189 = vsel %vm923, %v1173, 0.0
          %1190 = vadd.xlane.f32.xlu0 %v1189
          %v1191 = vpop.xlane.xlu0 %1190
          %v1192 = vsel %vm923, %v1175, 0.0
          %1193 = vadd.xlane.f32.xlu0 %v1192
          %v1194 = vpop.xlane.xlu0 %1193
          %v1195 = vsel %vm923, %v1177, 0.0
          %1196 = vadd.xlane.f32.xlu0 %v1195
          %v1197 = vpop.xlane.xlu0 %1196
          %v1198 = vsel %vm923, %v1179, 0.0
          %1199 = vadd.xlane.f32.xlu0 %v1198
          %v1200 = vpop.xlane.xlu0 %1199
          %v1201 = vsel %vm923, %v1181, 0.0
          %1202 = vadd.xlane.f32.xlu0 %v1201
          %v1203 = vpop.xlane.xlu0 %1202
          %v1204 = vsel %vm923, %v1183, 0.0
          %1205 = vadd.xlane.f32.xlu0 %v1204
          %v1206 = vpop.xlane.xlu0 %1205
          %v1207 = vsel %vm923, %v1185, 0.0
          %1208 = vadd.xlane.f32.xlu0 %v1207
          %v1209 = vpop.xlane.xlu0 %1208
          %v1210 = vpack.c.bf16 %v1173, %v1171
          %v1211 = vpack.c.bf16 %v1177, %v1175
          %v1212 = vpack.c.bf16 %v1181, %v1179
          %v1213 = vpack.c.bf16 %v1185, %v1183
          %1218 = vrot.lane.b32.xlu0 %v865, 96
          %v1219 = vpop.permute.xlu0 %1218
          %1220 = vrot.lane.b32.xlu0 %v866, 96
          %v1221 = vpop.permute.xlu0 %1220
          %1222 = vrot.lane.b32.xlu0 %v867, 96
          %v1223 = vpop.permute.xlu0 %1222
          %1224 = vrot.lane.b32.xlu0 %v868, 96
          %v1225 = vpop.permute.xlu0 %1224
          %v1231 = vsel %vm923, %v1210, 0
          %v1234 = vsel %vm923, %v1211, 0
          %v1237 = vsel %vm923, %v1212, 0
          %v1240 = vsel %vm923, %v1213, 0
          %1242 = vmatpush.bf16.msra.mxu0 0
          %1243 = vmatpush.bf16.msra.mxu0 0
          %1244 = vmatpush.bf16.msra.mxu0 0
          %1245 = vmatpush.bf16.msra.mxu0 0
          %1246 = vmatpush.bf16.msra.mxu0 %v1225
          %1247 = vmatpush.bf16.msra.mxu0 %v1223
          %1248 = vmatpush.bf16.msra.mxu0 %v1221
          %1249 = vmatpush.bf16.msra.mxu0 %v1219
          %1250 = vmatmul.bf16.gmra.mxu0 %v1231
          %v1251 = vpop.f32.mrf.mxu0
          %v1252 = vadd.f32 0.0, %v1251
          %v1253 = vpop.f32.mrf.mxu0
          %v1254 = vadd.f32 0.0, %v1253
          %1255 = vmatmul.bf16.gmra.mxu0 %v1234
          %v1256 = vpop.f32.mrf.mxu0
          %v1257 = vadd.f32 0.0, %v1256
          %v1258 = vpop.f32.mrf.mxu0
          %v1259 = vadd.f32 0.0, %v1258
          %1260 = vmatmul.bf16.gmra.mxu0 %v1237
          %v1261 = vpop.f32.mrf.mxu0
          %v1262 = vadd.f32 0.0, %v1261
          %v1263 = vpop.f32.mrf.mxu0
          %v1264 = vadd.f32 0.0, %v1263
          %1265 = vmatmul.bf16.gmra.mxu0 %v1240
          %v1266 = vpop.f32.mrf.mxu0
          %v1267 = vadd.f32 0.0, %v1266
          %v1268 = vpop.f32.mrf.mxu0
          %v1269 = vadd.f32 0.0, %v1268
          %1270 = vdwg.mxu0
          %v1271 = vrcp.pop %v1188
          %v1272 = vrcp.pop %v1191
          %v1273 = vrcp.pop %v1194
          %v1274 = vrcp.pop %v1197
          %v1275 = vrcp.pop %v1200
          %v1276 = vrcp.pop %v1203
          %v1277 = vrcp.pop %v1206
          %v1278 = vrcp.pop %v1209
          %v1279 = vmul.f32 %v1252, %v1271
          %v1280 = vmul.f32 %v1254, %v1272
          %v1281 = vmul.f32 %v1257, %v1273
          %v1282 = vmul.f32 %v1259, %v1274
          %v1283 = vmul.f32 %v1262, %v1275
          %v1284 = vmul.f32 %v1264, %v1276
          %v1285 = vmul.f32 %v1267, %v1277
          %v1286 = vmul.f32 %v1269, %v1278
          %v1287 = vpack.c.bf16 %v1280, %v1279
          %v1288 = vpack.c.bf16 %v1282, %v1281
          %v1289 = vpack.c.bf16 %v1284, %v1283
          %v1290 = vpack.c.bf16 %v1286, %v1285
          %v1295 = vunpack.c.l.b16 %v825
          %v1296 = vunpack.c.l.b16 %v826
          %v1297 = vunpack.c.l.b16 %v827
          %v1298 = vunpack.c.l.b16 %v828
          %v1299 = vpack.c.b16 %v1296, %v1295
          %v1300 = vpack.c.b16 %v1298, %v1297
          %v1304 = vsel %vm869, %v1287, 0
          %v1307 = vsel %vm869, %v1288, 0
          %v1310 = vsel %vm869, %v1289, 0
          %v1313 = vsel %vm869, %v1290, 0
          %1315 = vmatpush.bf16.msra.mxu0 0
          %1316 = vmatpush.bf16.msra.mxu0 0
          %1317 = vmatpush.bf16.msra.mxu0 0
          %1318 = vmatpush.bf16.msra.mxu0 0
          %1319 = vmatpush.bf16.msra.mxu0 0
          %1320 = vmatpush.bf16.msra.mxu0 0
          %1321 = vmatpush.bf16.msra.mxu0 %v1300
          %1322 = vmatpush.bf16.msra.mxu0 %v1299
          %1323 = vmatmul.bf16.gmra.mxu0 %v1304
          %v1324 = vpop.f32.mrf.mxu0
          %v1325 = vadd.f32 0.0, %v1324
          %v1326 = vpop.f32.mrf.mxu0
          %v1327 = vadd.f32 0.0, %v1326
          %1328 = vmatmul.bf16.gmra.mxu0 %v1307
          %v1329 = vpop.f32.mrf.mxu0
          %v1330 = vadd.f32 0.0, %v1329
          %v1331 = vpop.f32.mrf.mxu0
          %v1332 = vadd.f32 0.0, %v1331
          %1333 = vmatmul.bf16.gmra.mxu0 %v1310
          %v1334 = vpop.f32.mrf.mxu0
          %v1335 = vadd.f32 0.0, %v1334
          %v1336 = vpop.f32.mrf.mxu0
          %v1337 = vadd.f32 0.0, %v1336
          %1338 = vmatmul.bf16.gmra.mxu0 %v1313
          %v1339 = vpop.f32.mrf.mxu0
          %v1340 = vadd.f32 0.0, %v1339
          %v1341 = vpop.f32.mrf.mxu0
          %v1342 = vadd.f32 0.0, %v1341
          %1343 = vdwg.mxu0
          %v1348 = vunpack.c.l.b16 %v821
          %v1349 = vunpack.c.l.b16 %v822
          %v1350 = vunpack.c.l.b16 %v823
          %v1351 = vunpack.c.l.b16 %v824
          %v1352 = vpack.c.b16 %v1349, %v1348
          %v1353 = vpack.c.b16 %v1351, %v1350
          %v1357 = vsel %vm869, %v1057, 0
          %v1360 = vsel %vm869, %v1058, 0
          %v1363 = vsel %vm869, %v1059, 0
          %v1366 = vsel %vm869, %v1060, 0
          %1368 = vmatpush.bf16.msra.mxu0 0
          %1369 = vmatpush.bf16.msra.mxu0 0
          %1370 = vmatpush.bf16.msra.mxu0 0
          %1371 = vmatpush.bf16.msra.mxu0 0
          %1372 = vmatpush.bf16.msra.mxu0 0
          %1373 = vmatpush.bf16.msra.mxu0 0
          %1374 = vmatpush.bf16.msra.mxu0 %v1353
          %1375 = vmatpush.bf16.msra.mxu0 %v1352
          %1376 = vmatmul.bf16.gmra.mxu0 %v1357
          %v1377 = vpop.f32.mrf.mxu0
          %v1378 = vadd.f32 %v1325, %v1377
          %v1379 = vpop.f32.mrf.mxu0
          %v1380 = vadd.f32 %v1327, %v1379
          %1381 = vmatmul.bf16.gmra.mxu0 %v1360
          %v1382 = vpop.f32.mrf.mxu0
          %v1383 = vadd.f32 %v1330, %v1382
          %v1384 = vpop.f32.mrf.mxu0
          %v1385 = vadd.f32 %v1332, %v1384
          %1386 = vmatmul.bf16.gmra.mxu0 %v1363
          %v1387 = vpop.f32.mrf.mxu0
          %v1388 = vadd.f32 %v1335, %v1387
          %v1389 = vpop.f32.mrf.mxu0
          %v1390 = vadd.f32 %v1337, %v1389
          %1391 = vmatmul.bf16.gmra.mxu0 %v1366
          %v1392 = vpop.f32.mrf.mxu0
          %v1393 = vadd.f32 %v1340, %v1392
          %v1394 = vpop.f32.mrf.mxu0
          %v1395 = vadd.f32 %v1342, %v1394
          %1396 = vdwg.mxu0
          %1397 = vrot.lane.b32.xlu0 %v857, 64
          %v1398 = vpop.permute.xlu0 %1397
          %1399 = vrot.lane.b32.xlu0 %v858, 64
          %v1400 = vpop.permute.xlu0 %1399
          %1401 = vrot.lane.b32.xlu0 %v859, 64
          %v1402 = vpop.permute.xlu0 %1401
          %1403 = vrot.lane.b32.xlu0 %v860, 64
          %v1404 = vpop.permute.xlu0 %1403
          %1405 = vrot.lane.b32.xlu0 %v861, 64
          %v1406 = vpop.permute.xlu0 %1405
          %1407 = vrot.lane.b32.xlu0 %v862, 64
          %v1408 = vpop.permute.xlu0 %1407
          %1409 = vrot.lane.b32.xlu0 %v863, 64
          %v1410 = vpop.permute.xlu0 %1409
          %1411 = vrot.lane.b32.xlu0 %v864, 64
          %v1412 = vpop.permute.xlu0 %1411
          %v1414 = vsel %vm869, %v1398, 0
          %v1417 = vsel %vm869, %v1400, 0
          %v1420 = vsel %vm869, %v1402, 0
          %v1423 = vsel %vm869, %v1404, 0
          %v1426 = vsel %vm869, %v1406, 0
          %v1429 = vsel %vm869, %v1408, 0
          %v1432 = vsel %vm869, %v1410, 0
          %v1435 = vsel %vm869, %v1412, 0
          %1437 = vmatpush.bf16.xpose.msra.mxu0 0
          %1438 = vmatpush.bf16.xpose.msra.mxu0 0
          %1439 = vmatpush.bf16.xpose.msra.mxu0 0
          %1440 = vmatpush.bf16.xpose.msra.mxu0 0
          %1441 = vmatpush.bf16.xpose.msra.mxu0 %v1435
          %1442 = vmatpush.bf16.xpose.msra.mxu0 %v1432
          %1443 = vmatpush.bf16.xpose.msra.mxu0 %v1429
          %1444 = vmatpush.bf16.xpose.msra.mxu0 %v1426
          %1445 = vmatmul.bf16.gmra.mxu0 %v1414
          %v1446 = vpop.f32.mrf.mxu0
          %v1447 = vadd.f32 0.0, %v1446
          %v1448 = vpop.f32.mrf.mxu0
          %v1449 = vadd.f32 0.0, %v1448
          %1450 = vmatmul.bf16.gmra.mxu0 %v1417
          %v1451 = vpop.f32.mrf.mxu0
          %v1452 = vadd.f32 0.0, %v1451
          %v1453 = vpop.f32.mrf.mxu0
          %v1454 = vadd.f32 0.0, %v1453
          %1455 = vmatmul.bf16.gmra.mxu0 %v1420
          %v1456 = vpop.f32.mrf.mxu0
          %v1457 = vadd.f32 0.0, %v1456
          %v1458 = vpop.f32.mrf.mxu0
          %v1459 = vadd.f32 0.0, %v1458
          %1460 = vmatmul.bf16.gmra.mxu0 %v1423
          %v1461 = vpop.f32.mrf.mxu0
          %v1462 = vadd.f32 0.0, %v1461
          %v1463 = vpop.f32.mrf.mxu0
          %v1464 = vadd.f32 0.0, %v1463
          %1465 = vdwg.mxu0
          %v1466 = vsel %vm923, %v1447, -inf
          %1467 = vmax.xlane.f32.xlu0 %v1466
          %v1468 = vpop.xlane.xlu0 %1467
          %v1469 = vsel %vm923, %v1449, -inf
          %1470 = vmax.xlane.f32.xlu0 %v1469
          %v1471 = vpop.xlane.xlu0 %1470
          %v1472 = vsel %vm923, %v1452, -inf
          %1473 = vmax.xlane.f32.xlu0 %v1472
          %v1474 = vpop.xlane.xlu0 %1473
          %v1475 = vsel %vm923, %v1454, -inf
          %1476 = vmax.xlane.f32.xlu0 %v1475
          %v1477 = vpop.xlane.xlu0 %1476
          %v1478 = vsel %vm923, %v1457, -inf
          %1479 = vmax.xlane.f32.xlu0 %v1478
          %v1480 = vpop.xlane.xlu0 %1479
          %v1481 = vsel %vm923, %v1459, -inf
          %1482 = vmax.xlane.f32.xlu0 %v1481
          %v1483 = vpop.xlane.xlu0 %1482
          %v1484 = vsel %vm923, %v1462, -inf
          %1485 = vmax.xlane.f32.xlu0 %v1484
          %v1486 = vpop.xlane.xlu0 %1485
          %v1487 = vsel %vm923, %v1464, -inf
          %1488 = vmax.xlane.f32.xlu0 %v1487
          %v1489 = vpop.xlane.xlu0 %1488
          %v1490 = vsub.f32 %v1447, %v1468
          %v1491 = vsub.f32 %v1449, %v1471
          %v1492 = vsub.f32 %v1452, %v1474
          %v1493 = vsub.f32 %v1454, %v1477
          %v1494 = vsub.f32 %v1457, %v1480
          %v1495 = vsub.f32 %v1459, %v1483
          %v1496 = vsub.f32 %v1462, %v1486
          %v1497 = vsub.f32 %v1464, %v1489
          %v1498 = vmul.f32 %v1490, 1.442695
          %v1499 = vpow.pop %v1498
          %v1500 = vmul.f32 %v1491, 1.442695
          %v1501 = vpow.pop %v1500
          %v1502 = vmul.f32 %v1492, 1.442695
          %v1503 = vpow.pop %v1502
          %v1504 = vmul.f32 %v1493, 1.442695
          %v1505 = vpow.pop %v1504
          %v1506 = vmul.f32 %v1494, 1.442695
          %v1507 = vpow.pop %v1506
          %v1508 = vmul.f32 %v1495, 1.442695
          %v1509 = vpow.pop %v1508
          %v1510 = vmul.f32 %v1496, 1.442695
          %v1511 = vpow.pop %v1510
          %v1512 = vmul.f32 %v1497, 1.442695
          %v1513 = vpow.pop %v1512
          %v1514 = vsel %vm923, %v1499, 0.0
          %1515 = vadd.xlane.f32.xlu0 %v1514
          %v1516 = vpop.xlane.xlu0 %1515
          %v1517 = vsel %vm923, %v1501, 0.0
          %1518 = vadd.xlane.f32.xlu0 %v1517
          %v1519 = vpop.xlane.xlu0 %1518
          %v1520 = vsel %vm923, %v1503, 0.0
          %1521 = vadd.xlane.f32.xlu0 %v1520
          %v1522 = vpop.xlane.xlu0 %1521
          %v1523 = vsel %vm923, %v1505, 0.0
          %1524 = vadd.xlane.f32.xlu0 %v1523
          %v1525 = vpop.xlane.xlu0 %1524
          %v1526 = vsel %vm923, %v1507, 0.0
          %1527 = vadd.xlane.f32.xlu0 %v1526
          %v1528 = vpop.xlane.xlu0 %1527
          %v1529 = vsel %vm923, %v1509, 0.0
          %1530 = vadd.xlane.f32.xlu0 %v1529
          %v1531 = vpop.xlane.xlu0 %1530
          %v1532 = vsel %vm923, %v1511, 0.0
          %1533 = vadd.xlane.f32.xlu0 %v1532
          %v1534 = vpop.xlane.xlu0 %1533
          %v1535 = vsel %vm923, %v1513, 0.0
          %1536 = vadd.xlane.f32.xlu0 %v1535
          %v1537 = vpop.xlane.xlu0 %1536
          %v1538 = vpack.c.bf16 %v1501, %v1499
          %v1539 = vpack.c.bf16 %v1505, %v1503
          %v1540 = vpack.c.bf16 %v1509, %v1507
          %v1541 = vpack.c.bf16 %v1513, %v1511
          %1542 = vrot.lane.b32.xlu0 %v865, 64
          %v1543 = vpop.permute.xlu0 %1542
          %1544 = vrot.lane.b32.xlu0 %v866, 64
          %v1545 = vpop.permute.xlu0 %1544
          %1546 = vrot.lane.b32.xlu0 %v867, 64
          %v1547 = vpop.permute.xlu0 %1546
          %1548 = vrot.lane.b32.xlu0 %v868, 64
          %v1549 = vpop.permute.xlu0 %1548
          %v1555 = vsel %vm923, %v1538, 0
          %v1558 = vsel %vm923, %v1539, 0
          %v1561 = vsel %vm923, %v1540, 0
          %v1564 = vsel %vm923, %v1541, 0
          %1566 = vmatpush.bf16.msra.mxu0 0
          %1567 = vmatpush.bf16.msra.mxu0 0
          %1568 = vmatpush.bf16.msra.mxu0 0
          %1569 = vmatpush.bf16.msra.mxu0 0
          %1570 = vmatpush.bf16.msra.mxu0 %v1549
          %1571 = vmatpush.bf16.msra.mxu0 %v1547
          %1572 = vmatpush.bf16.msra.mxu0 %v1545
          %1573 = vmatpush.bf16.msra.mxu0 %v1543
          %1574 = vmatmul.bf16.gmra.mxu0 %v1555
          %v1575 = vpop.f32.mrf.mxu0
          %v1576 = vadd.f32 0.0, %v1575
          %v1577 = vpop.f32.mrf.mxu0
          %v1578 = vadd.f32 0.0, %v1577
          %1579 = vmatmul.bf16.gmra.mxu0 %v1558
          %v1580 = vpop.f32.mrf.mxu0
          %v1581 = vadd.f32 0.0, %v1580
          %v1582 = vpop.f32.mrf.mxu0
          %v1583 = vadd.f32 0.0, %v1582
          %1584 = vmatmul.bf16.gmra.mxu0 %v1561
          %v1585 = vpop.f32.mrf.mxu0
          %v1586 = vadd.f32 0.0, %v1585
          %v1587 = vpop.f32.mrf.mxu0
          %v1588 = vadd.f32 0.0, %v1587
          %1589 = vmatmul.bf16.gmra.mxu0 %v1564
          %v1590 = vpop.f32.mrf.mxu0
          %v1591 = vadd.f32 0.0, %v1590
          %v1592 = vpop.f32.mrf.mxu0
          %v1593 = vadd.f32 0.0, %v1592
          %1594 = vdwg.mxu0
          %v1595 = vrcp.pop %v1516
          %v1596 = vrcp.pop %v1519
          %v1597 = vrcp.pop %v1522
          %v1598 = vrcp.pop %v1525
          %v1599 = vrcp.pop %v1528
          %v1600 = vrcp.pop %v1531
          %v1601 = vrcp.pop %v1534
          %v1602 = vrcp.pop %v1537
          %v1603 = vmul.f32 %v1576, %v1595
          %v1604 = vmul.f32 %v1578, %v1596
          %v1605 = vmul.f32 %v1581, %v1597
          %v1606 = vmul.f32 %v1583, %v1598
          %v1607 = vmul.f32 %v1586, %v1599
          %v1608 = vmul.f32 %v1588, %v1600
          %v1609 = vmul.f32 %v1591, %v1601
          %v1610 = vmul.f32 %v1593, %v1602
          %v1611 = vpack.c.bf16 %v1604, %v1603
          %v1612 = vpack.c.bf16 %v1606, %v1605
          %v1613 = vpack.c.bf16 %v1608, %v1607
          %v1614 = vpack.c.bf16 %v1610, %v1609
          %v1619 = vunpack.c.l.b16 %v829
          %v1620 = vunpack.c.l.b16 %v830
          %v1621 = vunpack.c.l.b16 %v831
          %v1622 = vunpack.c.l.b16 %v832
          %v1623 = vpack.c.b16 %v1620, %v1619
          %v1624 = vpack.c.b16 %v1622, %v1621
          %v1628 = vsel %vm869, %v1611, 0
          %v1631 = vsel %vm869, %v1612, 0
          %v1634 = vsel %vm869, %v1613, 0
          %v1637 = vsel %vm869, %v1614, 0
          %1639 = vmatpush.bf16.msra.mxu0 0
          %1640 = vmatpush.bf16.msra.mxu0 0
          %1641 = vmatpush.bf16.msra.mxu0 0
          %1642 = vmatpush.bf16.msra.mxu0 0
          %1643 = vmatpush.bf16.msra.mxu0 0
          %1644 = vmatpush.bf16.msra.mxu0 0
          %1645 = vmatpush.bf16.msra.mxu0 %v1624
          %1646 = vmatpush.bf16.msra.mxu0 %v1623
          %1647 = vmatmul.bf16.gmra.mxu0 %v1628
          %v1648 = vpop.f32.mrf.mxu0
          %v1649 = vadd.f32 0.0, %v1648
          %v1650 = vpop.f32.mrf.mxu0
          %v1651 = vadd.f32 0.0, %v1650
          %1652 = vmatmul.bf16.gmra.mxu0 %v1631
          %v1653 = vpop.f32.mrf.mxu0
          %v1654 = vadd.f32 0.0, %v1653
          %v1655 = vpop.f32.mrf.mxu0
          %v1656 = vadd.f32 0.0, %v1655
          %1657 = vmatmul.bf16.gmra.mxu0 %v1634
          %v1658 = vpop.f32.mrf.mxu0
          %v1659 = vadd.f32 0.0, %v1658
          %v1660 = vpop.f32.mrf.mxu0
          %v1661 = vadd.f32 0.0, %v1660
          %1662 = vmatmul.bf16.gmra.mxu0 %v1637
          %v1663 = vpop.f32.mrf.mxu0
          %v1664 = vadd.f32 0.0, %v1663
          %v1665 = vpop.f32.mrf.mxu0
          %v1666 = vadd.f32 0.0, %v1665
          %1667 = vdwg.mxu0
          %v1668 = vadd.f32 %v1378, %v1649
          %v1669 = vadd.f32 %v1380, %v1651
          %v1670 = vadd.f32 %v1383, %v1654
          %v1671 = vadd.f32 %v1385, %v1656
          %v1672 = vadd.f32 %v1388, %v1659
          %v1673 = vadd.f32 %v1390, %v1661
          %v1674 = vadd.f32 %v1393, %v1664
          %v1675 = vadd.f32 %v1395, %v1666
          %1676 = vrot.lane.b32.xlu0 %v857, 32
          %v1677 = vpop.permute.xlu0 %1676
          %1678 = vrot.lane.b32.xlu0 %v858, 32
          %v1679 = vpop.permute.xlu0 %1678
          %1680 = vrot.lane.b32.xlu0 %v859, 32
          %v1681 = vpop.permute.xlu0 %1680
          %1682 = vrot.lane.b32.xlu0 %v860, 32
          %v1683 = vpop.permute.xlu0 %1682
          %1684 = vrot.lane.b32.xlu0 %v861, 32
          %v1685 = vpop.permute.xlu0 %1684
          %1686 = vrot.lane.b32.xlu0 %v862, 32
          %v1687 = vpop.permute.xlu0 %1686
          %1688 = vrot.lane.b32.xlu0 %v863, 32
          %v1689 = vpop.permute.xlu0 %1688
          %1690 = vrot.lane.b32.xlu0 %v864, 32
          %v1691 = vpop.permute.xlu0 %1690
          %v1693 = vsel %vm869, %v1677, 0
          %v1696 = vsel %vm869, %v1679, 0
          %v1699 = vsel %vm869, %v1681, 0
          %v1702 = vsel %vm869, %v1683, 0
          %v1705 = vsel %vm869, %v1685, 0
          %v1708 = vsel %vm869, %v1687, 0
          %v1711 = vsel %vm869, %v1689, 0
          %v1714 = vsel %vm869, %v1691, 0
          %1716 = vmatpush.bf16.xpose.msra.mxu0 0
          %1717 = vmatpush.bf16.xpose.msra.mxu0 0
          %1718 = vmatpush.bf16.xpose.msra.mxu0 0
          %1719 = vmatpush.bf16.xpose.msra.mxu0 0
          %1720 = vmatpush.bf16.xpose.msra.mxu0 %v1714
          %1721 = vmatpush.bf16.xpose.msra.mxu0 %v1711
          %1722 = vmatpush.bf16.xpose.msra.mxu0 %v1708
          %1723 = vmatpush.bf16.xpose.msra.mxu0 %v1705
          %1724 = vmatmul.bf16.gmra.mxu0 %v1693
          %v1725 = vpop.f32.mrf.mxu0
          %v1726 = vadd.f32 0.0, %v1725
          %v1727 = vpop.f32.mrf.mxu0
          %v1728 = vadd.f32 0.0, %v1727
          %1729 = vmatmul.bf16.gmra.mxu0 %v1696
          %v1730 = vpop.f32.mrf.mxu0
          %v1731 = vadd.f32 0.0, %v1730
          %v1732 = vpop.f32.mrf.mxu0
          %v1733 = vadd.f32 0.0, %v1732
          %1734 = vmatmul.bf16.gmra.mxu0 %v1699
          %v1735 = vpop.f32.mrf.mxu0
          %v1736 = vadd.f32 0.0, %v1735
          %v1737 = vpop.f32.mrf.mxu0
          %v1738 = vadd.f32 0.0, %v1737
          %1739 = vmatmul.bf16.gmra.mxu0 %v1702
          %v1740 = vpop.f32.mrf.mxu0
          %v1741 = vadd.f32 0.0, %v1740
          %v1742 = vpop.f32.mrf.mxu0
          %v1743 = vadd.f32 0.0, %v1742
          %1744 = vdwg.mxu0
          %v1745 = vsel %vm923, %v1726, -inf
          %1746 = vmax.xlane.f32.xlu0 %v1745
          %v1747 = vpop.xlane.xlu0 %1746
          %v1748 = vsel %vm923, %v1728, -inf
          %1749 = vmax.xlane.f32.xlu0 %v1748
          %v1750 = vpop.xlane.xlu0 %1749
          %v1751 = vsel %vm923, %v1731, -inf
          %1752 = vmax.xlane.f32.xlu0 %v1751
          %v1753 = vpop.xlane.xlu0 %1752
          %v1754 = vsel %vm923, %v1733, -inf
          %1755 = vmax.xlane.f32.xlu0 %v1754
          %v1756 = vpop.xlane.xlu0 %1755
          %v1757 = vsel %vm923, %v1736, -inf
          %1758 = vmax.xlane.f32.xlu0 %v1757
          %v1759 = vpop.xlane.xlu0 %1758
          %v1760 = vsel %vm923, %v1738, -inf
          %1761 = vmax.xlane.f32.xlu0 %v1760
          %v1762 = vpop.xlane.xlu0 %1761
          %v1763 = vsel %vm923, %v1741, -inf
          %1764 = vmax.xlane.f32.xlu0 %v1763
          %v1765 = vpop.xlane.xlu0 %1764
          %v1766 = vsel %vm923, %v1743, -inf
          %1767 = vmax.xlane.f32.xlu0 %v1766
          %v1768 = vpop.xlane.xlu0 %1767
          %v1769 = vsub.f32 %v1726, %v1747
          %v1770 = vsub.f32 %v1728, %v1750
          %v1771 = vsub.f32 %v1731, %v1753
          %v1772 = vsub.f32 %v1733, %v1756
          %v1773 = vsub.f32 %v1736, %v1759
          %v1774 = vsub.f32 %v1738, %v1762
          %v1775 = vsub.f32 %v1741, %v1765
          %v1776 = vsub.f32 %v1743, %v1768
          %v1777 = vmul.f32 %v1769, 1.442695
          %v1778 = vpow.pop %v1777
          %v1779 = vmul.f32 %v1770, 1.442695
          %v1780 = vpow.pop %v1779
          %v1781 = vmul.f32 %v1771, 1.442695
          %v1782 = vpow.pop %v1781
          %v1783 = vmul.f32 %v1772, 1.442695
          %v1784 = vpow.pop %v1783
          %v1785 = vmul.f32 %v1773, 1.442695
          %v1786 = vpow.pop %v1785
          %v1787 = vmul.f32 %v1774, 1.442695
          %v1788 = vpow.pop %v1787
          %v1789 = vmul.f32 %v1775, 1.442695
          %v1790 = vpow.pop %v1789
          %v1791 = vmul.f32 %v1776, 1.442695
          %v1792 = vpow.pop %v1791
          %v1793 = vsel %vm923, %v1778, 0.0
          %1794 = vadd.xlane.f32.xlu0 %v1793
          %v1795 = vpop.xlane.xlu0 %1794
          %v1796 = vsel %vm923, %v1780, 0.0
          %1797 = vadd.xlane.f32.xlu0 %v1796
          %v1798 = vpop.xlane.xlu0 %1797
          %v1799 = vsel %vm923, %v1782, 0.0
          %1800 = vadd.xlane.f32.xlu0 %v1799
          %v1801 = vpop.xlane.xlu0 %1800
          %v1802 = vsel %vm923, %v1784, 0.0
          %1803 = vadd.xlane.f32.xlu0 %v1802
          %v1804 = vpop.xlane.xlu0 %1803
          %v1805 = vsel %vm923, %v1786, 0.0
          %1806 = vadd.xlane.f32.xlu0 %v1805
          %v1807 = vpop.xlane.xlu0 %1806
          %v1808 = vsel %vm923, %v1788, 0.0
          %1809 = vadd.xlane.f32.xlu0 %v1808
          %v1810 = vpop.xlane.xlu0 %1809
          %v1811 = vsel %vm923, %v1790, 0.0
          %1812 = vadd.xlane.f32.xlu0 %v1811
          %v1813 = vpop.xlane.xlu0 %1812
          %v1814 = vsel %vm923, %v1792, 0.0
          %1815 = vadd.xlane.f32.xlu0 %v1814
          %v1816 = vpop.xlane.xlu0 %1815
          %v1817 = vpack.c.bf16 %v1780, %v1778
          %v1818 = vpack.c.bf16 %v1784, %v1782
          %v1819 = vpack.c.bf16 %v1788, %v1786
          %v1820 = vpack.c.bf16 %v1792, %v1790
          %1821 = vrot.lane.b32.xlu0 %v865, 32
          %v1822 = vpop.permute.xlu0 %1821
          %1823 = vrot.lane.b32.xlu0 %v866, 32
          %v1824 = vpop.permute.xlu0 %1823
          %1825 = vrot.lane.b32.xlu0 %v867, 32
          %v1826 = vpop.permute.xlu0 %1825
          %1827 = vrot.lane.b32.xlu0 %v868, 32
          %v1828 = vpop.permute.xlu0 %1827
          %v1834 = vsel %vm923, %v1817, 0
          %v1837 = vsel %vm923, %v1818, 0
          %v1840 = vsel %vm923, %v1819, 0
          %v1843 = vsel %vm923, %v1820, 0
          %1845 = vmatpush.bf16.msra.mxu0 0
          %1846 = vmatpush.bf16.msra.mxu0 0
          %1847 = vmatpush.bf16.msra.mxu0 0
          %1848 = vmatpush.bf16.msra.mxu0 0
          %1849 = vmatpush.bf16.msra.mxu0 %v1828
          %1850 = vmatpush.bf16.msra.mxu0 %v1826
          %1851 = vmatpush.bf16.msra.mxu0 %v1824
          %1852 = vmatpush.bf16.msra.mxu0 %v1822
          %1853 = vmatmul.bf16.gmra.mxu0 %v1834
          %v1854 = vpop.f32.mrf.mxu0
          %v1855 = vadd.f32 0.0, %v1854
          %v1856 = vpop.f32.mrf.mxu0
          %v1857 = vadd.f32 0.0, %v1856
          %1858 = vmatmul.bf16.gmra.mxu0 %v1837
          %v1859 = vpop.f32.mrf.mxu0
          %v1860 = vadd.f32 0.0, %v1859
          %v1861 = vpop.f32.mrf.mxu0
          %v1862 = vadd.f32 0.0, %v1861
          %1863 = vmatmul.bf16.gmra.mxu0 %v1840
          %v1864 = vpop.f32.mrf.mxu0
          %v1865 = vadd.f32 0.0, %v1864
          %v1866 = vpop.f32.mrf.mxu0
          %v1867 = vadd.f32 0.0, %v1866
          %1868 = vmatmul.bf16.gmra.mxu0 %v1843
          %v1869 = vpop.f32.mrf.mxu0
          %v1870 = vadd.f32 0.0, %v1869
          %v1871 = vpop.f32.mrf.mxu0
          %v1872 = vadd.f32 0.0, %v1871
          %1873 = vdwg.mxu0
          %v1874 = vrcp.pop %v1795
          %v1875 = vrcp.pop %v1798
          %v1876 = vrcp.pop %v1801
          %v1877 = vrcp.pop %v1804
          %v1878 = vrcp.pop %v1807
          %v1879 = vrcp.pop %v1810
          %v1880 = vrcp.pop %v1813
          %v1881 = vrcp.pop %v1816
          %v1882 = vmul.f32 %v1855, %v1874
          %v1883 = vmul.f32 %v1857, %v1875
          %v1884 = vmul.f32 %v1860, %v1876
          %v1885 = vmul.f32 %v1862, %v1877
          %v1886 = vmul.f32 %v1865, %v1878
          %v1887 = vmul.f32 %v1867, %v1879
          %v1888 = vmul.f32 %v1870, %v1880
          %v1889 = vmul.f32 %v1872, %v1881
          %v1890 = vpack.c.bf16 %v1883, %v1882
          %v1891 = vpack.c.bf16 %v1885, %v1884
          %v1892 = vpack.c.bf16 %v1887, %v1886
          %v1893 = vpack.c.bf16 %v1889, %v1888
          %v1898 = vunpack.c.l.b16 %v833
          %v1899 = vunpack.c.l.b16 %v834
          %v1900 = vunpack.c.l.b16 %v835
          %v1901 = vunpack.c.l.b16 %v836
          %v1902 = vpack.c.b16 %v1899, %v1898
          %v1903 = vpack.c.b16 %v1901, %v1900
          %v1907 = vsel %vm869, %v1890, 0
          %v1910 = vsel %vm869, %v1891, 0
          %v1913 = vsel %vm869, %v1892, 0
          %v1916 = vsel %vm869, %v1893, 0
          %1918 = vmatpush.bf16.msra.mxu0 0
          %1919 = vmatpush.bf16.msra.mxu0 0
          %1920 = vmatpush.bf16.msra.mxu0 0
          %1921 = vmatpush.bf16.msra.mxu0 0
          %1922 = vmatpush.bf16.msra.mxu0 0
          %1923 = vmatpush.bf16.msra.mxu0 0
          %1924 = vmatpush.bf16.msra.mxu0 %v1903
          %1925 = vmatpush.bf16.msra.mxu0 %v1902
          %1926 = vmatmul.bf16.gmra.mxu0 %v1907
          %v1927 = vpop.f32.mrf.mxu0
          %v1928 = vadd.f32 0.0, %v1927
          %v1929 = vpop.f32.mrf.mxu0
          %v1930 = vadd.f32 0.0, %v1929
          %1931 = vmatmul.bf16.gmra.mxu0 %v1910
          %v1932 = vpop.f32.mrf.mxu0
          %v1933 = vadd.f32 0.0, %v1932
          %v1934 = vpop.f32.mrf.mxu0
          %v1935 = vadd.f32 0.0, %v1934
          %1936 = vmatmul.bf16.gmra.mxu0 %v1913
          %v1937 = vpop.f32.mrf.mxu0
          %v1938 = vadd.f32 0.0, %v1937
          %v1939 = vpop.f32.mrf.mxu0
          %v1940 = vadd.f32 0.0, %v1939
          %1941 = vmatmul.bf16.gmra.mxu0 %v1916
          %v1942 = vpop.f32.mrf.mxu0
          %v1943 = vadd.f32 0.0, %v1942
          %v1944 = vpop.f32.mrf.mxu0
          %v1945 = vadd.f32 0.0, %v1944
          %1946 = vdwg.mxu0
          %v1947 = vadd.f32 %v1668, %v1928
          %v1948 = vadd.f32 %v1669, %v1930
          %v1949 = vadd.f32 %v1670, %v1933
          %v1950 = vadd.f32 %v1671, %v1935
          %v1951 = vadd.f32 %v1672, %v1938
          %v1952 = vadd.f32 %v1673, %v1940
          %v1953 = vadd.f32 %v1674, %v1943
          %v1954 = vadd.f32 %v1675, %v1945
          %v1955 = vadd.f32 %v359, %v548
          %v1956 = vadd.f32 %v360, %v550
          %v1957 = vadd.f32 %v361, %v553
          %v1958 = vadd.f32 %v362, %v555
          %v1959 = vadd.f32 %v363, %v558
          %v1960 = vadd.f32 %v364, %v560
          %v1961 = vadd.f32 %v365, %v563
          %v1962 = vadd.f32 %v366, %v565
          %v1963 = vadd.f32 %v1955, %v1947
          %v1964 = vadd.f32 %v1956, %v1948
          %v1965 = vadd.f32 %v1957, %v1949
          %v1966 = vadd.f32 %v1958, %v1950
          %v1967 = vadd.f32 %v1959, %v1951
          %v1968 = vadd.f32 %v1960, %v1952
          %v1969 = vadd.f32 %v1961, %v1953
          %v1970 = vadd.f32 %v1962, %v1954
          %1971 = vst [vmem:[%s319] sm:$0xff] %v1963
          %1972 = vst [vmem:[%s319 + $0x8] sm:$0xff] %v1964
          %1973 = vst [vmem:[%s319 + $0x10] sm:$0xff] %v1965
          %1974 = vst [vmem:[%s319 + $0x18] sm:$0xff] %v1966
          %1975 = vst [vmem:[%s319 + $0x20] sm:$0xff] %v1967
          %1976 = vst [vmem:[%s319 + $0x28] sm:$0xff] %v1968
          %1977 = vst [vmem:[%s319 + $0x30] sm:$0xff] %v1969
          %1978 = vst [vmem:[%s319 + $0x38] sm:$0xff] %v1970
          %s1979 = ssub.s32 1, %s837
          %s1980 = smul.u32 %s1979, 16
          %s1981 = smul.addr %s1980, 8
          %s1982 = scalar_lea.vmem [#allocation2], %s1981
          %v1983 = vld [vmem:[%s1982] sm:$0xff]
          %v1984 = vld [vmem:[%s1982 + $0x8] sm:$0xff]
          %v1985 = vld [vmem:[%s1982 + $0x10] sm:$0xff]
          %v1986 = vld [vmem:[%s1982 + $0x18] sm:$0xff]
          %v1987 = vld [vmem:[%s1982 + $0x20] sm:$0xff]
          %v1988 = vld [vmem:[%s1982 + $0x28] sm:$0xff]
          %v1989 = vld [vmem:[%s1982 + $0x30] sm:$0xff]
          %v1990 = vld [vmem:[%s1982 + $0x38] sm:$0xff]
          %v1991 = vld [vmem:[%s1982 + $0x40] sm:$0xff]
          %v1992 = vld [vmem:[%s1982 + $0x48] sm:$0xff]
          %v1993 = vld [vmem:[%s1982 + $0x50] sm:$0xff]
          %v1994 = vld [vmem:[%s1982 + $0x58] sm:$0xff]
          %v1995 = vld [vmem:[%s1982 + $0x60] sm:$0xff]
          %v1996 = vld [vmem:[%s1982 + $0x68] sm:$0xff]
          %v1997 = vld [vmem:[%s1982 + $0x70] sm:$0xff]
          %v1998 = vld [vmem:[%s1982 + $0x78] sm:$0xff]
          %v1999 = vpack.c.bf16 %v521, %v519
          %v2000 = vpack.c.bf16 %v526, %v524
          %v2001 = vpack.c.bf16 %v531, %v529
          %v2002 = vpack.c.bf16 %v536, %v534
          %v2003 = vpack.c.bf16 %v1985, %v1983
          %v2004 = vpack.c.bf16 %v1989, %v1987
          %v2005 = vpack.c.bf16 %v1993, %v1991
          %v2006 = vpack.c.bf16 %v1997, %v1995
          %v2007 = vpack.c.bf16 %v1986, %v1984
          %v2008 = vpack.c.bf16 %v1990, %v1988
          %v2009 = vpack.c.bf16 %v1994, %v1992
          %v2010 = vpack.c.bf16 %v1998, %v1996
          %v2012 = vsel %vm869, %v1999, 0
          %v2015 = vsel %vm869, %v2000, 0
          %v2018 = vsel %vm869, %v2001, 0
          %v2021 = vsel %vm869, %v2002, 0
          %v2024 = vsel %vm869, %v2003, 0
          %v2027 = vsel %vm869, %v2004, 0
          %v2030 = vsel %vm869, %v2005, 0
          %v2033 = vsel %vm869, %v2006, 0
          %2035 = vmatpush.bf16.xpose.msra.mxu0 0
          %2036 = vmatpush.bf16.xpose.msra.mxu0 0
          %2037 = vmatpush.bf16.xpose.msra.mxu0 0
          %2038 = vmatpush.bf16.xpose.msra.mxu0 0
          %2039 = vmatpush.bf16.xpose.msra.mxu0 %v2033
          %2040 = vmatpush.bf16.xpose.msra.mxu0 %v2030
          %2041 = vmatpush.bf16.xpose.msra.mxu0 %v2027
          %2042 = vmatpush.bf16.xpose.msra.mxu0 %v2024
          %2043 = vmatmul.bf16.gmra.mxu0 %v2012
          %v2044 = vpop.f32.mrf.mxu0
          %v2045 = vadd.f32 0.0, %v2044
          %v2046 = vpop.f32.mrf.mxu0
          %v2047 = vadd.f32 0.0, %v2046
          %2048 = vmatmul.bf16.gmra.mxu0 %v2015
          %v2049 = vpop.f32.mrf.mxu0
          %v2050 = vadd.f32 0.0, %v2049
          %v2051 = vpop.f32.mrf.mxu0
          %v2052 = vadd.f32 0.0, %v2051
          %2053 = vmatmul.bf16.gmra.mxu0 %v2018
          %v2054 = vpop.f32.mrf.mxu0
          %v2055 = vadd.f32 0.0, %v2054
          %v2056 = vpop.f32.mrf.mxu0
          %v2057 = vadd.f32 0.0, %v2056
          %2058 = vmatmul.bf16.gmra.mxu0 %v2021
          %v2059 = vpop.f32.mrf.mxu0
          %v2060 = vadd.f32 0.0, %v2059
          %v2061 = vpop.f32.mrf.mxu0
          %v2062 = vadd.f32 0.0, %v2061
          %2063 = vdwg.mxu0
          %v2064 = vsel %vm923, %v2045, -inf
          %2065 = vmax.xlane.f32.xlu0 %v2064
          %v2066 = vpop.xlane.xlu0 %2065
          %v2067 = vsel %vm923, %v2047, -inf
          %2068 = vmax.xlane.f32.xlu0 %v2067
          %v2069 = vpop.xlane.xlu0 %2068
          %v2070 = vsel %vm923, %v2050, -inf
          %2071 = vmax.xlane.f32.xlu0 %v2070
          %v2072 = vpop.xlane.xlu0 %2071
          %v2073 = vsel %vm923, %v2052, -inf
          %2074 = vmax.xlane.f32.xlu0 %v2073
          %v2075 = vpop.xlane.xlu0 %2074
          %v2076 = vsel %vm923, %v2055, -inf
          %2077 = vmax.xlane.f32.xlu0 %v2076
          %v2078 = vpop.xlane.xlu0 %2077
          %v2079 = vsel %vm923, %v2057, -inf
          %2080 = vmax.xlane.f32.xlu0 %v2079
          %v2081 = vpop.xlane.xlu0 %2080
          %v2082 = vsel %vm923, %v2060, -inf
          %2083 = vmax.xlane.f32.xlu0 %v2082
          %v2084 = vpop.xlane.xlu0 %2083
          %v2085 = vsel %vm923, %v2062, -inf
          %2086 = vmax.xlane.f32.xlu0 %v2085
          %v2087 = vpop.xlane.xlu0 %2086
          %v2088 = vsub.f32 %v2045, %v2066
          %v2089 = vsub.f32 %v2047, %v2069
          %v2090 = vsub.f32 %v2050, %v2072
          %v2091 = vsub.f32 %v2052, %v2075
          %v2092 = vsub.f32 %v2055, %v2078
          %v2093 = vsub.f32 %v2057, %v2081
          %v2094 = vsub.f32 %v2060, %v2084
          %v2095 = vsub.f32 %v2062, %v2087
          %v2096 = vmul.f32 %v2088, 1.442695
          %v2097 = vpow.pop %v2096
          %v2098 = vmul.f32 %v2089, 1.442695
          %v2099 = vpow.pop %v2098
          %v2100 = vmul.f32 %v2090, 1.442695
          %v2101 = vpow.pop %v2100
          %v2102 = vmul.f32 %v2091, 1.442695
          %v2103 = vpow.pop %v2102
          %v2104 = vmul.f32 %v2092, 1.442695
          %v2105 = vpow.pop %v2104
          %v2106 = vmul.f32 %v2093, 1.442695
          %v2107 = vpow.pop %v2106
          %v2108 = vmul.f32 %v2094, 1.442695
          %v2109 = vpow.pop %v2108
          %v2110 = vmul.f32 %v2095, 1.442695
          %v2111 = vpow.pop %v2110
          %v2112 = vsel %vm923, %v2097, 0.0
          %2113 = vadd.xlane.f32.xlu0 %v2112
          %v2114 = vpop.xlane.xlu0 %2113
          %v2115 = vsel %vm923, %v2099, 0.0
          %2116 = vadd.xlane.f32.xlu0 %v2115
          %v2117 = vpop.xlane.xlu0 %2116
          %v2118 = vsel %vm923, %v2101, 0.0
          %2119 = vadd.xlane.f32.xlu0 %v2118
          %v2120 = vpop.xlane.xlu0 %2119
          %v2121 = vsel %vm923, %v2103, 0.0
          %2122 = vadd.xlane.f32.xlu0 %v2121
          %v2123 = vpop.xlane.xlu0 %2122
          %v2124 = vsel %vm923, %v2105, 0.0
          %2125 = vadd.xlane.f32.xlu0 %v2124
          %v2126 = vpop.xlane.xlu0 %2125
          %v2127 = vsel %vm923, %v2107, 0.0
          %2128 = vadd.xlane.f32.xlu0 %v2127
          %v2129 = vpop.xlane.xlu0 %2128
          %v2130 = vsel %vm923, %v2109, 0.0
          %2131 = vadd.xlane.f32.xlu0 %v2130
          %v2132 = vpop.xlane.xlu0 %2131
          %v2133 = vsel %vm923, %v2111, 0.0
          %2134 = vadd.xlane.f32.xlu0 %v2133
          %v2135 = vpop.xlane.xlu0 %2134
          %v2136 = vpack.c.bf16 %v2099, %v2097
          %v2137 = vpack.c.bf16 %v2103, %v2101
          %v2138 = vpack.c.bf16 %v2107, %v2105
          %v2139 = vpack.c.bf16 %v2111, %v2109
          %v2141 = vsel %vm923, %v2136, 0
          %v2144 = vsel %vm923, %v2137, 0
          %v2147 = vsel %vm923, %v2138, 0
          %v2150 = vsel %vm923, %v2139, 0
          %2152 = vmatpush.bf16.msra.mxu0 0
          %2153 = vmatpush.bf16.msra.mxu0 0
          %2154 = vmatpush.bf16.msra.mxu0 0
          %2155 = vmatpush.bf16.msra.mxu0 0
          %2156 = vmatpush.bf16.msra.mxu0 %v2010
          %2157 = vmatpush.bf16.msra.mxu0 %v2009
          %2158 = vmatpush.bf16.msra.mxu0 %v2008
          %2159 = vmatpush.bf16.msra.mxu0 %v2007
          %2160 = vmatmul.bf16.gmra.mxu0 %v2141
          %v2161 = vpop.f32.mrf.mxu0
          %v2162 = vadd.f32 0.0, %v2161
          %v2163 = vpop.f32.mrf.mxu0
          %v2164 = vadd.f32 0.0, %v2163
          %2165 = vmatmul.bf16.gmra.mxu0 %v2144
          %v2166 = vpop.f32.mrf.mxu0
          %v2167 = vadd.f32 0.0, %v2166
          %v2168 = vpop.f32.mrf.mxu0
          %v2169 = vadd.f32 0.0, %v2168
          %2170 = vmatmul.bf16.gmra.mxu0 %v2147
          %v2171 = vpop.f32.mrf.mxu0
          %v2172 = vadd.f32 0.0, %v2171
          %v2173 = vpop.f32.mrf.mxu0
          %v2174 = vadd.f32 0.0, %v2173
          %2175 = vmatmul.bf16.gmra.mxu0 %v2150
          %v2176 = vpop.f32.mrf.mxu0
          %v2177 = vadd.f32 0.0, %v2176
          %v2178 = vpop.f32.mrf.mxu0
          %v2179 = vadd.f32 0.0, %v2178
          %2180 = vdwg.mxu0
          %v2181 = vrcp.pop %v2114
          %v2182 = vrcp.pop %v2117
          %v2183 = vrcp.pop %v2120
          %v2184 = vrcp.pop %v2123
          %v2185 = vrcp.pop %v2126
          %v2186 = vrcp.pop %v2129
          %v2187 = vrcp.pop %v2132
          %v2188 = vrcp.pop %v2135
          %v2189 = vmul.f32 %v2162, %v2181
          %v2190 = vmul.f32 %v2164, %v2182
          %v2191 = vmul.f32 %v2167, %v2183
          %v2192 = vmul.f32 %v2169, %v2184
          %v2193 = vmul.f32 %v2172, %v2185
          %v2194 = vmul.f32 %v2174, %v2186
          %v2195 = vmul.f32 %v2177, %v2187
          %v2196 = vmul.f32 %v2179, %v2188
          %v2197 = vpack.c.bf16 %v2190, %v2189
          %v2198 = vpack.c.bf16 %v2192, %v2191
          %v2199 = vpack.c.bf16 %v2194, %v2193
          %v2200 = vpack.c.bf16 %v2196, %v2195
          %2205 = vrot.lane.b32.xlu0 %v1999, 96
          %v2206 = vpop.permute.xlu0 %2205
          %2207 = vrot.lane.b32.xlu0 %v2000, 96
          %v2208 = vpop.permute.xlu0 %2207
          %2209 = vrot.lane.b32.xlu0 %v2001, 96
          %v2210 = vpop.permute.xlu0 %2209
          %2211 = vrot.lane.b32.xlu0 %v2002, 96
          %v2212 = vpop.permute.xlu0 %2211
          %2217 = vrot.lane.b32.xlu0 %v2003, 96
          %v2218 = vpop.permute.xlu0 %2217
          %2219 = vrot.lane.b32.xlu0 %v2004, 96
          %v2220 = vpop.permute.xlu0 %2219
          %2221 = vrot.lane.b32.xlu0 %v2005, 96
          %v2222 = vpop.permute.xlu0 %2221
          %2223 = vrot.lane.b32.xlu0 %v2006, 96
          %v2224 = vpop.permute.xlu0 %2223
          %v2226 = vsel %vm869, %v2206, 0
          %v2229 = vsel %vm869, %v2208, 0
          %v2232 = vsel %vm869, %v2210, 0
          %v2235 = vsel %vm869, %v2212, 0
          %v2238 = vsel %vm869, %v2218, 0
          %v2241 = vsel %vm869, %v2220, 0
          %v2244 = vsel %vm869, %v2222, 0
          %v2247 = vsel %vm869, %v2224, 0
          %2249 = vmatpush.bf16.xpose.msra.mxu0 0
          %2250 = vmatpush.bf16.xpose.msra.mxu0 0
          %2251 = vmatpush.bf16.xpose.msra.mxu0 0
          %2252 = vmatpush.bf16.xpose.msra.mxu0 0
          %2253 = vmatpush.bf16.xpose.msra.mxu0 %v2247
          %2254 = vmatpush.bf16.xpose.msra.mxu0 %v2244
          %2255 = vmatpush.bf16.xpose.msra.mxu0 %v2241
          %2256 = vmatpush.bf16.xpose.msra.mxu0 %v2238
          %2257 = vmatmul.bf16.gmra.mxu0 %v2226
          %v2258 = vpop.f32.mrf.mxu0
          %v2259 = vadd.f32 0.0, %v2258
          %v2260 = vpop.f32.mrf.mxu0
          %v2261 = vadd.f32 0.0, %v2260
          %2262 = vmatmul.bf16.gmra.mxu0 %v2229
          %v2263 = vpop.f32.mrf.mxu0
          %v2264 = vadd.f32 0.0, %v2263
          %v2265 = vpop.f32.mrf.mxu0
          %v2266 = vadd.f32 0.0, %v2265
          %2267 = vmatmul.bf16.gmra.mxu0 %v2232
          %v2268 = vpop.f32.mrf.mxu0
          %v2269 = vadd.f32 0.0, %v2268
          %v2270 = vpop.f32.mrf.mxu0
          %v2271 = vadd.f32 0.0, %v2270
          %2272 = vmatmul.bf16.gmra.mxu0 %v2235
          %v2273 = vpop.f32.mrf.mxu0
          %v2274 = vadd.f32 0.0, %v2273
          %v2275 = vpop.f32.mrf.mxu0
          %v2276 = vadd.f32 0.0, %v2275
          %2277 = vdwg.mxu0
          %v2278 = vsel %vm923, %v2259, -inf
          %2279 = vmax.xlane.f32.xlu0 %v2278
          %v2280 = vpop.xlane.xlu0 %2279
          %v2281 = vsel %vm923, %v2261, -inf
          %2282 = vmax.xlane.f32.xlu0 %v2281
          %v2283 = vpop.xlane.xlu0 %2282
          %v2284 = vsel %vm923, %v2264, -inf
          %2285 = vmax.xlane.f32.xlu0 %v2284
          %v2286 = vpop.xlane.xlu0 %2285
          %v2287 = vsel %vm923, %v2266, -inf
          %2288 = vmax.xlane.f32.xlu0 %v2287
          %v2289 = vpop.xlane.xlu0 %2288
          %v2290 = vsel %vm923, %v2269, -inf
          %2291 = vmax.xlane.f32.xlu0 %v2290
          %v2292 = vpop.xlane.xlu0 %2291
          %v2293 = vsel %vm923, %v2271, -inf
          %2294 = vmax.xlane.f32.xlu0 %v2293
          %v2295 = vpop.xlane.xlu0 %2294
          %v2296 = vsel %vm923, %v2274, -inf
          %2297 = vmax.xlane.f32.xlu0 %v2296
          %v2298 = vpop.xlane.xlu0 %2297
          %v2299 = vsel %vm923, %v2276, -inf
          %2300 = vmax.xlane.f32.xlu0 %v2299
          %v2301 = vpop.xlane.xlu0 %2300
          %v2302 = vsub.f32 %v2259, %v2280
          %v2303 = vsub.f32 %v2261, %v2283
          %v2304 = vsub.f32 %v2264, %v2286
          %v2305 = vsub.f32 %v2266, %v2289
          %v2306 = vsub.f32 %v2269, %v2292
          %v2307 = vsub.f32 %v2271, %v2295
          %v2308 = vsub.f32 %v2274, %v2298
          %v2309 = vsub.f32 %v2276, %v2301
          %v2310 = vmul.f32 %v2302, 1.442695
          %v2311 = vpow.pop %v2310
          %v2312 = vmul.f32 %v2303, 1.442695
          %v2313 = vpow.pop %v2312
          %v2314 = vmul.f32 %v2304, 1.442695
          %v2315 = vpow.pop %v2314
          %v2316 = vmul.f32 %v2305, 1.442695
          %v2317 = vpow.pop %v2316
          %v2318 = vmul.f32 %v2306, 1.442695
          %v2319 = vpow.pop %v2318
          %v2320 = vmul.f32 %v2307, 1.442695
          %v2321 = vpow.pop %v2320
          %v2322 = vmul.f32 %v2308, 1.442695
          %v2323 = vpow.pop %v2322
          %v2324 = vmul.f32 %v2309, 1.442695
          %v2325 = vpow.pop %v2324
          %v2326 = vsel %vm923, %v2311, 0.0
          %2327 = vadd.xlane.f32.xlu0 %v2326
          %v2328 = vpop.xlane.xlu0 %2327
          %v2329 = vsel %vm923, %v2313, 0.0
          %2330 = vadd.xlane.f32.xlu0 %v2329
          %v2331 = vpop.xlane.xlu0 %2330
          %v2332 = vsel %vm923, %v2315, 0.0
          %2333 = vadd.xlane.f32.xlu0 %v2332
          %v2334 = vpop.xlane.xlu0 %2333
          %v2335 = vsel %vm923, %v2317, 0.0
          %2336 = vadd.xlane.f32.xlu0 %v2335
          %v2337 = vpop.xlane.xlu0 %2336
          %v2338 = vsel %vm923, %v2319, 0.0
          %2339 = vadd.xlane.f32.xlu0 %v2338
          %v2340 = vpop.xlane.xlu0 %2339
          %v2341 = vsel %vm923, %v2321, 0.0
          %2342 = vadd.xlane.f32.xlu0 %v2341
          %v2343 = vpop.xlane.xlu0 %2342
          %v2344 = vsel %vm923, %v2323, 0.0
          %2345 = vadd.xlane.f32.xlu0 %v2344
          %v2346 = vpop.xlane.xlu0 %2345
          %v2347 = vsel %vm923, %v2325, 0.0
          %2348 = vadd.xlane.f32.xlu0 %v2347
          %v2349 = vpop.xlane.xlu0 %2348
          %v2350 = vpack.c.bf16 %v2313, %v2311
          %v2351 = vpack.c.bf16 %v2317, %v2315
          %v2352 = vpack.c.bf16 %v2321, %v2319
          %v2353 = vpack.c.bf16 %v2325, %v2323
          %2358 = vrot.lane.b32.xlu0 %v2007, 96
          %v2359 = vpop.permute.xlu0 %2358
          %2360 = vrot.lane.b32.xlu0 %v2008, 96
          %v2361 = vpop.permute.xlu0 %2360
          %2362 = vrot.lane.b32.xlu0 %v2009, 96
          %v2363 = vpop.permute.xlu0 %2362
          %2364 = vrot.lane.b32.xlu0 %v2010, 96
          %v2365 = vpop.permute.xlu0 %2364
          %v2371 = vsel %vm923, %v2350, 0
          %v2374 = vsel %vm923, %v2351, 0
          %v2377 = vsel %vm923, %v2352, 0
          %v2380 = vsel %vm923, %v2353, 0
          %2382 = vmatpush.bf16.msra.mxu0 0
          %2383 = vmatpush.bf16.msra.mxu0 0
          %2384 = vmatpush.bf16.msra.mxu0 0
          %2385 = vmatpush.bf16.msra.mxu0 0
          %2386 = vmatpush.bf16.msra.mxu0 %v2365
          %2387 = vmatpush.bf16.msra.mxu0 %v2363
          %2388 = vmatpush.bf16.msra.mxu0 %v2361
          %2389 = vmatpush.bf16.msra.mxu0 %v2359
          %2390 = vmatmul.bf16.gmra.mxu0 %v2371
          %v2391 = vpop.f32.mrf.mxu0
          %v2392 = vadd.f32 0.0, %v2391
          %v2393 = vpop.f32.mrf.mxu0
          %v2394 = vadd.f32 0.0, %v2393
          %2395 = vmatmul.bf16.gmra.mxu0 %v2374
          %v2396 = vpop.f32.mrf.mxu0
          %v2397 = vadd.f32 0.0, %v2396
          %v2398 = vpop.f32.mrf.mxu0
          %v2399 = vadd.f32 0.0, %v2398
          %2400 = vmatmul.bf16.gmra.mxu0 %v2377
          %v2401 = vpop.f32.mrf.mxu0
          %v2402 = vadd.f32 0.0, %v2401
          %v2403 = vpop.f32.mrf.mxu0
          %v2404 = vadd.f32 0.0, %v2403
          %2405 = vmatmul.bf16.gmra.mxu0 %v2380
          %v2406 = vpop.f32.mrf.mxu0
          %v2407 = vadd.f32 0.0, %v2406
          %v2408 = vpop.f32.mrf.mxu0
          %v2409 = vadd.f32 0.0, %v2408
          %2410 = vdwg.mxu0
          %v2411 = vrcp.pop %v2328
          %v2412 = vrcp.pop %v2331
          %v2413 = vrcp.pop %v2334
          %v2414 = vrcp.pop %v2337
          %v2415 = vrcp.pop %v2340
          %v2416 = vrcp.pop %v2343
          %v2417 = vrcp.pop %v2346
          %v2418 = vrcp.pop %v2349
          %v2419 = vmul.f32 %v2392, %v2411
          %v2420 = vmul.f32 %v2394, %v2412
          %v2421 = vmul.f32 %v2397, %v2413
          %v2422 = vmul.f32 %v2399, %v2414
          %v2423 = vmul.f32 %v2402, %v2415
          %v2424 = vmul.f32 %v2404, %v2416
          %v2425 = vmul.f32 %v2407, %v2417
          %v2426 = vmul.f32 %v2409, %v2418
          %v2427 = vpack.c.bf16 %v2420, %v2419
          %v2428 = vpack.c.bf16 %v2422, %v2421
          %v2429 = vpack.c.bf16 %v2424, %v2423
          %v2430 = vpack.c.bf16 %v2426, %v2425
          %v2432 = vsel %vm869, %v2427, 0
          %v2435 = vsel %vm869, %v2428, 0
          %v2438 = vsel %vm869, %v2429, 0
          %v2441 = vsel %vm869, %v2430, 0
          %2443 = vmatpush.bf16.msra.mxu0 0
          %2444 = vmatpush.bf16.msra.mxu0 0
          %2445 = vmatpush.bf16.msra.mxu0 0
          %2446 = vmatpush.bf16.msra.mxu0 0
          %2447 = vmatpush.bf16.msra.mxu0 0
          %2448 = vmatpush.bf16.msra.mxu0 0
          %2449 = vmatpush.bf16.msra.mxu0 %v1300
          %2450 = vmatpush.bf16.msra.mxu0 %v1299
          %2451 = vmatmul.bf16.gmra.mxu0 %v2432
          %v2452 = vpop.f32.mrf.mxu0
          %v2453 = vadd.f32 0.0, %v2452
          %v2454 = vpop.f32.mrf.mxu0
          %v2455 = vadd.f32 0.0, %v2454
          %2456 = vmatmul.bf16.gmra.mxu0 %v2435
          %v2457 = vpop.f32.mrf.mxu0
          %v2458 = vadd.f32 0.0, %v2457
          %v2459 = vpop.f32.mrf.mxu0
          %v2460 = vadd.f32 0.0, %v2459
          %2461 = vmatmul.bf16.gmra.mxu0 %v2438
          %v2462 = vpop.f32.mrf.mxu0
          %v2463 = vadd.f32 0.0, %v2462
          %v2464 = vpop.f32.mrf.mxu0
          %v2465 = vadd.f32 0.0, %v2464
          %2466 = vmatmul.bf16.gmra.mxu0 %v2441
          %v2467 = vpop.f32.mrf.mxu0
          %v2468 = vadd.f32 0.0, %v2467
          %v2469 = vpop.f32.mrf.mxu0
          %v2470 = vadd.f32 0.0, %v2469
          %2471 = vdwg.mxu0
          %v2473 = vsel %vm869, %v2197, 0
          %v2476 = vsel %vm869, %v2198, 0
          %v2479 = vsel %vm869, %v2199, 0
          %v2482 = vsel %vm869, %v2200, 0
          %2484 = vmatpush.bf16.msra.mxu0 0
          %2485 = vmatpush.bf16.msra.mxu0 0
          %2486 = vmatpush.bf16.msra.mxu0 0
          %2487 = vmatpush.bf16.msra.mxu0 0
          %2488 = vmatpush.bf16.msra.mxu0 0
          %2489 = vmatpush.bf16.msra.mxu0 0
          %2490 = vmatpush.bf16.msra.mxu0 %v1353
          %2491 = vmatpush.bf16.msra.mxu0 %v1352
          %2492 = vmatmul.bf16.gmra.mxu0 %v2473
          %v2493 = vpop.f32.mrf.mxu0
          %v2494 = vadd.f32 %v2453, %v2493
          %v2495 = vpop.f32.mrf.mxu0
          %v2496 = vadd.f32 %v2455, %v2495
          %2497 = vmatmul.bf16.gmra.mxu0 %v2476
          %v2498 = vpop.f32.mrf.mxu0
          %v2499 = vadd.f32 %v2458, %v2498
          %v2500 = vpop.f32.mrf.mxu0
          %v2501 = vadd.f32 %v2460, %v2500
          %2502 = vmatmul.bf16.gmra.mxu0 %v2479
          %v2503 = vpop.f32.mrf.mxu0
          %v2504 = vadd.f32 %v2463, %v2503
          %v2505 = vpop.f32.mrf.mxu0
          %v2506 = vadd.f32 %v2465, %v2505
          %2507 = vmatmul.bf16.gmra.mxu0 %v2482
          %v2508 = vpop.f32.mrf.mxu0
          %v2509 = vadd.f32 %v2468, %v2508
          %v2510 = vpop.f32.mrf.mxu0
          %v2511 = vadd.f32 %v2470, %v2510
          %2512 = vdwg.mxu0
          %2513 = vrot.lane.b32.xlu0 %v1999, 64
          %v2514 = vpop.permute.xlu0 %2513
          %2515 = vrot.lane.b32.xlu0 %v2000, 64
          %v2516 = vpop.permute.xlu0 %2515
          %2517 = vrot.lane.b32.xlu0 %v2001, 64
          %v2518 = vpop.permute.xlu0 %2517
          %2519 = vrot.lane.b32.xlu0 %v2002, 64
          %v2520 = vpop.permute.xlu0 %2519
          %2521 = vrot.lane.b32.xlu0 %v2003, 64
          %v2522 = vpop.permute.xlu0 %2521
          %2523 = vrot.lane.b32.xlu0 %v2004, 64
          %v2524 = vpop.permute.xlu0 %2523
          %2525 = vrot.lane.b32.xlu0 %v2005, 64
          %v2526 = vpop.permute.xlu0 %2525
          %2527 = vrot.lane.b32.xlu0 %v2006, 64
          %v2528 = vpop.permute.xlu0 %2527
          %v2530 = vsel %vm869, %v2514, 0
          %v2533 = vsel %vm869, %v2516, 0
          %v2536 = vsel %vm869, %v2518, 0
          %v2539 = vsel %vm869, %v2520, 0
          %v2542 = vsel %vm869, %v2522, 0
          %v2545 = vsel %vm869, %v2524, 0
          %v2548 = vsel %vm869, %v2526, 0
          %v2551 = vsel %vm869, %v2528, 0
          %2553 = vmatpush.bf16.xpose.msra.mxu0 0
          %2554 = vmatpush.bf16.xpose.msra.mxu0 0
          %2555 = vmatpush.bf16.xpose.msra.mxu0 0
          %2556 = vmatpush.bf16.xpose.msra.mxu0 0
          %2557 = vmatpush.bf16.xpose.msra.mxu0 %v2551
          %2558 = vmatpush.bf16.xpose.msra.mxu0 %v2548
          %2559 = vmatpush.bf16.xpose.msra.mxu0 %v2545
          %2560 = vmatpush.bf16.xpose.msra.mxu0 %v2542
          %2561 = vmatmul.bf16.gmra.mxu0 %v2530
          %v2562 = vpop.f32.mrf.mxu0
          %v2563 = vadd.f32 0.0, %v2562
          %v2564 = vpop.f32.mrf.mxu0
          %v2565 = vadd.f32 0.0, %v2564
          %2566 = vmatmul.bf16.gmra.mxu0 %v2533
          %v2567 = vpop.f32.mrf.mxu0
          %v2568 = vadd.f32 0.0, %v2567
          %v2569 = vpop.f32.mrf.mxu0
          %v2570 = vadd.f32 0.0, %v2569
          %2571 = vmatmul.bf16.gmra.mxu0 %v2536
          %v2572 = vpop.f32.mrf.mxu0
          %v2573 = vadd.f32 0.0, %v2572
          %v2574 = vpop.f32.mrf.mxu0
          %v2575 = vadd.f32 0.0, %v2574
          %2576 = vmatmul.bf16.gmra.mxu0 %v2539
          %v2577 = vpop.f32.mrf.mxu0
          %v2578 = vadd.f32 0.0, %v2577
          %v2579 = vpop.f32.mrf.mxu0
          %v2580 = vadd.f32 0.0, %v2579
          %2581 = vdwg.mxu0
          %v2582 = vsel %vm923, %v2563, -inf
          %2583 = vmax.xlane.f32.xlu0 %v2582
          %v2584 = vpop.xlane.xlu0 %2583
          %v2585 = vsel %vm923, %v2565, -inf
          %2586 = vmax.xlane.f32.xlu0 %v2585
          %v2587 = vpop.xlane.xlu0 %2586
          %v2588 = vsel %vm923, %v2568, -inf
          %2589 = vmax.xlane.f32.xlu0 %v2588
          %v2590 = vpop.xlane.xlu0 %2589
          %v2591 = vsel %vm923, %v2570, -inf
          %2592 = vmax.xlane.f32.xlu0 %v2591
          %v2593 = vpop.xlane.xlu0 %2592
          %v2594 = vsel %vm923, %v2573, -inf
          %2595 = vmax.xlane.f32.xlu0 %v2594
          %v2596 = vpop.xlane.xlu0 %2595
          %v2597 = vsel %vm923, %v2575, -inf
          %2598 = vmax.xlane.f32.xlu0 %v2597
          %v2599 = vpop.xlane.xlu0 %2598
          %v2600 = vsel %vm923, %v2578, -inf
          %2601 = vmax.xlane.f32.xlu0 %v2600
          %v2602 = vpop.xlane.xlu0 %2601
          %v2603 = vsel %vm923, %v2580, -inf
          %2604 = vmax.xlane.f32.xlu0 %v2603
          %v2605 = vpop.xlane.xlu0 %2604
          %v2606 = vsub.f32 %v2563, %v2584
          %v2607 = vsub.f32 %v2565, %v2587
          %v2608 = vsub.f32 %v2568, %v2590
          %v2609 = vsub.f32 %v2570, %v2593
          %v2610 = vsub.f32 %v2573, %v2596
          %v2611 = vsub.f32 %v2575, %v2599
          %v2612 = vsub.f32 %v2578, %v2602
          %v2613 = vsub.f32 %v2580, %v2605
          %v2614 = vmul.f32 %v2606, 1.442695
          %v2615 = vpow.pop %v2614
          %v2616 = vmul.f32 %v2607, 1.442695
          %v2617 = vpow.pop %v2616
          %v2618 = vmul.f32 %v2608, 1.442695
          %v2619 = vpow.pop %v2618
          %v2620 = vmul.f32 %v2609, 1.442695
          %v2621 = vpow.pop %v2620
          %v2622 = vmul.f32 %v2610, 1.442695
          %v2623 = vpow.pop %v2622
          %v2624 = vmul.f32 %v2611, 1.442695
          %v2625 = vpow.pop %v2624
          %v2626 = vmul.f32 %v2612, 1.442695
          %v2627 = vpow.pop %v2626
          %v2628 = vmul.f32 %v2613, 1.442695
          %v2629 = vpow.pop %v2628
          %v2630 = vsel %vm923, %v2615, 0.0
          %2631 = vadd.xlane.f32.xlu0 %v2630
          %v2632 = vpop.xlane.xlu0 %2631
          %v2633 = vsel %vm923, %v2617, 0.0
          %2634 = vadd.xlane.f32.xlu0 %v2633
          %v2635 = vpop.xlane.xlu0 %2634
          %v2636 = vsel %vm923, %v2619, 0.0
          %2637 = vadd.xlane.f32.xlu0 %v2636
          %v2638 = vpop.xlane.xlu0 %2637
          %v2639 = vsel %vm923, %v2621, 0.0
          %2640 = vadd.xlane.f32.xlu0 %v2639
          %v2641 = vpop.xlane.xlu0 %2640
          %v2642 = vsel %vm923, %v2623, 0.0
          %2643 = vadd.xlane.f32.xlu0 %v2642
          %v2644 = vpop.xlane.xlu0 %2643
          %v2645 = vsel %vm923, %v2625, 0.0
          %2646 = vadd.xlane.f32.xlu0 %v2645
          %v2647 = vpop.xlane.xlu0 %2646
          %v2648 = vsel %vm923, %v2627, 0.0
          %2649 = vadd.xlane.f32.xlu0 %v2648
          %v2650 = vpop.xlane.xlu0 %2649
          %v2651 = vsel %vm923, %v2629, 0.0
          %2652 = vadd.xlane.f32.xlu0 %v2651
          %v2653 = vpop.xlane.xlu0 %2652
          %v2654 = vpack.c.bf16 %v2617, %v2615
          %v2655 = vpack.c.bf16 %v2621, %v2619
          %v2656 = vpack.c.bf16 %v2625, %v2623
          %v2657 = vpack.c.bf16 %v2629, %v2627
          %2658 = vrot.lane.b32.xlu0 %v2007, 64
          %v2659 = vpop.permute.xlu0 %2658
          %2660 = vrot.lane.b32.xlu0 %v2008, 64
          %v2661 = vpop.permute.xlu0 %2660
          %2662 = vrot.lane.b32.xlu0 %v2009, 64
          %v2663 = vpop.permute.xlu0 %2662
          %2664 = vrot.lane.b32.xlu0 %v2010, 64
          %v2665 = vpop.permute.xlu0 %2664
          %v2671 = vsel %vm923, %v2654, 0
          %v2674 = vsel %vm923, %v2655, 0
          %v2677 = vsel %vm923, %v2656, 0
          %v2680 = vsel %vm923, %v2657, 0
          %2682 = vmatpush.bf16.msra.mxu0 0
          %2683 = vmatpush.bf16.msra.mxu0 0
          %2684 = vmatpush.bf16.msra.mxu0 0
          %2685 = vmatpush.bf16.msra.mxu0 0
          %2686 = vmatpush.bf16.msra.mxu0 %v2665
          %2687 = vmatpush.bf16.msra.mxu0 %v2663
          %2688 = vmatpush.bf16.msra.mxu0 %v2661
          %2689 = vmatpush.bf16.msra.mxu0 %v2659
          %2690 = vmatmul.bf16.gmra.mxu0 %v2671
          %v2691 = vpop.f32.mrf.mxu0
          %v2692 = vadd.f32 0.0, %v2691
          %v2693 = vpop.f32.mrf.mxu0
          %v2694 = vadd.f32 0.0, %v2693
          %2695 = vmatmul.bf16.gmra.mxu0 %v2674
          %v2696 = vpop.f32.mrf.mxu0
          %v2697 = vadd.f32 0.0, %v2696
          %v2698 = vpop.f32.mrf.mxu0
          %v2699 = vadd.f32 0.0, %v2698
          %2700 = vmatmul.bf16.gmra.mxu0 %v2677
          %v2701 = vpop.f32.mrf.mxu0
          %v2702 = vadd.f32 0.0, %v2701
          %v2703 = vpop.f32.mrf.mxu0
          %v2704 = vadd.f32 0.0, %v2703
          %2705 = vmatmul.bf16.gmra.mxu0 %v2680
          %v2706 = vpop.f32.mrf.mxu0
          %v2707 = vadd.f32 0.0, %v2706
          %v2708 = vpop.f32.mrf.mxu0
          %v2709 = vadd.f32 0.0, %v2708
          %2710 = vdwg.mxu0
          %v2711 = vrcp.pop %v2632
          %v2712 = vrcp.pop %v2635
          %v2713 = vrcp.pop %v2638
          %v2714 = vrcp.pop %v2641
          %v2715 = vrcp.pop %v2644
          %v2716 = vrcp.pop %v2647
          %v2717 = vrcp.pop %v2650
          %v2718 = vrcp.pop %v2653
          %v2719 = vmul.f32 %v2692, %v2711
          %v2720 = vmul.f32 %v2694, %v2712
          %v2721 = vmul.f32 %v2697, %v2713
          %v2722 = vmul.f32 %v2699, %v2714
          %v2723 = vmul.f32 %v2702, %v2715
          %v2724 = vmul.f32 %v2704, %v2716
          %v2725 = vmul.f32 %v2707, %v2717
          %v2726 = vmul.f32 %v2709, %v2718
          %v2727 = vpack.c.bf16 %v2720, %v2719
          %v2728 = vpack.c.bf16 %v2722, %v2721
          %v2729 = vpack.c.bf16 %v2724, %v2723
          %v2730 = vpack.c.bf16 %v2726, %v2725
          %v2732 = vsel %vm869, %v2727, 0
          %v2735 = vsel %vm869, %v2728, 0
          %v2738 = vsel %vm869, %v2729, 0
          %v2741 = vsel %vm869, %v2730, 0
          %2743 = vmatpush.bf16.msra.mxu0 0
          %2744 = vmatpush.bf16.msra.mxu0 0
          %2745 = vmatpush.bf16.msra.mxu0 0
          %2746 = vmatpush.bf16.msra.mxu0 0
          %2747 = vmatpush.bf16.msra.mxu0 0
          %2748 = vmatpush.bf16.msra.mxu0 0
          %2749 = vmatpush.bf16.msra.mxu0 %v1624
          %2750 = vmatpush.bf16.msra.mxu0 %v1623
          %2751 = vmatmul.bf16.gmra.mxu0 %v2732
          %v2752 = vpop.f32.mrf.mxu0
          %v2753 = vadd.f32 0.0, %v2752
          %v2754 = vpop.f32.mrf.mxu0
          %v2755 = vadd.f32 0.0, %v2754
          %2756 = vmatmul.bf16.gmra.mxu0 %v2735
          %v2757 = vpop.f32.mrf.mxu0
          %v2758 = vadd.f32 0.0, %v2757
          %v2759 = vpop.f32.mrf.mxu0
          %v2760 = vadd.f32 0.0, %v2759
          %2761 = vmatmul.bf16.gmra.mxu0 %v2738
          %v2762 = vpop.f32.mrf.mxu0
          %v2763 = vadd.f32 0.0, %v2762
          %v2764 = vpop.f32.mrf.mxu0
          %v2765 = vadd.f32 0.0, %v2764
          %2766 = vmatmul.bf16.gmra.mxu0 %v2741
          %v2767 = vpop.f32.mrf.mxu0
          %v2768 = vadd.f32 0.0, %v2767
          %v2769 = vpop.f32.mrf.mxu0
          %v2770 = vadd.f32 0.0, %v2769
          %2771 = vdwg.mxu0
          %v2772 = vadd.f32 %v2494, %v2753
          %v2773 = vadd.f32 %v2496, %v2755
          %v2774 = vadd.f32 %v2499, %v2758
          %v2775 = vadd.f32 %v2501, %v2760
          %v2776 = vadd.f32 %v2504, %v2763
          %v2777 = vadd.f32 %v2506, %v2765
          %v2778 = vadd.f32 %v2509, %v2768
          %v2779 = vadd.f32 %v2511, %v2770
          %2780 = vrot.lane.b32.xlu0 %v1999, 32
          %v2781 = vpop.permute.xlu0 %2780
          %2782 = vrot.lane.b32.xlu0 %v2000, 32
          %v2783 = vpop.permute.xlu0 %2782
          %2784 = vrot.lane.b32.xlu0 %v2001, 32
          %v2785 = vpop.permute.xlu0 %2784
          %2786 = vrot.lane.b32.xlu0 %v2002, 32
          %v2787 = vpop.permute.xlu0 %2786
          %2788 = vrot.lane.b32.xlu0 %v2003, 32
          %v2789 = vpop.permute.xlu0 %2788
          %2790 = vrot.lane.b32.xlu0 %v2004, 32
          %v2791 = vpop.permute.xlu0 %2790
          %2792 = vrot.lane.b32.xlu0 %v2005, 32
          %v2793 = vpop.permute.xlu0 %2792
          %2794 = vrot.lane.b32.xlu0 %v2006, 32
          %v2795 = vpop.permute.xlu0 %2794
          %v2797 = vsel %vm869, %v2781, 0
          %v2800 = vsel %vm869, %v2783, 0
          %v2803 = vsel %vm869, %v2785, 0
          %v2806 = vsel %vm869, %v2787, 0
          %v2809 = vsel %vm869, %v2789, 0
          %v2812 = vsel %vm869, %v2791, 0
          %v2815 = vsel %vm869, %v2793, 0
          %v2818 = vsel %vm869, %v2795, 0
          %2820 = vmatpush.bf16.xpose.msra.mxu0 0
          %2821 = vmatpush.bf16.xpose.msra.mxu0 0
          %2822 = vmatpush.bf16.xpose.msra.mxu0 0
          %2823 = vmatpush.bf16.xpose.msra.mxu0 0
          %2824 = vmatpush.bf16.xpose.msra.mxu0 %v2818
          %2825 = vmatpush.bf16.xpose.msra.mxu0 %v2815
          %2826 = vmatpush.bf16.xpose.msra.mxu0 %v2812
          %2827 = vmatpush.bf16.xpose.msra.mxu0 %v2809
          %2828 = vmatmul.bf16.gmra.mxu0 %v2797
          %v2829 = vpop.f32.mrf.mxu0
          %v2830 = vadd.f32 0.0, %v2829
          %v2831 = vpop.f32.mrf.mxu0
          %v2832 = vadd.f32 0.0, %v2831
          %2833 = vmatmul.bf16.gmra.mxu0 %v2800
          %v2834 = vpop.f32.mrf.mxu0
          %v2835 = vadd.f32 0.0, %v2834
          %v2836 = vpop.f32.mrf.mxu0
          %v2837 = vadd.f32 0.0, %v2836
          %2838 = vmatmul.bf16.gmra.mxu0 %v2803
          %v2839 = vpop.f32.mrf.mxu0
          %v2840 = vadd.f32 0.0, %v2839
          %v2841 = vpop.f32.mrf.mxu0
          %v2842 = vadd.f32 0.0, %v2841
          %2843 = vmatmul.bf16.gmra.mxu0 %v2806
          %v2844 = vpop.f32.mrf.mxu0
          %v2845 = vadd.f32 0.0, %v2844
          %v2846 = vpop.f32.mrf.mxu0
          %v2847 = vadd.f32 0.0, %v2846
          %2848 = vdwg.mxu0
          %v2849 = vsel %vm923, %v2830, -inf
          %2850 = vmax.xlane.f32.xlu0 %v2849
          %v2851 = vpop.xlane.xlu0 %2850
          %v2852 = vsel %vm923, %v2832, -inf
          %2853 = vmax.xlane.f32.xlu0 %v2852
          %v2854 = vpop.xlane.xlu0 %2853
          %v2855 = vsel %vm923, %v2835, -inf
          %2856 = vmax.xlane.f32.xlu0 %v2855
          %v2857 = vpop.xlane.xlu0 %2856
          %v2858 = vsel %vm923, %v2837, -inf
          %2859 = vmax.xlane.f32.xlu0 %v2858
          %v2860 = vpop.xlane.xlu0 %2859
          %v2861 = vsel %vm923, %v2840, -inf
          %2862 = vmax.xlane.f32.xlu0 %v2861
          %v2863 = vpop.xlane.xlu0 %2862
          %v2864 = vsel %vm923, %v2842, -inf
          %2865 = vmax.xlane.f32.xlu0 %v2864
          %v2866 = vpop.xlane.xlu0 %2865
          %v2867 = vsel %vm923, %v2845, -inf
          %2868 = vmax.xlane.f32.xlu0 %v2867
          %v2869 = vpop.xlane.xlu0 %2868
          %v2870 = vsel %vm923, %v2847, -inf
          %2871 = vmax.xlane.f32.xlu0 %v2870
          %v2872 = vpop.xlane.xlu0 %2871
          %v2873 = vsub.f32 %v2830, %v2851
          %v2874 = vsub.f32 %v2832, %v2854
          %v2875 = vsub.f32 %v2835, %v2857
          %v2876 = vsub.f32 %v2837, %v2860
          %v2877 = vsub.f32 %v2840, %v2863
          %v2878 = vsub.f32 %v2842, %v2866
          %v2879 = vsub.f32 %v2845, %v2869
          %v2880 = vsub.f32 %v2847, %v2872
          %v2881 = vmul.f32 %v2873, 1.442695
          %v2882 = vpow.pop %v2881
          %v2883 = vmul.f32 %v2874, 1.442695
          %v2884 = vpow.pop %v2883
          %v2885 = vmul.f32 %v2875, 1.442695
          %v2886 = vpow.pop %v2885
          %v2887 = vmul.f32 %v2876, 1.442695
          %v2888 = vpow.pop %v2887
          %v2889 = vmul.f32 %v2877, 1.442695
          %v2890 = vpow.pop %v2889
          %v2891 = vmul.f32 %v2878, 1.442695
          %v2892 = vpow.pop %v2891
          %v2893 = vmul.f32 %v2879, 1.442695
          %v2894 = vpow.pop %v2893
          %v2895 = vmul.f32 %v2880, 1.442695
          %v2896 = vpow.pop %v2895
          %v2897 = vsel %vm923, %v2882, 0.0
          %2898 = vadd.xlane.f32.xlu0 %v2897
          %v2899 = vpop.xlane.xlu0 %2898
          %v2900 = vsel %vm923, %v2884, 0.0
          %2901 = vadd.xlane.f32.xlu0 %v2900
          %v2902 = vpop.xlane.xlu0 %2901
          %v2903 = vsel %vm923, %v2886, 0.0
          %2904 = vadd.xlane.f32.xlu0 %v2903
          %v2905 = vpop.xlane.xlu0 %2904
          %v2906 = vsel %vm923, %v2888, 0.0
          %2907 = vadd.xlane.f32.xlu0 %v2906
          %v2908 = vpop.xlane.xlu0 %2907
          %v2909 = vsel %vm923, %v2890, 0.0
          %2910 = vadd.xlane.f32.xlu0 %v2909
          %v2911 = vpop.xlane.xlu0 %2910
          %v2912 = vsel %vm923, %v2892, 0.0
          %2913 = vadd.xlane.f32.xlu0 %v2912
          %v2914 = vpop.xlane.xlu0 %2913
          %v2915 = vsel %vm923, %v2894, 0.0
          %2916 = vadd.xlane.f32.xlu0 %v2915
          %v2917 = vpop.xlane.xlu0 %2916
          %v2918 = vsel %vm923, %v2896, 0.0
          %2919 = vadd.xlane.f32.xlu0 %v2918
          %v2920 = vpop.xlane.xlu0 %2919
          %v2921 = vpack.c.bf16 %v2884, %v2882
          %v2922 = vpack.c.bf16 %v2888, %v2886
          %v2923 = vpack.c.bf16 %v2892, %v2890
          %v2924 = vpack.c.bf16 %v2896, %v2894
          %2925 = vrot.lane.b32.xlu0 %v2007, 32
          %v2926 = vpop.permute.xlu0 %2925
          %2927 = vrot.lane.b32.xlu0 %v2008, 32
          %v2928 = vpop.permute.xlu0 %2927
          %2929 = vrot.lane.b32.xlu0 %v2009, 32
          %v2930 = vpop.permute.xlu0 %2929
          %2931 = vrot.lane.b32.xlu0 %v2010, 32
          %v2932 = vpop.permute.xlu0 %2931
          %v2938 = vsel %vm923, %v2921, 0
          %v2941 = vsel %vm923, %v2922, 0
          %v2944 = vsel %vm923, %v2923, 0
          %v2947 = vsel %vm923, %v2924, 0
          %2949 = vmatpush.bf16.msra.mxu0 0
          %2950 = vmatpush.bf16.msra.mxu0 0
          %2951 = vmatpush.bf16.msra.mxu0 0
          %2952 = vmatpush.bf16.msra.mxu0 0
          %2953 = vmatpush.bf16.msra.mxu0 %v2932
          %2954 = vmatpush.bf16.msra.mxu0 %v2930
          %2955 = vmatpush.bf16.msra.mxu0 %v2928
          %2956 = vmatpush.bf16.msra.mxu0 %v2926
          %2957 = vmatmul.bf16.gmra.mxu0 %v2938
          %v2958 = vpop.f32.mrf.mxu0
          %v2959 = vadd.f32 0.0, %v2958
          %v2960 = vpop.f32.mrf.mxu0
          %v2961 = vadd.f32 0.0, %v2960
          %2962 = vmatmul.bf16.gmra.mxu0 %v2941
          %v2963 = vpop.f32.mrf.mxu0
          %v2964 = vadd.f32 0.0, %v2963
          %v2965 = vpop.f32.mrf.mxu0
          %v2966 = vadd.f32 0.0, %v2965
          %2967 = vmatmul.bf16.gmra.mxu0 %v2944
          %v2968 = vpop.f32.mrf.mxu0
          %v2969 = vadd.f32 0.0, %v2968
          %v2970 = vpop.f32.mrf.mxu0
          %v2971 = vadd.f32 0.0, %v2970
          %2972 = vmatmul.bf16.gmra.mxu0 %v2947
          %v2973 = vpop.f32.mrf.mxu0
          %v2974 = vadd.f32 0.0, %v2973
          %v2975 = vpop.f32.mrf.mxu0
          %v2976 = vadd.f32 0.0, %v2975
          %2977 = vdwg.mxu0
          %v2978 = vrcp.pop %v2899
          %v2979 = vrcp.pop %v2902
          %v2980 = vrcp.pop %v2905
          %v2981 = vrcp.pop %v2908
          %v2982 = vrcp.pop %v2911
          %v2983 = vrcp.pop %v2914
          %v2984 = vrcp.pop %v2917
          %v2985 = vrcp.pop %v2920
          %v2986 = vmul.f32 %v2959, %v2978
          %v2987 = vmul.f32 %v2961, %v2979
          %v2988 = vmul.f32 %v2964, %v2980
          %v2989 = vmul.f32 %v2966, %v2981
          %v2990 = vmul.f32 %v2969, %v2982
          %v2991 = vmul.f32 %v2971, %v2983
          %v2992 = vmul.f32 %v2974, %v2984
          %v2993 = vmul.f32 %v2976, %v2985
          %v2994 = vpack.c.bf16 %v2987, %v2986
          %v2995 = vpack.c.bf16 %v2989, %v2988
          %v2996 = vpack.c.bf16 %v2991, %v2990
          %v2997 = vpack.c.bf16 %v2993, %v2992
          %v2999 = vsel %vm869, %v2994, 0
          %v3002 = vsel %vm869, %v2995, 0
          %v3005 = vsel %vm869, %v2996, 0
          %v3008 = vsel %vm869, %v2997, 0
          %3010 = vmatpush.bf16.msra.mxu0 0
          %3011 = vmatpush.bf16.msra.mxu0 0
          %3012 = vmatpush.bf16.msra.mxu0 0
          %3013 = vmatpush.bf16.msra.mxu0 0
          %3014 = vmatpush.bf16.msra.mxu0 0
          %3015 = vmatpush.bf16.msra.mxu0 0
          %3016 = vmatpush.bf16.msra.mxu0 %v1903
          %3017 = vmatpush.bf16.msra.mxu0 %v1902
          %3018 = vmatmul.bf16.gmra.mxu0 %v2999
          %v3019 = vpop.f32.mrf.mxu0
          %v3020 = vadd.f32 0.0, %v3019
          %v3021 = vpop.f32.mrf.mxu0
          %v3022 = vadd.f32 0.0, %v3021
          %3023 = vmatmul.bf16.gmra.mxu0 %v3002
          %v3024 = vpop.f32.mrf.mxu0
          %v3025 = vadd.f32 0.0, %v3024
          %v3026 = vpop.f32.mrf.mxu0
          %v3027 = vadd.f32 0.0, %v3026
          %3028 = vmatmul.bf16.gmra.mxu0 %v3005
          %v3029 = vpop.f32.mrf.mxu0
          %v3030 = vadd.f32 0.0, %v3029
          %v3031 = vpop.f32.mrf.mxu0
          %v3032 = vadd.f32 0.0, %v3031
          %3033 = vmatmul.bf16.gmra.mxu0 %v3008
          %v3034 = vpop.f32.mrf.mxu0
          %v3035 = vadd.f32 0.0, %v3034
          %v3036 = vpop.f32.mrf.mxu0
          %v3037 = vadd.f32 0.0, %v3036
          %3038 = vdwg.mxu0
          %v3039 = vadd.f32 %v2772, %v3020
          %v3040 = vadd.f32 %v2773, %v3022
          %v3041 = vadd.f32 %v2774, %v3025
          %v3042 = vadd.f32 %v2775, %v3027
          %v3043 = vadd.f32 %v2776, %v3030
          %v3044 = vadd.f32 %v2777, %v3032
          %v3045 = vadd.f32 %v2778, %v3035
          %v3046 = vadd.f32 %v2779, %v3037
          %v3047 = vadd.f32 %v367, %v568
          %v3048 = vadd.f32 %v368, %v570
          %v3049 = vadd.f32 %v369, %v573
          %v3050 = vadd.f32 %v370, %v575
          %v3051 = vadd.f32 %v371, %v578
          %v3052 = vadd.f32 %v372, %v580
          %v3053 = vadd.f32 %v373, %v583
          %v3054 = vadd.f32 %v374, %v585
          %v3055 = vadd.f32 %v3047, %v3039
          %v3056 = vadd.f32 %v3048, %v3040
          %v3057 = vadd.f32 %v3049, %v3041
          %v3058 = vadd.f32 %v3050, %v3042
          %v3059 = vadd.f32 %v3051, %v3043
          %v3060 = vadd.f32 %v3052, %v3044
          %v3061 = vadd.f32 %v3053, %v3045
          %v3062 = vadd.f32 %v3054, %v3046
          %3063 = vst [vmem:[%s319 + $0x40] sm:$0xff] %v3055
          %3064 = vst [vmem:[%s319 + $0x48] sm:$0xff] %v3056
          %3065 = vst [vmem:[%s319 + $0x50] sm:$0xff] %v3057
          %3066 = vst [vmem:[%s319 + $0x58] sm:$0xff] %v3058
          %3067 = vst [vmem:[%s319 + $0x60] sm:$0xff] %v3059
          %3068 = vst [vmem:[%s319 + $0x68] sm:$0xff] %v3060
          %3069 = vst [vmem:[%s319 + $0x70] sm:$0xff] %v3061
          %3070 = vst [vmem:[%s319 + $0x78] sm:$0xff] %v3062
        $region65: #{tpu_custom_call.1} parent=39 // loop_footer
          %s358 = sadd.s32 1, %s354
        $region66: #{tpu_custom_call.1} parent=39 // loop_footer_branch
          %353 = sbr.rel target = $region62
        $region67: #{tpu_custom_call.1} parent=39 // loop_exit
          _
        %s3071 = sand.u32 %s151, 1
        %s3072 = scalar_lea.sflag [#allocation7], %s3071
        %s3073 = sand.u32 %s151, 1
        %s3074 = smul.addr %s3073, 128
        %s3075 = scalar_lea.vmem [#allocation14], %s3074
        // Predicated region
        $region68: #{tpu_custom_call.1} parent=39 // pred_check
          %p3076 = pneg %p161
        $region69: #{tpu_custom_call.1} parent=39 // pred_check_branch
          %3078 = sbr.rel (%p3076) target = $region71
        $region70: #{tpu_custom_call.1} parent=39 // pred_region
          %3080 = vsyncadd %s3072, 0
          %s3081 = smul.addr %s33, 16
          %s3082 = smul.addr %s3081, 8
          %s3083 = scalar_lea.hbm %s6, %s3082
          %s3084 = sshll.u32 %s3075, 4
          %s3085 = int_to_ptr.vmem [resolvable:$true] %s3084
          %s3086 = sshll.u32 %s3083, 4
          %s3087 = int_to_ptr.hbm [resolvable:$true] %s3086
          %3092 = dma.vmem_to_hbm [thread:$0]  %s3085, 2048, %s3087, %s3072, 128, 128, 8
        $region71: #{tpu_custom_call.1} parent=39 // pred_fallthru
          _
      $region40: #{tpu_custom_call.1} parent=5 // pred_fallthru
        _
      %p3093 = scmp.le.s32.totalorder 2, %s28
      // Predicated region
      $region72: #{tpu_custom_call.1} parent=5 // pred_check
        %p3094 = pneg %p3093
      $region73: #{tpu_custom_call.1} parent=5 // pred_check_branch
        %3096 = sbr.rel (%p3094) target = $region75
      $region74: #{tpu_custom_call.1} parent=5 // pred_region
        %s3097 = ssub.s32 %s28, 2
        // Predicated region
        $region76: #{tpu_custom_call.1} parent=74 // pred_check
          %p3098 = pneg %p167
        $region77: #{tpu_custom_call.1} parent=74 // pred_check_branch
          %3100 = sbr.rel (%p3098) target = $region79
        $region78: #{tpu_custom_call.1} parent=74 // pred_region
          %s3101 = sand.u32 %s152, 1
          %s3102 = scalar_lea.sflag [#allocation7], %s3101
          %s3103 = sand.u32 %s152, 1
          %s3104 = smul.addr %s3103, 128
          %s3105 = scalar_lea.vmem [#allocation14], %s3104
          %3107 = dma.done %s3102, 2048
        $region79: #{tpu_custom_call.1} parent=74 // pred_fallthru
          _
      $region75: #{tpu_custom_call.1} parent=5 // pred_fallthru
        _
    $region6: #{tpu_custom_call.1} parent=1 // loop_footer
      %s32 = sadd.s32 1, %s28
    $region7: #{tpu_custom_call.1} parent=1 // loop_footer_branch
      %27 = sbr.rel target = $region3
    $region8: #{tpu_custom_call.1} parent=1 // loop_exit
      _
    %3108 = vsyncpa [#allocation6], 1
    %s3109 = scalar_lea.sflag [#allocation6], 1
    %3110 = vsyncpa %s3109, 1
    %3111 = vsyncpa [#allocation9], 1
    %3112 = vsyncpa [#allocation12], 1
    %3113 = vsyncpa [#allocation7], 1
    %s3114 = scalar_lea.sflag [#allocation7], 1
    %3115 = vsyncpa %s3114, 1

</llo_original>
